<compile_context>
chip_gen: v6e
topology: v6e:2x2x1
jax: 0.10.0
libtpu: 0.0.40
codegen_flags: <defaults>
</compile_context>

<pallas_src>
import numpy as np
import jax
import jax.numpy as jnp
from jax import lax
from jax.experimental import pallas as pl
from jax.experimental.pallas import tpu as pltpu


# ----------------------------------------------------------------------------
# Pallas kernel 1: one bidirectional LSTM layer.  grid=(2,) over direction,
# each grid step runs the full sequence for its direction.
# ----------------------------------------------------------------------------
def _bilstm_layer_kernel(x_ref, wih_ref, whh_ref, b_ref, out_ref, hn_ref, gx_scr):
    d = pl.program_id(0)                 # 0 = forward, 1 = backward
    S, B, H = out_ref.shape              # out_ref: (S, B, H) for this direction

    # ---- Hoisted input projection: ONE (S*B, in) @ (in, 4H) MXU matmul ----
    gx = (jnp.dot(x_ref[...], wih_ref[...], preferred_element_type=jnp.float32)
          + b_ref[...])                  # (S*B, 4H), gate order i,f,g,o (PyTorch)
    # Stash per-timestep (B, 4H) blocks into VMEM scratch with static slices
    # (done once, outside the recurrence).
    for s in range(S):
        gx_scr[s] = gx[s * B:(s + 1) * B, :]

    whh = whh_ref[...]                   # (H, 4H), the only per-step matmul operand
    rev = d == 1                         # backward direction consumes time reversed

    def step(s, carry):
        h, c = carry
        t = jnp.where(rev, S - 1 - s, s)           # reversal via index, no [::-1] copies
        gates = gx_scr[t] + jnp.dot(h, whh, preferred_element_type=jnp.float32)
        sig = jax.nn.sigmoid(gates)                 # full (B, 4H) row: one EUP push
        tnh = jnp.tanh(gates)                       # one EUP push
        i_g = sig[:, 0:H]
        f_g = sig[:, H:2 * H]
        g_g = tnh[:, 2 * H:3 * H]
        o_g = sig[:, 3 * H:4 * H]
        c_new = f_g * c + i_g * g_g
        h_new = o_g * jnp.tanh(c_new)
        out_ref[t] = h_new
        return h_new, c_new

    h0 = jnp.zeros((B, H), jnp.float32)
    c0 = jnp.zeros((B, H), jnp.float32)
    h_fin, _ = lax.fori_loop(0, S, step, (h0, c0), unroll=True)
    hn_ref[...] = h_fin                  # final hidden state for this direction


def bilstm_layer(x_flat, S, wih, whh, b):
    """x_flat: (S*B, in_dim) time-major flattened input.
       wih: (2, in_dim, 4H), whh: (2, H, 4H), b: (2, 1, 4H)  [dir 0 = forward].
       Returns out (2, S, B, H) and hn (2, B, H)."""
    SB, E = x_flat.shape
    B = SB // S
    H = whh.shape[1]
    out, hn = pl.pallas_call(
        _bilstm_layer_kernel,
        out_shape=(jax.ShapeDtypeStruct((2, S, B, H), jnp.float32),
                   jax.ShapeDtypeStruct((2, B, H), jnp.float32)),
        grid_spec=pltpu.PrefetchScalarGridSpec(
            num_scalar_prefetch=0,
            grid=(2,),
            in_specs=[
                pl.BlockSpec((SB, E), lambda d: (0, 0)),
                pl.BlockSpec((None, E, 4 * H), lambda d: (d, 0, 0)),
                pl.BlockSpec((None, H, 4 * H), lambda d: (d, 0, 0)),
                pl.BlockSpec((None, 1, 4 * H), lambda d: (d, 0, 0)),
            ],
            out_specs=[
                pl.BlockSpec((None, S, B, H), lambda d: (d, 0, 0, 0)),
                pl.BlockSpec((None, B, H), lambda d: (d, 0, 0)),
            ],
            scratch_shapes=[pltpu.VMEM((S, B, 4 * H), jnp.float32)],
        ),
        compiler_params=pltpu.CompilerParams(
            dimension_semantics=("parallel",)),   # megacore: one direction per TensorCore
    )(x_flat, wih, whh, b)
    return out, hn


# ----------------------------------------------------------------------------
# Pallas kernel 2: post-LSTM head — max/avg pool over hn states, LayerNorm,
# fc + tanh, output projection.  Everything resident in VMEM, one launch.
# ----------------------------------------------------------------------------
def _head_kernel(hn_ref, gamma_ref, beta_ref, fcw_ref, fcb_ref,
                 outw_ref, outb_ref, o_ref):
    hn = hn_ref[...]                              # (2*num_layers, B, H)
    x1 = jnp.max(hn, axis=0)                      # max_pool1d over layer/dir axis
    x2 = jnp.mean(hn, axis=0)                     # avg_pool1d
    x = jnp.concatenate([x1, x2], axis=-1)        # (B, 2H)

    # LayerNorm over last dim (eps matches nn.LayerNorm default)
    mu = jnp.mean(x, axis=-1, keepdims=True)
    var = jnp.mean((x - mu) * (x - mu), axis=-1, keepdims=True)
    x = (x - mu) * lax.rsqrt(var + 1e-5)
    x = x * gamma_ref[...] + beta_ref[...]

    # fc -> tanh -> (dropout == identity at inference) -> out
    x = jnp.dot(x, fcw_ref[...], preferred_element_type=jnp.float32) + fcb_ref[...]
    x = jnp.tanh(x)
    o_ref[...] = (jnp.dot(x, outw_ref[...], preferred_element_type=jnp.float32)
                  + outb_ref[...])


def head(hn_stack, gamma, beta, fc_w, fc_b, out_w, out_b):
    B = hn_stack.shape[1]
    C = out_w.shape[1]
    vmem = pl.BlockSpec(memory_space=pltpu.MemorySpace.VMEM)
    return pl.pallas_call(
        _head_kernel,
        out_shape=jax.ShapeDtypeStruct((B, C), jnp.float32),
        in_specs=[vmem] * 7,
        out_specs=vmem,
    )(hn_stack, gamma, beta, fc_w, fc_b, out_w, out_b)


# ----------------------------------------------------------------------------
# Full model forward (glue: embedding lookup, layer stacking).
# ----------------------------------------------------------------------------
def model_forward(tokens, P):
    B, S = tokens.shape
    x = jnp.take(P["embedding"], tokens, axis=0)          # (B, S, E)
    # dropout(p=0.5) -> identity in inference
    x = jnp.transpose(x, (1, 0, 2))                       # (S, B, E) time-major

    hn_list = []
    layer_in = x.reshape(S * B, -1)                       # flattened time-major
    for (wih, whh, b) in P["lstm"]:
        out, hn = bilstm_layer(layer_in, S, wih, whh, b)  # out: (2, S, B, H)
        # bidirectional feature concat (forward first), flatten for next layer
        layer_in = jnp.concatenate([out[0], out[1]], axis=-1).reshape(S * B, -1)
        hn_list.append(hn)

    hn_stack = jnp.concatenate(hn_list, axis=0)           # (2*num_layers, B, H)
    return head(hn_stack, P["ln_gamma"], P["ln_beta"],
                P["fc_w"], P["fc_b"], P["out_w"], P["out_b"])


# ----------------------------------------------------------------------------
# Pure-JAX reference (for correctness check of the Pallas kernels)
# ----------------------------------------------------------------------------
def _lstm_dir_ref(x, wih_t, whh_t, b):
    S, B, _ = x.shape
    H = whh_t.shape[0]

    def step(carry, x_t):
        h, c = carry
        g = x_t @ wih_t + h @ whh_t + b
        i = jax.nn.sigmoid(g[:, :H])
        f = jax.nn.sigmoid(g[:, H:2 * H])
        gg = jnp.tanh(g[:, 2 * H:3 * H])
        o = jax.nn.sigmoid(g[:, 3 * H:])
        c = f * c + i * gg
        h = o * jnp.tanh(c)
        return (h, c), h

    (h, _), ys = lax.scan(step, (jnp.zeros((B, H)), jnp.zeros((B, H))), x)
    return ys, h


def model_forward_ref(tokens, P):
    x = jnp.take(P["embedding"], tokens, axis=0)
    x = jnp.transpose(x, (1, 0, 2))
    hn_list = []
    layer_in = x
    for (wih, whh, b) in P["lstm"]:
        out_f, hn_f = _lstm_dir_ref(layer_in, wih[0], whh[0], b[0])
        out_b_rev, hn_b = _lstm_dir_ref(layer_in[::-1], wih[1], whh[1], b[1])
        layer_in = jnp.concatenate([out_f, out_b_rev[::-1]], axis=-1)
        hn_list += [hn_f, hn_b]
    hn = jnp.stack(hn_list, axis=0)
    x1 = jnp.max(hn, axis=0)
    x2 = jnp.mean(hn, axis=0)
    x = jnp.concatenate([x1, x2], axis=-1)
    mu = jnp.mean(x, -1, keepdims=True)
    var = jnp.mean((x - mu) ** 2, -1, keepdims=True)
    x = (x - mu) / jnp.sqrt(var + 1e-5) * P["ln_gamma"] + P["ln_beta"]
    x = jnp.tanh(x @ P["fc_w"] + P["fc_b"])
    return x @ P["out_w"] + P["out_b"]


# ----------------------------------------------------------------------------
# Deterministic parameter construction (shapes follow Model.__init__)
# ----------------------------------------------------------------------------
def init_params(key, vocab, E, H, C, num_layers=2):
    ks = iter(jax.random.split(key, 64))
    k_lstm = 1.0 / np.sqrt(H)
    P = {}
    P["embedding"] = jax.random.normal(next(ks), (vocab, E), jnp.float32)

    lstm = []
    in_dim = E
    for _ in range(num_layers):
        wihs, whhs, bs = [], [], []
        for _d in range(2):  # direction 0 = forward, 1 = reverse
            wih = jax.random.uniform(next(ks), (in_dim, 4 * H), jnp.float32, -k_lstm, k_lstm)
            whh = jax.random.uniform(next(ks), (H, 4 * H), jnp.float32, -k_lstm, k_lstm)
            bih = jax.random.uniform(next(ks), (4 * H,), jnp.float32, -k_lstm, k_lstm)
            bhh = jax.random.uniform(next(ks), (4 * H,), jnp.float32, -k_lstm, k_lstm)
            wihs.append(wih)
            whhs.append(whh)
            bs.append((bih + bhh).reshape(1, 4 * H))
        lstm.append((jnp.stack(wihs, 0), jnp.stack(whhs, 0), jnp.stack(bs, 0)))
        in_dim = 2 * H
    P["lstm"] = lstm

    # self.weight (attention score vector) is zeros and unused when is_add_att=False.
    P["att_weight"] = jnp.zeros((2 * H,), jnp.float32)

    P["ln_gamma"] = jnp.ones((1, 2 * H), jnp.float32)
    P["ln_beta"] = jnp.zeros((1, 2 * H), jnp.float32)

    k_fc = 1.0 / np.sqrt(2 * H)
    P["fc_w"] = jax.random.uniform(next(ks), (2 * H, H), jnp.float32, -k_fc, k_fc)
    P["fc_b"] = jax.random.uniform(next(ks), (1, H), jnp.float32, -k_fc, k_fc)

    k_out = 1.0 / np.sqrt(H)
    P["out_w"] = jax.random.uniform(next(ks), (H, C), jnp.float32, -k_out, k_out)
    P["out_b"] = jax.random.uniform(next(ks), (1, C), jnp.float32, -k_out, k_out)
    return P


if __name__ == "__main__":
    # Small shapes consistent with the module.
    VOCAB, EMBED, HIDDEN, SEQ, CLASSES = 32, 16, 32, 8, 4
    BATCH = 2

    key = jax.random.PRNGKey(0)
    k_tok, k_par = jax.random.split(key)
    tokens = jax.random.randint(k_tok, (BATCH, SEQ), 1, VOCAB, dtype=jnp.int32)
    params = init_params(k_par, VOCAB, EMBED, HIDDEN, CLASSES, num_layers=2)

    out = jax.jit(model_forward)(tokens, params)
    out = jax.block_until_ready(out)

    ref = jax.block_until_ready(model_forward_ref(tokens, params))
    np.testing.assert_allclose(np.asarray(out), np.asarray(ref), rtol=1e-4, atol=1e-4)
    assert out.shape == (BATCH, CLASSES)

    print("KERNEL_OK")
</pallas_src>

<mosaic_0001>
module attributes {stable_mosaic.version = 11 : i64} {
  func.func @_head_kernel(%arg0: memref<4x2x32xf32, #tpu.memory_space<vmem>>, %arg1: memref<1x64xf32, #tpu.memory_space<vmem>>, %arg2: memref<1x64xf32, #tpu.memory_space<vmem>>, %arg3: memref<64x32xf32, #tpu.memory_space<vmem>>, %arg4: memref<1x32xf32, #tpu.memory_space<vmem>>, %arg5: memref<32x4xf32, #tpu.memory_space<vmem>>, %arg6: memref<1x4xf32, #tpu.memory_space<vmem>>, %arg7: memref<2x4xf32, #tpu.memory_space<vmem>>) attributes {dimension_semantics = [], scalar_prefetch = 0 : i64, scratch_operands = 0 : i64, tpu.core_type = #tpu.core_type<tc>} {
    %c0 = arith.constant 0 : index
    %c0_0 = arith.constant 0 : index
    %c0_1 = arith.constant 0 : index
    %0 = vector.load %arg0[%c0, %c0_0, %c0_1] : memref<4x2x32xf32, #tpu.memory_space<vmem>>, vector<4x2x32xf32>
    %cst = arith.constant dense<0xFF800000> : vector<2x32xf32>
    %1 = vector.multi_reduction <maximumf>, %0, %cst [0] : vector<4x2x32xf32> to vector<2x32xf32>
    %cst_2 = arith.constant dense<0.000000e+00> : vector<2x32xf32>
    %2 = vector.multi_reduction <add>, %0, %cst_2 [0] : vector<4x2x32xf32> to vector<2x32xf32>
    %cst_3 = arith.constant 4.000000e+00 : f32
    %3 = vector.broadcast %cst_3 : f32 to vector<2x32xf32>
    %4 = arith.divf %2, %3 : vector<2x32xf32>
    %5 = tpu.concatenate %1, %4 in 1 : vector<2x32xf32>, vector<2x32xf32> -> vector<2x64xf32>
    %cst_4 = arith.constant dense<0.000000e+00> : vector<2xf32>
    %6 = vector.multi_reduction <add>, %5, %cst_4 [1] : vector<2x64xf32> to vector<2xf32>
    %7 = vector.shape_cast %6 : vector<2xf32> to vector<2x1xf32>
    %cst_5 = arith.constant 6.400000e+01 : f32
    %8 = vector.broadcast %cst_5 : f32 to vector<2x1xf32>
    %9 = arith.divf %7, %8 : vector<2x1xf32>
    %10 = vector.broadcast %9 : vector<2x1xf32> to vector<2x64xf32>
    %11 = arith.subf %5, %10 : vector<2x64xf32>
    %12 = vector.broadcast %9 : vector<2x1xf32> to vector<2x64xf32>
    %13 = arith.subf %5, %12 : vector<2x64xf32>
    %14 = arith.mulf %11, %13 : vector<2x64xf32>
    %cst_6 = arith.constant dense<0.000000e+00> : vector<2xf32>
    %15 = vector.multi_reduction <add>, %14, %cst_6 [1] : vector<2x64xf32> to vector<2xf32>
    %16 = vector.shape_cast %15 : vector<2xf32> to vector<2x1xf32>
    %cst_7 = arith.constant 6.400000e+01 : f32
    %17 = vector.broadcast %cst_7 : f32 to vector<2x1xf32>
    %18 = arith.divf %16, %17 : vector<2x1xf32>
    %19 = vector.broadcast %9 : vector<2x1xf32> to vector<2x64xf32>
    %20 = arith.subf %5, %19 : vector<2x64xf32>
    %cst_8 = arith.constant 9.99999974E-6 : f32
    %21 = vector.broadcast %cst_8 : f32 to vector<2x1xf32>
    %22 = arith.addf %18, %21 : vector<2x1xf32>
    %23 = math.rsqrt %22 : vector<2x1xf32>
    %24 = vector.broadcast %23 : vector<2x1xf32> to vector<2x64xf32>
    %25 = arith.mulf %20, %24 : vector<2x64xf32>
    %c0_9 = arith.constant 0 : index
    %c0_10 = arith.constant 0 : index
    %26 = vector.load %arg1[%c0_9, %c0_10] : memref<1x64xf32, #tpu.memory_space<vmem>>, vector<1x64xf32>
    %27 = vector.broadcast %26 : vector<1x64xf32> to vector<2x64xf32>
    %28 = arith.mulf %25, %27 : vector<2x64xf32>
    %c0_11 = arith.constant 0 : index
    %c0_12 = arith.constant 0 : index
    %29 = vector.load %arg2[%c0_11, %c0_12] : memref<1x64xf32, #tpu.memory_space<vmem>>, vector<1x64xf32>
    %30 = vector.broadcast %29 : vector<1x64xf32> to vector<2x64xf32>
    %31 = arith.addf %28, %30 : vector<2x64xf32>
    %c0_13 = arith.constant 0 : index
    %c0_14 = arith.constant 0 : index
    %32 = vector.load %arg3[%c0_13, %c0_14] : memref<64x32xf32, #tpu.memory_space<vmem>>, vector<64x32xf32>
    %cst_15 = arith.constant dense<0.000000e+00> : vector<2x32xf32>
    %33 = tpu.matmul %31, %32, %cst_15 {dimension_numbers = #tpu.dot_dimension_numbers<[1], [0], [0], [1], [0, 0, 1, 1], [], []>} : vector<2x64xf32>, vector<64x32xf32>, vector<2x32xf32> -> vector<2x32xf32>
    %c0_16 = arith.constant 0 : index
    %c0_17 = arith.constant 0 : index
    %34 = vector.load %arg4[%c0_16, %c0_17] : memref<1x32xf32, #tpu.memory_space<vmem>>, vector<1x32xf32>
    %35 = vector.broadcast %34 : vector<1x32xf32> to vector<2x32xf32>
    %36 = arith.addf %33, %35 : vector<2x32xf32>
    %37 = math.tanh %36 : vector<2x32xf32>
    %c0_18 = arith.constant 0 : index
    %c0_19 = arith.constant 0 : index
    %38 = vector.load %arg5[%c0_18, %c0_19] : memref<32x4xf32, #tpu.memory_space<vmem>>, vector<32x4xf32>
    %cst_20 = arith.constant dense<0.000000e+00> : vector<2x4xf32>
    %39 = tpu.matmul %37, %38, %cst_20 {dimension_numbers = #tpu.dot_dimension_numbers<[1], [0], [0], [1], [0, 0, 1, 1], [], []>} : vector<2x32xf32>, vector<32x4xf32>, vector<2x4xf32> -> vector<2x4xf32>
    %c0_21 = arith.constant 0 : index
    %c0_22 = arith.constant 0 : index
    %40 = vector.load %arg6[%c0_21, %c0_22] : memref<1x4xf32, #tpu.memory_space<vmem>>, vector<1x4xf32>
    %41 = vector.broadcast %40 : vector<1x4xf32> to vector<2x4xf32>
    %42 = arith.addf %39, %41 : vector<2x4xf32>
    %c0_23 = arith.constant 0 : index
    %c0_24 = arith.constant 0 : index
    %43 = vector.load %arg7[%c0_23, %c0_24] : memref<2x4xf32, #tpu.memory_space<vmem>>, vector<2x4xf32>
    tpu.vector_store %arg7[%c0_23, %c0_24], %42 {strides = array<i32>} : memref<2x4xf32, #tpu.memory_space<vmem>>, vector<2x4xf32>,
    return
  }
}

module attributes {stable_mosaic.version = 11 : i64} {
  func.func @_bilstm_layer_kernel(%arg0: i32, %arg1: memref<16x64xf32, #tpu.memory_space<vmem>>, %arg2: memref<1x64x128xf32, #tpu.memory_space<vmem>>, %arg3: memref<1x32x128xf32, #tpu.memory_space<vmem>>, %arg4: memref<1x1x128xf32, #tpu.memory_space<vmem>>, %arg5: memref<1x8x2x32xf32, #tpu.memory_space<vmem>>, %arg6: memref<1x2x32xf32, #tpu.memory_space<vmem>>, %arg7: memref<8x2x128xf32, #tpu.memory_space<vmem>>) attributes {dimension_semantics = [#tpu.dimension_semantics<parallel>], iteration_bounds = array<i64: 2>, scalar_prefetch = 0 : i64, scratch_operands = 1 : i64, tpu.core_type = #tpu.core_type<tc>, window_params = [{pipeline_mode = #tpu.pipeline_mode<synchronous>, transform_indices = @transform_0, window_bounds = array<i64: 16, 64>}, {transform_indices = @transform_1, window_bounds = array<i64: 1, 64, 128>}, {transform_indices = @transform_2, window_bounds = array<i64: 1, 32, 128>}, {transform_indices = @transform_3, window_bounds = array<i64: 1, 1, 128>}, {transform_indices = @transform_4, window_bounds = array<i64: 1, 8, 2, 32>}, {transform_indices = @transform_5, window_bounds = array<i64: 1, 2, 32>}]} {
    %c0 = arith.constant 0 : index
    %c0_0 = arith.constant 0 : index
    %0 = vector.load %arg1[%c0, %c0_0] : memref<16x64xf32, #tpu.memory_space<vmem>>, vector<16x64xf32>
    %c0_1 = arith.constant 0 : index
    %c0_2 = arith.constant 0 : index
    %c0_3 = arith.constant 0 : index
    %1 = vector.load %arg2[%c0_1, %c0_2, %c0_3] : memref<1x64x128xf32, #tpu.memory_space<vmem>>, vector<1x64x128xf32>
    %2 = vector.shape_cast %1 : vector<1x64x128xf32> to vector<64x128xf32>
    %cst = arith.constant dense<0.000000e+00> : vector<16x128xf32>
    %3 = tpu.matmul %0, %2, %cst {dimension_numbers = #tpu.dot_dimension_numbers<[1], [0], [0], [1], [0, 0, 1, 1], [], []>} : vector<16x64xf32>, vector<64x128xf32>, vector<16x128xf32> -> vector<16x128xf32>
    %c0_4 = arith.constant 0 : index
    %c0_5 = arith.constant 0 : index
    %c0_6 = arith.constant 0 : index
    %4 = vector.load %arg4[%c0_4, %c0_5, %c0_6] : memref<1x1x128xf32, #tpu.memory_space<vmem>>, vector<1x1x128xf32>
    %5 = vector.shape_cast %4 : vector<1x1x128xf32> to vector<1x128xf32>
    %6 = vector.broadcast %5 : vector<1x128xf32> to vector<16x128xf32>
    %7 = arith.addf %3, %6 : vector<16x128xf32>
    %8 = vector.extract_strided_slice %7 {offsets = [0, 0], sizes = [2, 128], strides = [1, 1]} : vector<16x128xf32> to vector<2x128xf32>
    %c0_7 = arith.constant 0 : index
    %c0_8 = arith.constant 0 : index
    %c0_9 = arith.constant 0 : index
    %9 = vector.load %arg7[%c0_7, %c0_8, %c0_9] : memref<8x2x128xf32, #tpu.memory_space<vmem>>, vector<1x2x128xf32>
    %10 = vector.shape_cast %9 : vector<1x2x128xf32> to vector<2x128xf32>
    %11 = vector.shape_cast %8 : vector<2x128xf32> to vector<1x2x128xf32>
    tpu.vector_store %arg7[%c0_7, %c0_8, %c0_9], %11 {strides = array<i32>} : memref<8x2x128xf32, #tpu.memory_space<vmem>>, vector<1x2x128xf32>,
    %12 = vector.extract_strided_slice %7 {offsets = [2, 0], sizes = [2, 128], strides = [1, 1]} : vector<16x128xf32> to vector<2x128xf32>
    %c1 = arith.constant 1 : index
    %c0_10 = arith.constant 0 : index
    %c0_11 = arith.constant 0 : index
    %13 = vector.load %arg7[%c1, %c0_10, %c0_11] : memref<8x2x128xf32, #tpu.memory_space<vmem>>, vector<1x2x128xf32>
    %14 = vector.shape_cast %13 : vector<1x2x128xf32> to vector<2x128xf32>
    %15 = vector.shape_cast %12 : vector<2x128xf32> to vector<1x2x128xf32>
    tpu.vector_store %arg7[%c1, %c0_10, %c0_11], %15 {strides = array<i32>} : memref<8x2x128xf32, #tpu.memory_space<vmem>>, vector<1x2x128xf32>,
    %16 = vector.extract_strided_slice %7 {offsets = [4, 0], sizes = [2, 128], strides = [1, 1]} : vector<16x128xf32> to vector<2x128xf32>
    %c2 = arith.constant 2 : index
    %c0_12 = arith.constant 0 : index
    %c0_13 = arith.constant 0 : index
    %17 = vector.load %arg7[%c2, %c0_12, %c0_13] : memref<8x2x128xf32, #tpu.memory_space<vmem>>, vector<1x2x128xf32>
    %18 = vector.shape_cast %17 : vector<1x2x128xf32> to vector<2x128xf32>
    %19 = vector.shape_cast %16 : vector<2x128xf32> to vector<1x2x128xf32>
    tpu.vector_store %arg7[%c2, %c0_12, %c0_13], %19 {strides = array<i32>} : memref<8x2x128xf32, #tpu.memory_space<vmem>>, vector<1x2x128xf32>,
    %20 = vector.extract_strided_slice %7 {offsets = [6, 0], sizes = [2, 128], strides = [1, 1]} : vector<16x128xf32> to vector<2x128xf32>
    %c3 = arith.constant 3 : index
    %c0_14 = arith.constant 0 : index
    %c0_15 = arith.constant 0 : index
    %21 = vector.load %arg7[%c3, %c0_14, %c0_15] : memref<8x2x128xf32, #tpu.memory_space<vmem>>, vector<1x2x128xf32>
    %22 = vector.shape_cast %21 : vector<1x2x128xf32> to vector<2x128xf32>
    %23 = vector.shape_cast %20 : vector<2x128xf32> to vector<1x2x128xf32>
    tpu.vector_store %arg7[%c3, %c0_14, %c0_15], %23 {strides = array<i32>} : memref<8x2x128xf32, #tpu.memory_space<vmem>>, vector<1x2x128xf32>,
    %24 = vector.extract_strided_slice %7 {offsets = [8, 0], sizes = [2, 128], strides = [1, 1]} : vector<16x128xf32> to vector<2x128xf32>
    %c4 = arith.constant 4 : index
    %c0_16 = arith.constant 0 : index
    %c0_17 = arith.constant 0 : index
    %25 = vector.load %arg7[%c4, %c0_16, %c0_17] : memref<8x2x128xf32, #tpu.memory_space<vmem>>, vector<1x2x128xf32>
    %26 = vector.shape_cast %25 : vector<1x2x128xf32> to vector<2x128xf32>
    %27 = vector.shape_cast %24 : vector<2x128xf32> to vector<1x2x128xf32>
    tpu.vector_store %arg7[%c4, %c0_16, %c0_17], %27 {strides = array<i32>} : memref<8x2x128xf32, #tpu.memory_space<vmem>>, vector<1x2x128xf32>,
    %28 = vector.extract_strided_slice %7 {offsets = [10, 0], sizes = [2, 128], strides = [1, 1]} : vector<16x128xf32> to vector<2x128xf32>
    %c5 = arith.constant 5 : index
    %c0_18 = arith.constant 0 : index
    %c0_19 = arith.constant 0 : index
    %29 = vector.load %arg7[%c5, %c0_18, %c0_19] : memref<8x2x128xf32, #tpu.memory_space<vmem>>, vector<1x2x128xf32>
    %30 = vector.shape_cast %29 : vector<1x2x128xf32> to vector<2x128xf32>
    %31 = vector.shape_cast %28 : vector<2x128xf32> to vector<1x2x128xf32>
    tpu.vector_store %arg7[%c5, %c0_18, %c0_19], %31 {strides = array<i32>} : memref<8x2x128xf32, #tpu.memory_space<vmem>>, vector<1x2x128xf32>,
    %32 = vector.extract_strided_slice %7 {offsets = [12, 0], sizes = [2, 128], strides = [1, 1]} : vector<16x128xf32> to vector<2x128xf32>
    %c6 = arith.constant 6 : index
    %c0_20 = arith.constant 0 : index
    %c0_21 = arith.constant 0 : index
    %33 = vector.load %arg7[%c6, %c0_20, %c0_21] : memref<8x2x128xf32, #tpu.memory_space<vmem>>, vector<1x2x128xf32>
    %34 = vector.shape_cast %33 : vector<1x2x128xf32> to vector<2x128xf32>
    %35 = vector.shape_cast %32 : vector<2x128xf32> to vector<1x2x128xf32>
    tpu.vector_store %arg7[%c6, %c0_20, %c0_21], %35 {strides = array<i32>} : memref<8x2x128xf32, #tpu.memory_space<vmem>>, vector<1x2x128xf32>,
    %36 = vector.extract_strided_slice %7 {offsets = [14, 0], sizes = [2, 128], strides = [1, 1]} : vector<16x128xf32> to vector<2x128xf32>
    %c7 = arith.constant 7 : index
    %c0_22 = arith.constant 0 : index
    %c0_23 = arith.constant 0 : index
    %37 = vector.load %arg7[%c7, %c0_22, %c0_23] : memref<8x2x128xf32, #tpu.memory_space<vmem>>, vector<1x2x128xf32>
    %38 = vector.shape_cast %37 : vector<1x2x128xf32> to vector<2x128xf32>
    %39 = vector.shape_cast %36 : vector<2x128xf32> to vector<1x2x128xf32>
    tpu.vector_store %arg7[%c7, %c0_22, %c0_23], %39 {strides = array<i32>} : memref<8x2x128xf32, #tpu.memory_space<vmem>>, vector<1x2x128xf32>,
    %c0_24 = arith.constant 0 : index
    %c0_25 = arith.constant 0 : index
    %c0_26 = arith.constant 0 : index
    %40 = vector.load %arg3[%c0_24, %c0_25, %c0_26] : memref<1x32x128xf32, #tpu.memory_space<vmem>>, vector<1x32x128xf32>
    %41 = vector.shape_cast %40 : vector<1x32x128xf32> to vector<32x128xf32>
    %c1_i32 = arith.constant 1 : i32
    %42 = arith.cmpi eq, %arg0, %c1_i32 : i32
    %cst_27 = arith.constant 0.000000e+00 : f32
    %43 = vector.broadcast %cst_27 : f32 to vector<2x32xf32>
    %cst_28 = arith.constant 0.000000e+00 : f32
    %44 = vector.broadcast %cst_28 : f32 to vector<2x32xf32>
    %c0_i32 = arith.constant 0 : i32
    %c7_i32 = arith.constant 7 : i32
    %45 = arith.subi %c7_i32, %c0_i32 : i32
    %46 = arith.select %42, %45, %c0_i32 : i32
    %47 = arith.index_cast %46 : i32 to index
    %c0_29 = arith.constant 0 : index
    %c0_30 = arith.constant 0 : index
    %48 = vector.load %arg7[%47, %c0_29, %c0_30] : memref<8x2x128xf32, #tpu.memory_space<vmem>>, vector<1x2x128xf32>
    %49 = vector.shape_cast %48 : vector<1x2x128xf32> to vector<2x128xf32>
    %cst_31 = arith.constant dense<0.000000e+00> : vector<2x128xf32>
    %50 = tpu.matmul %43, %41, %cst_31 {dimension_numbers = #tpu.dot_dimension_numbers<[1], [0], [0], [1], [0, 0, 1, 1], [], []>} : vector<2x32xf32>, vector<32x128xf32>, vector<2x128xf32> -> vector<2x128xf32>
    %51 = arith.addf %49, %50 : vector<2x128xf32>
    %52 = arith.negf %51 : vector<2x128xf32>
    %53 = math.exp %52 : vector<2x128xf32>
    %cst_32 = arith.constant 1.000000e+00 : f32
    %54 = vector.broadcast %cst_32 : f32 to vector<2x128xf32>
    %55 = arith.addf %54, %53 : vector<2x128xf32>
    %56 = arith.divf %54, %55 : vector<2x128xf32>
    %57 = math.tanh %51 : vector<2x128xf32>
    %58 = vector.extract_strided_slice %56 {offsets = [0, 0], sizes = [2, 32], strides = [1, 1]} : vector<2x128xf32> to vector<2x32xf32>
    %59 = vector.extract_strided_slice %56 {offsets = [0, 32], sizes = [2, 32], strides = [1, 1]} : vector<2x128xf32> to vector<2x32xf32>
    %60 = vector.extract_strided_slice %57 {offsets = [0, 64], sizes = [2, 32], strides = [1, 1]} : vector<2x128xf32> to vector<2x32xf32>
    %61 = vector.extract_strided_slice %56 {offsets = [0, 96], sizes = [2, 32], strides = [1, 1]} : vector<2x128xf32> to vector<2x32xf32>
    %62 = arith.mulf %59, %44 : vector<2x32xf32>
    %63 = arith.mulf %58, %60 : vector<2x32xf32>
    %64 = arith.addf %62, %63 : vector<2x32xf32>
    %65 = math.tanh %64 : vector<2x32xf32>
    %66 = arith.mulf %61, %65 : vector<2x32xf32>
    %c0_33 = arith.constant 0 : index
    %67 = arith.index_cast %46 : i32 to index
    %c0_34 = arith.constant 0 : index
    %c0_35 = arith.constant 0 : index
    %68 = vector.load %arg5[%c0_33, %67, %c0_34, %c0_35] : memref<1x8x2x32xf32, #tpu.memory_space<vmem>>, vector<1x1x2x32xf32>
    %69 = vector.shape_cast %68 : vector<1x1x2x32xf32> to vector<2x32xf32>
    %70 = vector.shape_cast %66 : vector<2x32xf32> to vector<1x1x2x32xf32>
    tpu.vector_store %arg5[%c0_33, %67, %c0_34, %c0_35], %70 {strides = array<i32>} : memref<1x8x2x32xf32, #tpu.memory_space<vmem>>, vector<1x1x2x32xf32>,
    %c1_i32_36 = arith.constant 1 : i32
    %c7_i32_37 = arith.constant 7 : i32
    %71 = arith.subi %c7_i32_37, %c1_i32_36 : i32
    %72 = arith.select %42, %71, %c1_i32_36 : i32
    %73 = arith.index_cast %72 : i32 to index
    %c0_38 = arith.constant 0 : index
    %c0_39 = arith.constant 0 : index
    %74 = vector.load %arg7[%73, %c0_38, %c0_39] : memref<8x2x128xf32, #tpu.memory_space<vmem>>, vector<1x2x128xf32>
    %75 = vector.shape_cast %74 : vector<1x2x128xf32> to vector<2x128xf32>
    %cst_40 = arith.constant dense<0.000000e+00> : vector<2x128xf32>
    %76 = tpu.matmul %66, %41, %cst_40 {dimension_numbers = #tpu.dot_dimension_numbers<[1], [0], [0], [1], [0, 0, 1, 1], [], []>} : vector<2x32xf32>, vector<32x128xf32>, vector<2x128xf32> -> vector<2x128xf32>
    %77 = arith.addf %75, %76 : vector<2x128xf32>
    %78 = arith.negf %77 : vector<2x128xf32>
    %79 = math.exp %78 : vector<2x128xf32>
    %cst_41 = arith.constant 1.000000e+00 : f32
    %80 = vector.broadcast %cst_41 : f32 to vector<2x128xf32>
    %81 = arith.addf %80, %79 : vector<2x128xf32>
    %82 = arith.divf %80, %81 : vector<2x128xf32>
    %83 = math.tanh %77 : vector<2x128xf32>
    %84 = vector.extract_strided_slice %82 {offsets = [0, 0], sizes = [2, 32], strides = [1, 1]} : vector<2x128xf32> to vector<2x32xf32>
    %85 = vector.extract_strided_slice %82 {offsets = [0, 32], sizes = [2, 32], strides = [1, 1]} : vector<2x128xf32> to vector<2x32xf32>
    %86 = vector.extract_strided_slice %83 {offsets = [0, 64], sizes = [2, 32], strides = [1, 1]} : vector<2x128xf32> to vector<2x32xf32>
    %87 = vector.extract_strided_slice %82 {offsets = [0, 96], sizes = [2, 32], strides = [1, 1]} : vector<2x128xf32> to vector<2x32xf32>
    %88 = arith.mulf %85, %64 : vector<2x32xf32>
    %89 = arith.mulf %84, %86 : vector<2x32xf32>
    %90 = arith.addf %88, %89 : vector<2x32xf32>
    %91 = math.tanh %90 : vector<2x32xf32>
    %92 = arith.mulf %87, %91 : vector<2x32xf32>
    %c0_42 = arith.constant 0 : index
    %93 = arith.index_cast %72 : i32 to index
    %c0_43 = arith.constant 0 : index
    %c0_44 = arith.constant 0 : index
    %94 = vector.load %arg5[%c0_42, %93, %c0_43, %c0_44] : memref<1x8x2x32xf32, #tpu.memory_space<vmem>>, vector<1x1x2x32xf32>
    %95 = vector.shape_cast %94 : vector<1x1x2x32xf32> to vector<2x32xf32>
    %96 = vector.shape_cast %92 : vector<2x32xf32> to vector<1x1x2x32xf32>
    tpu.vector_store %arg5[%c0_42, %93, %c0_43, %c0_44], %96 {strides = array<i32>} : memref<1x8x2x32xf32, #tpu.memory_space<vmem>>, vector<1x1x2x32xf32>,
    %c2_i32 = arith.constant 2 : i32
    %c7_i32_45 = arith.constant 7 : i32
    %97 = arith.subi %c7_i32_45, %c2_i32 : i32
    %98 = arith.select %42, %97, %c2_i32 : i32
    %99 = arith.index_cast %98 : i32 to index
    %c0_46 = arith.constant 0 : index
    %c0_47 = arith.constant 0 : index
    %100 = vector.load %arg7[%99, %c0_46, %c0_47] : memref<8x2x128xf32, #tpu.memory_space<vmem>>, vector<1x2x128xf32>
    %101 = vector.shape_cast %100 : vector<1x2x128xf32> to vector<2x128xf32>
    %cst_48 = arith.constant dense<0.000000e+00> : vector<2x128xf32>
    %102 = tpu.matmul %92, %41, %cst_48 {dimension_numbers = #tpu.dot_dimension_numbers<[1], [0], [0], [1], [0, 0, 1, 1], [], []>} : vector<2x32xf32>, vector<32x128xf32>, vector<2x128xf32> -> vector<2x128xf32>
    %103 = arith.addf %101, %102 : vector<2x128xf32>
    %104 = arith.negf %103 : vector<2x128xf32>
    %105 = math.exp %104 : vector<2x128xf32>
    %cst_49 = arith.constant 1.000000e+00 : f32
    %106 = vector.broadcast %cst_49 : f32 to vector<2x128xf32>
    %107 = arith.addf %106, %105 : vector<2x128xf32>
    %108 = arith.divf %106, %107 : vector<2x128xf32>
    %109 = math.tanh %103 : vector<2x128xf32>
    %110 = vector.extract_strided_slice %108 {offsets = [0, 0], sizes = [2, 32], strides = [1, 1]} : vector<2x128xf32> to vector<2x32xf32>
    %111 = vector.extract_strided_slice %108 {offsets = [0, 32], sizes = [2, 32], strides = [1, 1]} : vector<2x128xf32> to vector<2x32xf32>
    %112 = vector.extract_strided_slice %109 {offsets = [0, 64], sizes = [2, 32], strides = [1, 1]} : vector<2x128xf32> to vector<2x32xf32>
    %113 = vector.extract_strided_slice %108 {offsets = [0, 96], sizes = [2, 32], strides = [1, 1]} : vector<2x128xf32> to vector<2x32xf32>
    %114 = arith.mulf %111, %90 : vector<2x32xf32>
    %115 = arith.mulf %110, %112 : vector<2x32xf32>
    %116 = arith.addf %114, %115 : vector<2x32xf32>
    %117 = math.tanh %116 : vector<2x32xf32>
    %118 = arith.mulf %113, %117 : vector<2x32xf32>
    %c0_50 = arith.constant 0 : index
    %119 = arith.index_cast %98 : i32 to index
    %c0_51 = arith.constant 0 : index
    %c0_52 = arith.constant 0 : index
    %120 = vector.load %arg5[%c0_50, %119, %c0_51, %c0_52] : memref<1x8x2x32xf32, #tpu.memory_space<vmem>>, vector<1x1x2x32xf32>
    %121 = vector.shape_cast %120 : vector<1x1x2x32xf32> to vector<2x32xf32>
    %122 = vector.shape_cast %118 : vector<2x32xf32> to vector<1x1x2x32xf32>
    tpu.vector_store %arg5[%c0_50, %119, %c0_51, %c0_52], %122 {strides = array<i32>} : memref<1x8x2x32xf32, #tpu.memory_space<vmem>>, vector<1x1x2x32xf32>,
    %c3_i32 = arith.constant 3 : i32
    %c7_i32_53 = arith.constant 7 : i32
    %123 = arith.subi %c7_i32_53, %c3_i32 : i32
    %124 = arith.select %42, %123, %c3_i32 : i32
    %125 = arith.index_cast %124 : i32 to index
    %c0_54 = arith.constant 0 : index
    %c0_55 = arith.constant 0 : index
    %126 = vector.load %arg7[%125, %c0_54, %c0_55] : memref<8x2x128xf32, #tpu.memory_space<vmem>>, vector<1x2x128xf32>
    %127 = vector.shape_cast %126 : vector<1x2x128xf32> to vector<2x128xf32>
    %cst_56 = arith.constant dense<0.000000e+00> : vector<2x128xf32>
    %128 = tpu.matmul %118, %41, %cst_56 {dimension_numbers = #tpu.dot_dimension_numbers<[1], [0], [0], [1], [0, 0, 1, 1], [], []>} : vector<2x32xf32>, vector<32x128xf32>, vector<2x128xf32> -> vector<2x128xf32>
    %129 = arith.addf %127, %128 : vector<2x128xf32>
    %130 = arith.negf %129 : vector<2x128xf32>
    %131 = math.exp %130 : vector<2x128xf32>
    %cst_57 = arith.constant 1.000000e+00 : f32
    %132 = vector.broadcast %cst_57 : f32 to vector<2x128xf32>
    %133 = arith.addf %132, %131 : vector<2x128xf32>
    %134 = arith.divf %132, %133 : vector<2x128xf32>
    %135 = math.tanh %129 : vector<2x128xf32>
    %136 = vector.extract_strided_slice %134 {offsets = [0, 0], sizes = [2, 32], strides = [1, 1]} : vector<2x128xf32> to vector<2x32xf32>
    %137 = vector.extract_strided_slice %134 {offsets = [0, 32], sizes = [2, 32], strides = [1, 1]} : vector<2x128xf32> to vector<2x32xf32>
    %138 = vector.extract_strided_slice %135 {offsets = [0, 64], sizes = [2, 32], strides = [1, 1]} : vector<2x128xf32> to vector<2x32xf32>
    %139 = vector.extract_strided_slice %134 {offsets = [0, 96], sizes = [2, 32], strides = [1, 1]} : vector<2x128xf32> to vector<2x32xf32>
    %140 = arith.mulf %137, %116 : vector<2x32xf32>
    %141 = arith.mulf %136, %138 : vector<2x32xf32>
    %142 = arith.addf %140, %141 : vector<2x32xf32>
    %143 = math.tanh %142 : vector<2x32xf32>
    %144 = arith.mulf %139, %143 : vector<2x32xf32>
    %c0_58 = arith.constant 0 : index
    %145 = arith.index_cast %124 : i32 to index
    %c0_59 = arith.constant 0 : index
    %c0_60 = arith.constant 0 : index
    %146 = vector.load %arg5[%c0_58, %145, %c0_59, %c0_60] : memref<1x8x2x32xf32, #tpu.memory_space<vmem>>, vector<1x1x2x32xf32>
    %147 = vector.shape_cast %146 : vector<1x1x2x32xf32> to vector<2x32xf32>
    %148 = vector.shape_cast %144 : vector<2x32xf32> to vector<1x1x2x32xf32>
    tpu.vector_store %arg5[%c0_58, %145, %c0_59, %c0_60], %148 {strides = array<i32>} : memref<1x8x2x32xf32, #tpu.memory_space<vmem>>, vector<1x1x2x32xf32>,
    %c4_i32 = arith.constant 4 : i32
    %c7_i32_61 = arith.constant 7 : i32
    %149 = arith.subi %c7_i32_61, %c4_i32 : i32
    %150 = arith.select %42, %149, %c4_i32 : i32
    %151 = arith.index_cast %150 : i32 to index
    %c0_62 = arith.constant 0 : index
    %c0_63 = arith.constant 0 : index
    %152 = vector.load %arg7[%151, %c0_62, %c0_63] : memref<8x2x128xf32, #tpu.memory_space<vmem>>, vector<1x2x128xf32>
    %153 = vector.shape_cast %152 : vector<1x2x128xf32> to vector<2x128xf32>
    %cst_64 = arith.constant dense<0.000000e+00> : vector<2x128xf32>
    %154 = tpu.matmul %144, %41, %cst_64 {dimension_numbers = #tpu.dot_dimension_numbers<[1], [0], [0], [1], [0, 0, 1, 1], [], []>} : vector<2x32xf32>, vector<32x128xf32>, vector<2x128xf32> -> vector<2x128xf32>
    %155 = arith.addf %153, %154 : vector<2x128xf32>
    %156 = arith.negf %155 : vector<2x128xf32>
    %157 = math.exp %156 : vector<2x128xf32>
    %cst_65 = arith.constant 1.000000e+00 : f32
    %158 = vector.broadcast %cst_65 : f32 to vector<2x128xf32>
    %159 = arith.addf %158, %157 : vector<2x128xf32>
    %160 = arith.divf %158, %159 : vector<2x128xf32>
    %161 = math.tanh %155 : vector<2x128xf32>
    %162 = vector.extract_strided_slice %160 {offsets = [0, 0], sizes = [2, 32], strides = [1, 1]} : vector<2x128xf32> to vector<2x32xf32>
    %163 = vector.extract_strided_slice %160 {offsets = [0, 32], sizes = [2, 32], strides = [1, 1]} : vector<2x128xf32> to vector<2x32xf32>
    %164 = vector.extract_strided_slice %161 {offsets = [0, 64], sizes = [2, 32], strides = [1, 1]} : vector<2x128xf32> to vector<2x32xf32>
    %165 = vector.extract_strided_slice %160 {offsets = [0, 96], sizes = [2, 32], strides = [1, 1]} : vector<2x128xf32> to vector<2x32xf32>
    %166 = arith.mulf %163, %142 : vector<2x32xf32>
    %167 = arith.mulf %162, %164 : vector<2x32xf32>
    %168 = arith.addf %166, %167 : vector<2x32xf32>
    %169 = math.tanh %168 : vector<2x32xf32>
    %170 = arith.mulf %165, %169 : vector<2x32xf32>
    %c0_66 = arith.constant 0 : index
    %171 = arith.index_cast %150 : i32 to index
    %c0_67 = arith.constant 0 : index
    %c0_68 = arith.constant 0 : index
    %172 = vector.load %arg5[%c0_66, %171, %c0_67, %c0_68] : memref<1x8x2x32xf32, #tpu.memory_space<vmem>>, vector<1x1x2x32xf32>
    %173 = vector.shape_cast %172 : vector<1x1x2x32xf32> to vector<2x32xf32>
    %174 = vector.shape_cast %170 : vector<2x32xf32> to vector<1x1x2x32xf32>
    tpu.vector_store %arg5[%c0_66, %171, %c0_67, %c0_68], %174 {strides = array<i32>} : memref<1x8x2x32xf32, #tpu.memory_space<vmem>>, vector<1x1x2x32xf32>,
    %c5_i32 = arith.constant 5 : i32
    %c7_i32_69 = arith.constant 7 : i32
    %175 = arith.subi %c7_i32_69, %c5_i32 : i32
    %176 = arith.select %42, %175, %c5_i32 : i32
    %177 = arith.index_cast %176 : i32 to index
    %c0_70 = arith.constant 0 : index
    %c0_71 = arith.constant 0 : index
    %178 = vector.load %arg7[%177, %c0_70, %c0_71] : memref<8x2x128xf32, #tpu.memory_space<vmem>>, vector<1x2x128xf32>
    %179 = vector.shape_cast %178 : vector<1x2x128xf32> to vector<2x128xf32>
    %cst_72 = arith.constant dense<0.000000e+00> : vector<2x128xf32>
    %180 = tpu.matmul %170, %41, %cst_72 {dimension_numbers = #tpu.dot_dimension_numbers<[1], [0], [0], [1], [0, 0, 1, 1], [], []>} : vector<2x32xf32>, vector<32x128xf32>, vector<2x128xf32> -> vector<2x128xf32>
    %181 = arith.addf %179, %180 : vector<2x128xf32>
    %182 = arith.negf %181 : vector<2x128xf32>
    %183 = math.exp %182 : vector<2x128xf32>
    %cst_73 = arith.constant 1.000000e+00 : f32
    %184 = vector.broadcast %cst_73 : f32 to vector<2x128xf32>
    %185 = arith.addf %184, %183 : vector<2x128xf32>
    %186 = arith.divf %184, %185 : vector<2x128xf32>
    %187 = math.tanh %181 : vector<2x128xf32>
    %188 = vector.extract_strided_slice %186 {offsets = [0, 0], sizes = [2, 32], strides = [1, 1]} : vector<2x128xf32> to vector<2x32xf32>
    %189 = vector.extract_strided_slice %186 {offsets = [0, 32], sizes = [2, 32], strides = [1, 1]} : vector<2x128xf32> to vector<2x32xf32>
    %190 = vector.extract_strided_slice %187 {offsets = [0, 64], sizes = [2, 32], strides = [1, 1]} : vector<2x128xf32> to vector<2x32xf32>
    %191 = vector.extract_strided_slice %186 {offsets = [0, 96], sizes = [2, 32], strides = [1, 1]} : vector<2x128xf32> to vector<2x32xf32>
    %192 = arith.mulf %189, %168 : vector<2x32xf32>
    %193 = arith.mulf %188, %190 : vector<2x32xf32>
    %194 = arith.addf %192, %193 : vector<2x32xf32>
    %195 = math.tanh %194 : vector<2x32xf32>
    %196 = arith.mulf %191, %195 : vector<2x32xf32>
    %c0_74 = arith.constant 0 : index
    %197 = arith.index_cast %176 : i32 to index
    %c0_75 = arith.constant 0 : index
    %c0_76 = arith.constant 0 : index
    %198 = vector.load %arg5[%c0_74, %197, %c0_75, %c0_76] : memref<1x8x2x32xf32, #tpu.memory_space<vmem>>, vector<1x1x2x32xf32>
    %199 = vector.shape_cast %198 : vector<1x1x2x32xf32> to vector<2x32xf32>
    %200 = vector.shape_cast %196 : vector<2x32xf32> to vector<1x1x2x32xf32>
    tpu.vector_store %arg5[%c0_74, %197, %c0_75, %c0_76], %200 {strides = array<i32>} : memref<1x8x2x32xf32, #tpu.memory_space<vmem>>, vector<1x1x2x32xf32>,
    %c6_i32 = arith.constant 6 : i32
    %c7_i32_77 = arith.constant 7 : i32
    %201 = arith.subi %c7_i32_77, %c6_i32 : i32
    %202 = arith.select %42, %201, %c6_i32 : i32
    %203 = arith.index_cast %202 : i32 to index
    %c0_78 = arith.constant 0 : index
    %c0_79 = arith.constant 0 : index
    %204 = vector.load %arg7[%203, %c0_78, %c0_79] : memref<8x2x128xf32, #tpu.memory_space<vmem>>, vector<1x2x128xf32>
    %205 = vector.shape_cast %204 : vector<1x2x128xf32> to vector<2x128xf32>
    %cst_80 = arith.constant dense<0.000000e+00> : vector<2x128xf32>
    %206 = tpu.matmul %196, %41, %cst_80 {dimension_numbers = #tpu.dot_dimension_numbers<[1], [0], [0], [1], [0, 0, 1, 1], [], []>} : vector<2x32xf32>, vector<32x128xf32>, vector<2x128xf32> -> vector<2x128xf32>
    %207 = arith.addf %205, %206 : vector<2x128xf32>
    %208 = arith.negf %207 : vector<2x128xf32>
    %209 = math.exp %208 : vector<2x128xf32>
    %cst_81 = arith.constant 1.000000e+00 : f32
    %210 = vector.broadcast %cst_81 : f32 to vector<2x128xf32>
    %211 = arith.addf %210, %209 : vector<2x128xf32>
    %212 = arith.divf %210, %211 : vector<2x128xf32>
    %213 = math.tanh %207 : vector<2x128xf32>
    %214 = vector.extract_strided_slice %212 {offsets = [0, 0], sizes = [2, 32], strides = [1, 1]} : vector<2x128xf32> to vector<2x32xf32>
    %215 = vector.extract_strided_slice %212 {offsets = [0, 32], sizes = [2, 32], strides = [1, 1]} : vector<2x128xf32> to vector<2x32xf32>
    %216 = vector.extract_strided_slice %213 {offsets = [0, 64], sizes = [2, 32], strides = [1, 1]} : vector<2x128xf32> to vector<2x32xf32>
    %217 = vector.extract_strided_slice %212 {offsets = [0, 96], sizes = [2, 32], strides = [1, 1]} : vector<2x128xf32> to vector<2x32xf32>
    %218 = arith.mulf %215, %194 : vector<2x32xf32>
    %219 = arith.mulf %214, %216 : vector<2x32xf32>
    %220 = arith.addf %218, %219 : vector<2x32xf32>
    %221 = math.tanh %220 : vector<2x32xf32>
    %222 = arith.mulf %217, %221 : vector<2x32xf32>
    %c0_82 = arith.constant 0 : index
    %223 = arith.index_cast %202 : i32 to index
    %c0_83 = arith.constant 0 : index
    %c0_84 = arith.constant 0 : index
    %224 = vector.load %arg5[%c0_82, %223, %c0_83, %c0_84] : memref<1x8x2x32xf32, #tpu.memory_space<vmem>>, vector<1x1x2x32xf32>
    %225 = vector.shape_cast %224 : vector<1x1x2x32xf32> to vector<2x32xf32>
    %226 = vector.shape_cast %222 : vector<2x32xf32> to vector<1x1x2x32xf32>
    tpu.vector_store %arg5[%c0_82, %223, %c0_83, %c0_84], %226 {strides = array<i32>} : memref<1x8x2x32xf32, #tpu.memory_space<vmem>>, vector<1x1x2x32xf32>,
    %c7_i32_85 = arith.constant 7 : i32
    %c7_i32_86 = arith.constant 7 : i32
    %227 = arith.subi %c7_i32_86, %c7_i32_85 : i32
    %228 = arith.select %42, %227, %c7_i32_85 : i32
    %229 = arith.index_cast %228 : i32 to index
    %c0_87 = arith.constant 0 : index
    %c0_88 = arith.constant 0 : index
    %230 = vector.load %arg7[%229, %c0_87, %c0_88] : memref<8x2x128xf32, #tpu.memory_space<vmem>>, vector<1x2x128xf32>
    %231 = vector.shape_cast %230 : vector<1x2x128xf32> to vector<2x128xf32>
    %cst_89 = arith.constant dense<0.000000e+00> : vector<2x128xf32>
    %232 = tpu.matmul %222, %41, %cst_89 {dimension_numbers = #tpu.dot_dimension_numbers<[1], [0], [0], [1], [0, 0, 1, 1], [], []>} : vector<2x32xf32>, vector<32x128xf32>, vector<2x128xf32> -> vector<2x128xf32>
    %233 = arith.addf %231, %232 : vector<2x128xf32>
    %234 = arith.negf %233 : vector<2x128xf32>
    %235 = math.exp %234 : vector<2x128xf32>
    %cst_90 = arith.constant 1.000000e+00 : f32
    %236 = vector.broadcast %cst_90 : f32 to vector<2x128xf32>
    %237 = arith.addf %236, %235 : vector<2x128xf32>
    %238 = arith.divf %236, %237 : vector<2x128xf32>
    %239 = math.tanh %233 : vector<2x128xf32>
    %240 = vector.extract_strided_slice %238 {offsets = [0, 0], sizes = [2, 32], strides = [1, 1]} : vector<2x128xf32> to vector<2x32xf32>
    %241 = vector.extract_strided_slice %238 {offsets = [0, 32], sizes = [2, 32], strides = [1, 1]} : vector<2x128xf32> to vector<2x32xf32>
    %242 = vector.extract_strided_slice %239 {offsets = [0, 64], sizes = [2, 32], strides = [1, 1]} : vector<2x128xf32> to vector<2x32xf32>
    %243 = vector.extract_strided_slice %238 {offsets = [0, 96], sizes = [2, 32], strides = [1, 1]} : vector<2x128xf32> to vector<2x32xf32>
    %244 = arith.mulf %241, %220 : vector<2x32xf32>
    %245 = arith.mulf %240, %242 : vector<2x32xf32>
    %246 = arith.addf %244, %245 : vector<2x32xf32>
    %247 = math.tanh %246 : vector<2x32xf32>
    %248 = arith.mulf %243, %247 : vector<2x32xf32>
    %c0_91 = arith.constant 0 : index
    %249 = arith.index_cast %228 : i32 to index
    %c0_92 = arith.constant 0 : index
    %c0_93 = arith.constant 0 : index
    %250 = vector.load %arg5[%c0_91, %249, %c0_92, %c0_93] : memref<1x8x2x32xf32, #tpu.memory_space<vmem>>, vector<1x1x2x32xf32>
    %251 = vector.shape_cast %250 : vector<1x1x2x32xf32> to vector<2x32xf32>
    %252 = vector.shape_cast %248 : vector<2x32xf32> to vector<1x1x2x32xf32>
    tpu.vector_store %arg5[%c0_91, %249, %c0_92, %c0_93], %252 {strides = array<i32>} : memref<1x8x2x32xf32, #tpu.memory_space<vmem>>, vector<1x1x2x32xf32>,
    %c8_i32 = arith.constant 8 : i32
    %c0_94 = arith.constant 0 : index
    %c0_95 = arith.constant 0 : index
    %c0_96 = arith.constant 0 : index
    %253 = vector.load %arg6[%c0_94, %c0_95, %c0_96] : memref<1x2x32xf32, #tpu.memory_space<vmem>>, vector<1x2x32xf32>
    %254 = vector.shape_cast %253 : vector<1x2x32xf32> to vector<2x32xf32>
    %255 = vector.shape_cast %248 : vector<2x32xf32> to vector<1x2x32xf32>
    tpu.vector_store %arg6[%c0_94, %c0_95, %c0_96], %255 {strides = array<i32>} : memref<1x2x32xf32, #tpu.memory_space<vmem>>, vector<1x2x32xf32>,
    return
  }
  func.func @transform_0(%arg0: i32) -> (i32, i32) {
    %c0_i32 = arith.constant 0 : i32
    %c0_i32_0 = arith.constant 0 : i32
    %c0_i32_1 = arith.constant 0 : i32
    return %c0_i32, %c0_i32_0 : i32, i32
  }
  func.func @transform_1(%arg0: i32) -> (i32, i32, i32) {
    %c0_i32 = arith.constant 0 : i32
    %c0_i32_0 = arith.constant 0 : i32
    %c0_i32_1 = arith.constant 0 : i32
    return %arg0, %c0_i32, %c0_i32_0 : i32, i32, i32
  }
  func.func @transform_2(%arg0: i32) -> (i32, i32, i32) {
    %c0_i32 = arith.constant 0 : i32
    %c0_i32_0 = arith.constant 0 : i32
    %c0_i32_1 = arith.constant 0 : i32
    return %arg0, %c0_i32, %c0_i32_0 : i32, i32, i32
  }
  func.func @transform_3(%arg0: i32) -> (i32, i32, i32) {
    %c0_i32 = arith.constant 0 : i32
    %c0_i32_0 = arith.constant 0 : i32
    %c0_i32_1 = arith.constant 0 : i32
    return %arg0, %c0_i32, %c0_i32_0 : i32, i32, i32
  }
  func.func @transform_4(%arg0: i32) -> (i32, i32, i32, i32) {
    %c0_i32 = arith.constant 0 : i32
    %c0_i32_0 = arith.constant 0 : i32
    %c0_i32_1 = arith.constant 0 : i32
    %c0_i32_2 = arith.constant 0 : i32
    return %arg0, %c0_i32, %c0_i32_0, %c0_i32_1 : i32, i32, i32, i32
  }
  func.func @transform_5(%arg0: i32) -> (i32, i32, i32) {
    %c0_i32 = arith.constant 0 : i32
    %c0_i32_0 = arith.constant 0 : i32
    %c0_i32_1 = arith.constant 0 : i32
    return %arg0, %c0_i32, %c0_i32_0 : i32, i32, i32
  }
}

module attributes {stable_mosaic.version = 11 : i64} {
  func.func @_bilstm_layer_kernel(%arg0: i32, %arg1: memref<16x16xf32, #tpu.memory_space<vmem>>, %arg2: memref<1x16x128xf32, #tpu.memory_space<vmem>>, %arg3: memref<1x32x128xf32, #tpu.memory_space<vmem>>, %arg4: memref<1x1x128xf32, #tpu.memory_space<vmem>>, %arg5: memref<1x8x2x32xf32, #tpu.memory_space<vmem>>, %arg6: memref<1x2x32xf32, #tpu.memory_space<vmem>>, %arg7: memref<8x2x128xf32, #tpu.memory_space<vmem>>) attributes {dimension_semantics = [#tpu.dimension_semantics<parallel>], iteration_bounds = array<i64: 2>, scalar_prefetch = 0 : i64, scratch_operands = 1 : i64, tpu.core_type = #tpu.core_type<tc>, window_params = [{pipeline_mode = #tpu.pipeline_mode<synchronous>, transform_indices = @transform_0, window_bounds = array<i64: 16, 16>}, {transform_indices = @transform_1, window_bounds = array<i64: 1, 16, 128>}, {transform_indices = @transform_2, window_bounds = array<i64: 1, 32, 128>}, {transform_indices = @transform_3, window_bounds = array<i64: 1, 1, 128>}, {transform_indices = @transform_4, window_bounds = array<i64: 1, 8, 2, 32>}, {transform_indices = @transform_5, window_bounds = array<i64: 1, 2, 32>}]} {
    %c0 = arith.constant 0 : index
    %c0_0 = arith.constant 0 : index
    %0 = vector.load %arg1[%c0, %c0_0] : memref<16x16xf32, #tpu.memory_space<vmem>>, vector<16x16xf32>
    %c0_1 = arith.constant 0 : index
    %c0_2 = arith.constant 0 : index
    %c0_3 = arith.constant 0 : index
    %1 = vector.load %arg2[%c0_1, %c0_2, %c0_3] : memref<1x16x128xf32, #tpu.memory_space<vmem>>, vector<1x16x128xf32>
    %2 = vector.shape_cast %1 : vector<1x16x128xf32> to vector<16x128xf32>
    %cst = arith.constant dense<0.000000e+00> : vector<16x128xf32>
    %3 = tpu.matmul %0, %2, %cst {dimension_numbers = #tpu.dot_dimension_numbers<[1], [0], [0], [1], [0, 0, 1, 1], [], []>} : vector<16x16xf32>, vector<16x128xf32>, vector<16x128xf32> -> vector<16x128xf32>
    %c0_4 = arith.constant 0 : index
    %c0_5 = arith.constant 0 : index
    %c0_6 = arith.constant 0 : index
    %4 = vector.load %arg4[%c0_4, %c0_5, %c0_6] : memref<1x1x128xf32, #tpu.memory_space<vmem>>, vector<1x1x128xf32>
    %5 = vector.shape_cast %4 : vector<1x1x128xf32> to vector<1x128xf32>
    %6 = vector.broadcast %5 : vector<1x128xf32> to vector<16x128xf32>
    %7 = arith.addf %3, %6 : vector<16x128xf32>
    %8 = vector.extract_strided_slice %7 {offsets = [0, 0], sizes = [2, 128], strides = [1, 1]} : vector<16x128xf32> to vector<2x128xf32>
    %c0_7 = arith.constant 0 : index
    %c0_8 = arith.constant 0 : index
    %c0_9 = arith.constant 0 : index
    %9 = vector.load %arg7[%c0_7, %c0_8, %c0_9] : memref<8x2x128xf32, #tpu.memory_space<vmem>>, vector<1x2x128xf32>
    %10 = vector.shape_cast %9 : vector<1x2x128xf32> to vector<2x128xf32>
    %11 = vector.shape_cast %8 : vector<2x128xf32> to vector<1x2x128xf32>
    tpu.vector_store %arg7[%c0_7, %c0_8, %c0_9], %11 {strides = array<i32>} : memref<8x2x128xf32, #tpu.memory_space<vmem>>, vector<1x2x128xf32>,
    %12 = vector.extract_strided_slice %7 {offsets = [2, 0], sizes = [2, 128], strides = [1, 1]} : vector<16x128xf32> to vector<2x128xf32>
    %c1 = arith.constant 1 : index
    %c0_10 = arith.constant 0 : index
    %c0_11 = arith.constant 0 : index
    %13 = vector.load %arg7[%c1, %c0_10, %c0_11] : memref<8x2x128xf32, #tpu.memory_space<vmem>>, vector<1x2x128xf32>
    %14 = vector.shape_cast %13 : vector<1x2x128xf32> to vector<2x128xf32>
    %15 = vector.shape_cast %12 : vector<2x128xf32> to vector<1x2x128xf32>
    tpu.vector_store %arg7[%c1, %c0_10, %c0_11], %15 {strides = array<i32>} : memref<8x2x128xf32, #tpu.memory_space<vmem>>, vector<1x2x128xf32>,
    %16 = vector.extract_strided_slice %7 {offsets = [4, 0], sizes = [2, 128], strides = [1, 1]} : vector<16x128xf32> to vector<2x128xf32>
    %c2 = arith.constant 2 : index
    %c0_12 = arith.constant 0 : index
    %c0_13 = arith.constant 0 : index
    %17 = vector.load %arg7[%c2, %c0_12, %c0_13] : memref<8x2x128xf32, #tpu.memory_space<vmem>>, vector<1x2x128xf32>
    %18 = vector.shape_cast %17 : vector<1x2x128xf32> to vector<2x128xf32>
    %19 = vector.shape_cast %16 : vector<2x128xf32> to vector<1x2x128xf32>
    tpu.vector_store %arg7[%c2, %c0_12, %c0_13], %19 {strides = array<i32>} : memref<8x2x128xf32, #tpu.memory_space<vmem>>, vector<1x2x128xf32>,
    %20 = vector.extract_strided_slice %7 {offsets = [6, 0], sizes = [2, 128], strides = [1, 1]} : vector<16x128xf32> to vector<2x128xf32>
    %c3 = arith.constant 3 : index
    %c0_14 = arith.constant 0 : index
    %c0_15 = arith.constant 0 : index
    %21 = vector.load %arg7[%c3, %c0_14, %c0_15] : memref<8x2x128xf32, #tpu.memory_space<vmem>>, vector<1x2x128xf32>
    %22 = vector.shape_cast %21 : vector<1x2x128xf32> to vector<2x128xf32>
    %23 = vector.shape_cast %20 : vector<2x128xf32> to vector<1x2x128xf32>
    tpu.vector_store %arg7[%c3, %c0_14, %c0_15], %23 {strides = array<i32>} : memref<8x2x128xf32, #tpu.memory_space<vmem>>, vector<1x2x128xf32>,
    %24 = vector.extract_strided_slice %7 {offsets = [8, 0], sizes = [2, 128], strides = [1, 1]} : vector<16x128xf32> to vector<2x128xf32>
    %c4 = arith.constant 4 : index
    %c0_16 = arith.constant 0 : index
    %c0_17 = arith.constant 0 : index
    %25 = vector.load %arg7[%c4, %c0_16, %c0_17] : memref<8x2x128xf32, #tpu.memory_space<vmem>>, vector<1x2x128xf32>
    %26 = vector.shape_cast %25 : vector<1x2x128xf32> to vector<2x128xf32>
    %27 = vector.shape_cast %24 : vector<2x128xf32> to vector<1x2x128xf32>
    tpu.vector_store %arg7[%c4, %c0_16, %c0_17], %27 {strides = array<i32>} : memref<8x2x128xf32, #tpu.memory_space<vmem>>, vector<1x2x128xf32>,
    %28 = vector.extract_strided_slice %7 {offsets = [10, 0], sizes = [2, 128], strides = [1, 1]} : vector<16x128xf32> to vector<2x128xf32>
    %c5 = arith.constant 5 : index
    %c0_18 = arith.constant 0 : index
    %c0_19 = arith.constant 0 : index
    %29 = vector.load %arg7[%c5, %c0_18, %c0_19] : memref<8x2x128xf32, #tpu.memory_space<vmem>>, vector<1x2x128xf32>
    %30 = vector.shape_cast %29 : vector<1x2x128xf32> to vector<2x128xf32>
    %31 = vector.shape_cast %28 : vector<2x128xf32> to vector<1x2x128xf32>
    tpu.vector_store %arg7[%c5, %c0_18, %c0_19], %31 {strides = array<i32>} : memref<8x2x128xf32, #tpu.memory_space<vmem>>, vector<1x2x128xf32>,
    %32 = vector.extract_strided_slice %7 {offsets = [12, 0], sizes = [2, 128], strides = [1, 1]} : vector<16x128xf32> to vector<2x128xf32>
    %c6 = arith.constant 6 : index
    %c0_20 = arith.constant 0 : index
    %c0_21 = arith.constant 0 : index
    %33 = vector.load %arg7[%c6, %c0_20, %c0_21] : memref<8x2x128xf32, #tpu.memory_space<vmem>>, vector<1x2x128xf32>
    %34 = vector.shape_cast %33 : vector<1x2x128xf32> to vector<2x128xf32>
    %35 = vector.shape_cast %32 : vector<2x128xf32> to vector<1x2x128xf32>
    tpu.vector_store %arg7[%c6, %c0_20, %c0_21], %35 {strides = array<i32>} : memref<8x2x128xf32, #tpu.memory_space<vmem>>, vector<1x2x128xf32>,
    %36 = vector.extract_strided_slice %7 {offsets = [14, 0], sizes = [2, 128], strides = [1, 1]} : vector<16x128xf32> to vector<2x128xf32>
    %c7 = arith.constant 7 : index
    %c0_22 = arith.constant 0 : index
    %c0_23 = arith.constant 0 : index
    %37 = vector.load %arg7[%c7, %c0_22, %c0_23] : memref<8x2x128xf32, #tpu.memory_space<vmem>>, vector<1x2x128xf32>
    %38 = vector.shape_cast %37 : vector<1x2x128xf32> to vector<2x128xf32>
    %39 = vector.shape_cast %36 : vector<2x128xf32> to vector<1x2x128xf32>
    tpu.vector_store %arg7[%c7, %c0_22, %c0_23], %39 {strides = array<i32>} : memref<8x2x128xf32, #tpu.memory_space<vmem>>, vector<1x2x128xf32>,
    %c0_24 = arith.constant 0 : index
    %c0_25 = arith.constant 0 : index
    %c0_26 = arith.constant 0 : index
    %40 = vector.load %arg3[%c0_24, %c0_25, %c0_26] : memref<1x32x128xf32, #tpu.memory_space<vmem>>, vector<1x32x128xf32>
    %41 = vector.shape_cast %40 : vector<1x32x128xf32> to vector<32x128xf32>
    %c1_i32 = arith.constant 1 : i32
    %42 = arith.cmpi eq, %arg0, %c1_i32 : i32
    %cst_27 = arith.constant 0.000000e+00 : f32
    %43 = vector.broadcast %cst_27 : f32 to vector<2x32xf32>
    %cst_28 = arith.constant 0.000000e+00 : f32
    %44 = vector.broadcast %cst_28 : f32 to vector<2x32xf32>
    %c0_i32 = arith.constant 0 : i32
    %c7_i32 = arith.constant 7 : i32
    %45 = arith.subi %c7_i32, %c0_i32 : i32
    %46 = arith.select %42, %45, %c0_i32 : i32
    %47 = arith.index_cast %46 : i32 to index
    %c0_29 = arith.constant 0 : index
    %c0_30 = arith.constant 0 : index
    %48 = vector.load %arg7[%47, %c0_29, %c0_30] : memref<8x2x128xf32, #tpu.memory_space<vmem>>, vector<1x2x128xf32>
    %49 = vector.shape_cast %48 : vector<1x2x128xf32> to vector<2x128xf32>
    %cst_31 = arith.constant dense<0.000000e+00> : vector<2x128xf32>
    %50 = tpu.matmul %43, %41, %cst_31 {dimension_numbers = #tpu.dot_dimension_numbers<[1], [0], [0], [1], [0, 0, 1, 1], [], []>} : vector<2x32xf32>, vector<32x128xf32>, vector<2x128xf32> -> vector<2x128xf32>
    %51 = arith.addf %49, %50 : vector<2x128xf32>
    %52 = arith.negf %51 : vector<2x128xf32>
    %53 = math.exp %52 : vector<2x128xf32>
    %cst_32 = arith.constant 1.000000e+00 : f32
    %54 = vector.broadcast %cst_32 : f32 to vector<2x128xf32>
    %55 = arith.addf %54, %53 : vector<2x128xf32>
    %56 = arith.divf %54, %55 : vector<2x128xf32>
    %57 = math.tanh %51 : vector<2x128xf32>
    %58 = vector.extract_strided_slice %56 {offsets = [0, 0], sizes = [2, 32], strides = [1, 1]} : vector<2x128xf32> to vector<2x32xf32>
    %59 = vector.extract_strided_slice %56 {offsets = [0, 32], sizes = [2, 32], strides = [1, 1]} : vector<2x128xf32> to vector<2x32xf32>
    %60 = vector.extract_strided_slice %57 {offsets = [0, 64], sizes = [2, 32], strides = [1, 1]} : vector<2x128xf32> to vector<2x32xf32>
    %61 = vector.extract_strided_slice %56 {offsets = [0, 96], sizes = [2, 32], strides = [1, 1]} : vector<2x128xf32> to vector<2x32xf32>
    %62 = arith.mulf %59, %44 : vector<2x32xf32>
    %63 = arith.mulf %58, %60 : vector<2x32xf32>
    %64 = arith.addf %62, %63 : vector<2x32xf32>
    %65 = math.tanh %64 : vector<2x32xf32>
    %66 = arith.mulf %61, %65 : vector<2x32xf32>
    %c0_33 = arith.constant 0 : index
    %67 = arith.index_cast %46 : i32 to index
    %c0_34 = arith.constant 0 : index
    %c0_35 = arith.constant 0 : index
    %68 = vector.load %arg5[%c0_33, %67, %c0_34, %c0_35] : memref<1x8x2x32xf32, #tpu.memory_space<vmem>>, vector<1x1x2x32xf32>
    %69 = vector.shape_cast %68 : vector<1x1x2x32xf32> to vector<2x32xf32>
    %70 = vector.shape_cast %66 : vector<2x32xf32> to vector<1x1x2x32xf32>
    tpu.vector_store %arg5[%c0_33, %67, %c0_34, %c0_35], %70 {strides = array<i32>} : memref<1x8x2x32xf32, #tpu.memory_space<vmem>>, vector<1x1x2x32xf32>,
    %c1_i32_36 = arith.constant 1 : i32
    %c7_i32_37 = arith.constant 7 : i32
    %71 = arith.subi %c7_i32_37, %c1_i32_36 : i32
    %72 = arith.select %42, %71, %c1_i32_36 : i32
    %73 = arith.index_cast %72 : i32 to index
    %c0_38 = arith.constant 0 : index
    %c0_39 = arith.constant 0 : index
    %74 = vector.load %arg7[%73, %c0_38, %c0_39] : memref<8x2x128xf32, #tpu.memory_space<vmem>>, vector<1x2x128xf32>
    %75 = vector.shape_cast %74 : vector<1x2x128xf32> to vector<2x128xf32>
    %cst_40 = arith.constant dense<0.000000e+00> : vector<2x128xf32>
    %76 = tpu.matmul %66, %41, %cst_40 {dimension_numbers = #tpu.dot_dimension_numbers<[1], [0], [0], [1], [0, 0, 1, 1], [], []>} : vector<2x32xf32>, vector<32x128xf32>, vector<2x128xf32> -> vector<2x128xf32>
    %77 = arith.addf %75, %76 : vector<2x128xf32>
    %78 = arith.negf %77 : vector<2x128xf32>
    %79 = math.exp %78 : vector<2x128xf32>
    %cst_41 = arith.constant 1.000000e+00 : f32
    %80 = vector.broadcast %cst_41 : f32 to vector<2x128xf32>
    %81 = arith.addf %80, %79 : vector<2x128xf32>
    %82 = arith.divf %80, %81 : vector<2x128xf32>
    %83 = math.tanh %77 : vector<2x128xf32>
    %84 = vector.extract_strided_slice %82 {offsets = [0, 0], sizes = [2, 32], strides = [1, 1]} : vector<2x128xf32> to vector<2x32xf32>
    %85 = vector.extract_strided_slice %82 {offsets = [0, 32], sizes = [2, 32], strides = [1, 1]} : vector<2x128xf32> to vector<2x32xf32>
    %86 = vector.extract_strided_slice %83 {offsets = [0, 64], sizes = [2, 32], strides = [1, 1]} : vector<2x128xf32> to vector<2x32xf32>
    %87 = vector.extract_strided_slice %82 {offsets = [0, 96], sizes = [2, 32], strides = [1, 1]} : vector<2x128xf32> to vector<2x32xf32>
    %88 = arith.mulf %85, %64 : vector<2x32xf32>
    %89 = arith.mulf %84, %86 : vector<2x32xf32>
    %90 = arith.addf %88, %89 : vector<2x32xf32>
    %91 = math.tanh %90 : vector<2x32xf32>
    %92 = arith.mulf %87, %91 : vector<2x32xf32>
    %c0_42 = arith.constant 0 : index
    %93 = arith.index_cast %72 : i32 to index
    %c0_43 = arith.constant 0 : index
    %c0_44 = arith.constant 0 : index
    %94 = vector.load %arg5[%c0_42, %93, %c0_43, %c0_44] : memref<1x8x2x32xf32, #tpu.memory_space<vmem>>, vector<1x1x2x32xf32>
    %95 = vector.shape_cast %94 : vector<1x1x2x32xf32> to vector<2x32xf32>
    %96 = vector.shape_cast %92 : vector<2x32xf32> to vector<1x1x2x32xf32>
    tpu.vector_store %arg5[%c0_42, %93, %c0_43, %c0_44], %96 {strides = array<i32>} : memref<1x8x2x32xf32, #tpu.memory_space<vmem>>, vector<1x1x2x32xf32>,
    %c2_i32 = arith.constant 2 : i32
    %c7_i32_45 = arith.constant 7 : i32
    %97 = arith.subi %c7_i32_45, %c2_i32 : i32
    %98 = arith.select %42, %97, %c2_i32 : i32
    %99 = arith.index_cast %98 : i32 to index
    %c0_46 = arith.constant 0 : index
    %c0_47 = arith.constant 0 : index
    %100 = vector.load %arg7[%99, %c0_46, %c0_47] : memref<8x2x128xf32, #tpu.memory_space<vmem>>, vector<1x2x128xf32>
    %101 = vector.shape_cast %100 : vector<1x2x128xf32> to vector<2x128xf32>
    %cst_48 = arith.constant dense<0.000000e+00> : vector<2x128xf32>
    %102 = tpu.matmul %92, %41, %cst_48 {dimension_numbers = #tpu.dot_dimension_numbers<[1], [0], [0], [1], [0, 0, 1, 1], [], []>} : vector<2x32xf32>, vector<32x128xf32>, vector<2x128xf32> -> vector<2x128xf32>
    %103 = arith.addf %101, %102 : vector<2x128xf32>
    %104 = arith.negf %103 : vector<2x128xf32>
    %105 = math.exp %104 : vector<2x128xf32>
    %cst_49 = arith.constant 1.000000e+00 : f32
    %106 = vector.broadcast %cst_49 : f32 to vector<2x128xf32>
    %107 = arith.addf %106, %105 : vector<2x128xf32>
    %108 = arith.divf %106, %107 : vector<2x128xf32>
    %109 = math.tanh %103 : vector<2x128xf32>
    %110 = vector.extract_strided_slice %108 {offsets = [0, 0], sizes = [2, 32], strides = [1, 1]} : vector<2x128xf32> to vector<2x32xf32>
    %111 = vector.extract_strided_slice %108 {offsets = [0, 32], sizes = [2, 32], strides = [1, 1]} : vector<2x128xf32> to vector<2x32xf32>
    %112 = vector.extract_strided_slice %109 {offsets = [0, 64], sizes = [2, 32], strides = [1, 1]} : vector<2x128xf32> to vector<2x32xf32>
    %113 = vector.extract_strided_slice %108 {offsets = [0, 96], sizes = [2, 32], strides = [1, 1]} : vector<2x128xf32> to vector<2x32xf32>
    %114 = arith.mulf %111, %90 : vector<2x32xf32>
    %115 = arith.mulf %110, %112 : vector<2x32xf32>
    %116 = arith.addf %114, %115 : vector<2x32xf32>
    %117 = math.tanh %116 : vector<2x32xf32>
    %118 = arith.mulf %113, %117 : vector<2x32xf32>
    %c0_50 = arith.constant 0 : index
    %119 = arith.index_cast %98 : i32 to index
    %c0_51 = arith.constant 0 : index
    %c0_52 = arith.constant 0 : index
    %120 = vector.load %arg5[%c0_50, %119, %c0_51, %c0_52] : memref<1x8x2x32xf32, #tpu.memory_space<vmem>>, vector<1x1x2x32xf32>
    %121 = vector.shape_cast %120 : vector<1x1x2x32xf32> to vector<2x32xf32>
    %122 = vector.shape_cast %118 : vector<2x32xf32> to vector<1x1x2x32xf32>
    tpu.vector_store %arg5[%c0_50, %119, %c0_51, %c0_52], %122 {strides = array<i32>} : memref<1x8x2x32xf32, #tpu.memory_space<vmem>>, vector<1x1x2x32xf32>,
    %c3_i32 = arith.constant 3 : i32
    %c7_i32_53 = arith.constant 7 : i32
    %123 = arith.subi %c7_i32_53, %c3_i32 : i32
    %124 = arith.select %42, %123, %c3_i32 : i32
    %125 = arith.index_cast %124 : i32 to index
    %c0_54 = arith.constant 0 : index
    %c0_55 = arith.constant 0 : index
    %126 = vector.load %arg7[%125, %c0_54, %c0_55] : memref<8x2x128xf32, #tpu.memory_space<vmem>>, vector<1x2x128xf32>
    %127 = vector.shape_cast %126 : vector<1x2x128xf32> to vector<2x128xf32>
    %cst_56 = arith.constant dense<0.000000e+00> : vector<2x128xf32>
    %128 = tpu.matmul %118, %41, %cst_56 {dimension_numbers = #tpu.dot_dimension_numbers<[1], [0], [0], [1], [0, 0, 1, 1], [], []>} : vector<2x32xf32>, vector<32x128xf32>, vector<2x128xf32> -> vector<2x128xf32>
    %129 = arith.addf %127, %128 : vector<2x128xf32>
    %130 = arith.negf %129 : vector<2x128xf32>
    %131 = math.exp %130 : vector<2x128xf32>
    %cst_57 = arith.constant 1.000000e+00 : f32
    %132 = vector.broadcast %cst_57 : f32 to vector<2x128xf32>
    %133 = arith.addf %132, %131 : vector<2x128xf32>
    %134 = arith.divf %132, %133 : vector<2x128xf32>
    %135 = math.tanh %129 : vector<2x128xf32>
    %136 = vector.extract_strided_slice %134 {offsets = [0, 0], sizes = [2, 32], strides = [1, 1]} : vector<2x128xf32> to vector<2x32xf32>
    %137 = vector.extract_strided_slice %134 {offsets = [0, 32], sizes = [2, 32], strides = [1, 1]} : vector<2x128xf32> to vector<2x32xf32>
    %138 = vector.extract_strided_slice %135 {offsets = [0, 64], sizes = [2, 32], strides = [1, 1]} : vector<2x128xf32> to vector<2x32xf32>
    %139 = vector.extract_strided_slice %134 {offsets = [0, 96], sizes = [2, 32], strides = [1, 1]} : vector<2x128xf32> to vector<2x32xf32>
    %140 = arith.mulf %137, %116 : vector<2x32xf32>
    %141 = arith.mulf %136, %138 : vector<2x32xf32>
    %142 = arith.addf %140, %141 : vector<2x32xf32>
    %143 = math.tanh %142 : vector<2x32xf32>
    %144 = arith.mulf %139, %143 : vector<2x32xf32>
    %c0_58 = arith.constant 0 : index
    %145 = arith.index_cast %124 : i32 to index
    %c0_59 = arith.constant 0 : index
    %c0_60 = arith.constant 0 : index
    %146 = vector.load %arg5[%c0_58, %145, %c0_59, %c0_60] : memref<1x8x2x32xf32, #tpu.memory_space<vmem>>, vector<1x1x2x32xf32>
    %147 = vector.shape_cast %146 : vector<1x1x2x32xf32> to vector<2x32xf32>
    %148 = vector.shape_cast %144 : vector<2x32xf32> to vector<1x1x2x32xf32>
    tpu.vector_store %arg5[%c0_58, %145, %c0_59, %c0_60], %148 {strides = array<i32>} : memref<1x8x2x32xf32, #tpu.memory_space<vmem>>, vector<1x1x2x32xf32>,
    %c4_i32 = arith.constant 4 : i32
    %c7_i32_61 = arith.constant 7 : i32
    %149 = arith.subi %c7_i32_61, %c4_i32 : i32
    %150 = arith.select %42, %149, %c4_i32 : i32
    %151 = arith.index_cast %150 : i32 to index
    %c0_62 = arith.constant 0 : index
    %c0_63 = arith.constant 0 : index
    %152 = vector.load %arg7[%151, %c0_62, %c0_63] : memref<8x2x128xf32, #tpu.memory_space<vmem>>, vector<1x2x128xf32>
    %153 = vector.shape_cast %152 : vector<1x2x128xf32> to vector<2x128xf32>
    %cst_64 = arith.constant dense<0.000000e+00> : vector<2x128xf32>
    %154 = tpu.matmul %144, %41, %cst_64 {dimension_numbers = #tpu.dot_dimension_numbers<[1], [0], [0], [1], [0, 0, 1, 1], [], []>} : vector<2x32xf32>, vector<32x128xf32>, vector<2x128xf32> -> vector<2x128xf32>
    %155 = arith.addf %153, %154 : vector<2x128xf32>
    %156 = arith.negf %155 : vector<2x128xf32>
    %157 = math.exp %156 : vector<2x128xf32>
    %cst_65 = arith.constant 1.000000e+00 : f32
    %158 = vector.broadcast %cst_65 : f32 to vector<2x128xf32>
    %159 = arith.addf %158, %157 : vector<2x128xf32>
    %160 = arith.divf %158, %159 : vector<2x128xf32>
    %161 = math.tanh %155 : vector<2x128xf32>
    %162 = vector.extract_strided_slice %160 {offsets = [0, 0], sizes = [2, 32], strides = [1, 1]} : vector<2x128xf32> to vector<2x32xf32>
    %163 = vector.extract_strided_slice %160 {offsets = [0, 32], sizes = [2, 32], strides = [1, 1]} : vector<2x128xf32> to vector<2x32xf32>
    %164 = vector.extract_strided_slice %161 {offsets = [0, 64], sizes = [2, 32], strides = [1, 1]} : vector<2x128xf32> to vector<2x32xf32>
    %165 = vector.extract_strided_slice %160 {offsets = [0, 96], sizes = [2, 32], strides = [1, 1]} : vector<2x128xf32> to vector<2x32xf32>
    %166 = arith.mulf %163, %142 : vector<2x32xf32>
    %167 = arith.mulf %162, %164 : vector<2x32xf32>
    %168 = arith.addf %166, %167 : vector<2x32xf32>
    %169 = math.tanh %168 : vector<2x32xf32>
    %170 = arith.mulf %165, %169 : vector<2x32xf32>
    %c0_66 = arith.constant 0 : index
    %171 = arith.index_cast %150 : i32 to index
    %c0_67 = arith.constant 0 : index
    %c0_68 = arith.constant 0 : index
    %172 = vector.load %arg5[%c0_66, %171, %c0_67, %c0_68] : memref<1x8x2x32xf32, #tpu.memory_space<vmem>>, vector<1x1x2x32xf32>
    %173 = vector.shape_cast %172 : vector<1x1x2x32xf32> to vector<2x32xf32>
    %174 = vector.shape_cast %170 : vector<2x32xf32> to vector<1x1x2x32xf32>
    tpu.vector_store %arg5[%c0_66, %171, %c0_67, %c0_68], %174 {strides = array<i32>} : memref<1x8x2x32xf32, #tpu.memory_space<vmem>>, vector<1x1x2x32xf32>,
    %c5_i32 = arith.constant 5 : i32
    %c7_i32_69 = arith.constant 7 : i32
    %175 = arith.subi %c7_i32_69, %c5_i32 : i32
    %176 = arith.select %42, %175, %c5_i32 : i32
    %177 = arith.index_cast %176 : i32 to index
    %c0_70 = arith.constant 0 : index
    %c0_71 = arith.constant 0 : index
    %178 = vector.load %arg7[%177, %c0_70, %c0_71] : memref<8x2x128xf32, #tpu.memory_space<vmem>>, vector<1x2x128xf32>
    %179 = vector.shape_cast %178 : vector<1x2x128xf32> to vector<2x128xf32>
    %cst_72 = arith.constant dense<0.000000e+00> : vector<2x128xf32>
    %180 = tpu.matmul %170, %41, %cst_72 {dimension_numbers = #tpu.dot_dimension_numbers<[1], [0], [0], [1], [0, 0, 1, 1], [], []>} : vector<2x32xf32>, vector<32x128xf32>, vector<2x128xf32> -> vector<2x128xf32>
    %181 = arith.addf %179, %180 : vector<2x128xf32>
    %182 = arith.negf %181 : vector<2x128xf32>
    %183 = math.exp %182 : vector<2x128xf32>
    %cst_73 = arith.constant 1.000000e+00 : f32
    %184 = vector.broadcast %cst_73 : f32 to vector<2x128xf32>
    %185 = arith.addf %184, %183 : vector<2x128xf32>
    %186 = arith.divf %184, %185 : vector<2x128xf32>
    %187 = math.tanh %181 : vector<2x128xf32>
    %188 = vector.extract_strided_slice %186 {offsets = [0, 0], sizes = [2, 32], strides = [1, 1]} : vector<2x128xf32> to vector<2x32xf32>
    %189 = vector.extract_strided_slice %186 {offsets = [0, 32], sizes = [2, 32], strides = [1, 1]} : vector<2x128xf32> to vector<2x32xf32>
    %190 = vector.extract_strided_slice %187 {offsets = [0, 64], sizes = [2, 32], strides = [1, 1]} : vector<2x128xf32> to vector<2x32xf32>
    %191 = vector.extract_strided_slice %186 {offsets = [0, 96], sizes = [2, 32], strides = [1, 1]} : vector<2x128xf32> to vector<2x32xf32>
    %192 = arith.mulf %189, %168 : vector<2x32xf32>
    %193 = arith.mulf %188, %190 : vector<2x32xf32>
    %194 = arith.addf %192, %193 : vector<2x32xf32>
    %195 = math.tanh %194 : vector<2x32xf32>
    %196 = arith.mulf %191, %195 : vector<2x32xf32>
    %c0_74 = arith.constant 0 : index
    %197 = arith.index_cast %176 : i32 to index
    %c0_75 = arith.constant 0 : index
    %c0_76 = arith.constant 0 : index
    %198 = vector.load %arg5[%c0_74, %197, %c0_75, %c0_76] : memref<1x8x2x32xf32, #tpu.memory_space<vmem>>, vector<1x1x2x32xf32>
    %199 = vector.shape_cast %198 : vector<1x1x2x32xf32> to vector<2x32xf32>
    %200 = vector.shape_cast %196 : vector<2x32xf32> to vector<1x1x2x32xf32>
    tpu.vector_store %arg5[%c0_74, %197, %c0_75, %c0_76], %200 {strides = array<i32>} : memref<1x8x2x32xf32, #tpu.memory_space<vmem>>, vector<1x1x2x32xf32>,
    %c6_i32 = arith.constant 6 : i32
    %c7_i32_77 = arith.constant 7 : i32
    %201 = arith.subi %c7_i32_77, %c6_i32 : i32
    %202 = arith.select %42, %201, %c6_i32 : i32
    %203 = arith.index_cast %202 : i32 to index
    %c0_78 = arith.constant 0 : index
    %c0_79 = arith.constant 0 : index
    %204 = vector.load %arg7[%203, %c0_78, %c0_79] : memref<8x2x128xf32, #tpu.memory_space<vmem>>, vector<1x2x128xf32>
    %205 = vector.shape_cast %204 : vector<1x2x128xf32> to vector<2x128xf32>
    %cst_80 = arith.constant dense<0.000000e+00> : vector<2x128xf32>
    %206 = tpu.matmul %196, %41, %cst_80 {dimension_numbers = #tpu.dot_dimension_numbers<[1], [0], [0], [1], [0, 0, 1, 1], [], []>} : vector<2x32xf32>, vector<32x128xf32>, vector<2x128xf32> -> vector<2x128xf32>
    %207 = arith.addf %205, %206 : vector<2x128xf32>
    %208 = arith.negf %207 : vector<2x128xf32>
    %209 = math.exp %208 : vector<2x128xf32>
    %cst_81 = arith.constant 1.000000e+00 : f32
    %210 = vector.broadcast %cst_81 : f32 to vector<2x128xf32>
    %211 = arith.addf %210, %209 : vector<2x128xf32>
    %212 = arith.divf %210, %211 : vector<2x128xf32>
    %213 = math.tanh %207 : vector<2x128xf32>
    %214 = vector.extract_strided_slice %212 {offsets = [0, 0], sizes = [2, 32], strides = [1, 1]} : vector<2x128xf32> to vector<2x32xf32>
    %215 = vector.extract_strided_slice %212 {offsets = [0, 32], sizes = [2, 32], strides = [1, 1]} : vector<2x128xf32> to vector<2x32xf32>
    %216 = vector.extract_strided_slice %213 {offsets = [0, 64], sizes = [2, 32], strides = [1, 1]} : vector<2x128xf32> to vector<2x32xf32>
    %217 = vector.extract_strided_slice %212 {offsets = [0, 96], sizes = [2, 32], strides = [1, 1]} : vector<2x128xf32> to vector<2x32xf32>
    %218 = arith.mulf %215, %194 : vector<2x32xf32>
    %219 = arith.mulf %214, %216 : vector<2x32xf32>
    %220 = arith.addf %218, %219 : vector<2x32xf32>
    %221 = math.tanh %220 : vector<2x32xf32>
    %222 = arith.mulf %217, %221 : vector<2x32xf32>
    %c0_82 = arith.constant 0 : index
    %223 = arith.index_cast %202 : i32 to index
    %c0_83 = arith.constant 0 : index
    %c0_84 = arith.constant 0 : index
    %224 = vector.load %arg5[%c0_82, %223, %c0_83, %c0_84] : memref<1x8x2x32xf32, #tpu.memory_space<vmem>>, vector<1x1x2x32xf32>
    %225 = vector.shape_cast %224 : vector<1x1x2x32xf32> to vector<2x32xf32>
    %226 = vector.shape_cast %222 : vector<2x32xf32> to vector<1x1x2x32xf32>
    tpu.vector_store %arg5[%c0_82, %223, %c0_83, %c0_84], %226 {strides = array<i32>} : memref<1x8x2x32xf32, #tpu.memory_space<vmem>>, vector<1x1x2x32xf32>,
    %c7_i32_85 = arith.constant 7 : i32
    %c7_i32_86 = arith.constant 7 : i32
    %227 = arith.subi %c7_i32_86, %c7_i32_85 : i32
    %228 = arith.select %42, %227, %c7_i32_85 : i32
    %229 = arith.index_cast %228 : i32 to index
    %c0_87 = arith.constant 0 : index
    %c0_88 = arith.constant 0 : index
    %230 = vector.load %arg7[%229, %c0_87, %c0_88] : memref<8x2x128xf32, #tpu.memory_space<vmem>>, vector<1x2x128xf32>
    %231 = vector.shape_cast %230 : vector<1x2x128xf32> to vector<2x128xf32>
    %cst_89 = arith.constant dense<0.000000e+00> : vector<2x128xf32>
    %232 = tpu.matmul %222, %41, %cst_89 {dimension_numbers = #tpu.dot_dimension_numbers<[1], [0], [0], [1], [0, 0, 1, 1], [], []>} : vector<2x32xf32>, vector<32x128xf32>, vector<2x128xf32> -> vector<2x128xf32>
    %233 = arith.addf %231, %232 : vector<2x128xf32>
    %234 = arith.negf %233 : vector<2x128xf32>
    %235 = math.exp %234 : vector<2x128xf32>
    %cst_90 = arith.constant 1.000000e+00 : f32
    %236 = vector.broadcast %cst_90 : f32 to vector<2x128xf32>
    %237 = arith.addf %236, %235 : vector<2x128xf32>
    %238 = arith.divf %236, %237 : vector<2x128xf32>
    %239 = math.tanh %233 : vector<2x128xf32>
    %240 = vector.extract_strided_slice %238 {offsets = [0, 0], sizes = [2, 32], strides = [1, 1]} : vector<2x128xf32> to vector<2x32xf32>
    %241 = vector.extract_strided_slice %238 {offsets = [0, 32], sizes = [2, 32], strides = [1, 1]} : vector<2x128xf32> to vector<2x32xf32>
    %242 = vector.extract_strided_slice %239 {offsets = [0, 64], sizes = [2, 32], strides = [1, 1]} : vector<2x128xf32> to vector<2x32xf32>
    %243 = vector.extract_strided_slice %238 {offsets = [0, 96], sizes = [2, 32], strides = [1, 1]} : vector<2x128xf32> to vector<2x32xf32>
    %244 = arith.mulf %241, %220 : vector<2x32xf32>
    %245 = arith.mulf %240, %242 : vector<2x32xf32>
    %246 = arith.addf %244, %245 : vector<2x32xf32>
    %247 = math.tanh %246 : vector<2x32xf32>
    %248 = arith.mulf %243, %247 : vector<2x32xf32>
    %c0_91 = arith.constant 0 : index
    %249 = arith.index_cast %228 : i32 to index
    %c0_92 = arith.constant 0 : index
    %c0_93 = arith.constant 0 : index
    %250 = vector.load %arg5[%c0_91, %249, %c0_92, %c0_93] : memref<1x8x2x32xf32, #tpu.memory_space<vmem>>, vector<1x1x2x32xf32>
    %251 = vector.shape_cast %250 : vector<1x1x2x32xf32> to vector<2x32xf32>
    %252 = vector.shape_cast %248 : vector<2x32xf32> to vector<1x1x2x32xf32>
    tpu.vector_store %arg5[%c0_91, %249, %c0_92, %c0_93], %252 {strides = array<i32>} : memref<1x8x2x32xf32, #tpu.memory_space<vmem>>, vector<1x1x2x32xf32>,
    %c8_i32 = arith.constant 8 : i32
    %c0_94 = arith.constant 0 : index
    %c0_95 = arith.constant 0 : index
    %c0_96 = arith.constant 0 : index
    %253 = vector.load %arg6[%c0_94, %c0_95, %c0_96] : memref<1x2x32xf32, #tpu.memory_space<vmem>>, vector<1x2x32xf32>
    %254 = vector.shape_cast %253 : vector<1x2x32xf32> to vector<2x32xf32>
    %255 = vector.shape_cast %248 : vector<2x32xf32> to vector<1x2x32xf32>
    tpu.vector_store %arg6[%c0_94, %c0_95, %c0_96], %255 {strides = array<i32>} : memref<1x2x32xf32, #tpu.memory_space<vmem>>, vector<1x2x32xf32>,
    return
  }
  func.func @transform_0(%arg0: i32) -> (i32, i32) {
    %c0_i32 = arith.constant 0 : i32
    %c0_i32_0 = arith.constant 0 : i32
    %c0_i32_1 = arith.constant 0 : i32
    return %c0_i32, %c0_i32_0 : i32, i32
  }
  func.func @transform_1(%arg0: i32) -> (i32, i32, i32) {
    %c0_i32 = arith.constant 0 : i32
    %c0_i32_0 = arith.constant 0 : i32
    %c0_i32_1 = arith.constant 0 : i32
    return %arg0, %c0_i32, %c0_i32_0 : i32, i32, i32
  }
  func.func @transform_2(%arg0: i32) -> (i32, i32, i32) {
    %c0_i32 = arith.constant 0 : i32
    %c0_i32_0 = arith.constant 0 : i32
    %c0_i32_1 = arith.constant 0 : i32
    return %arg0, %c0_i32, %c0_i32_0 : i32, i32, i32
  }
  func.func @transform_3(%arg0: i32) -> (i32, i32, i32) {
    %c0_i32 = arith.constant 0 : i32
    %c0_i32_0 = arith.constant 0 : i32
    %c0_i32_1 = arith.constant 0 : i32
    return %arg0, %c0_i32, %c0_i32_0 : i32, i32, i32
  }
  func.func @transform_4(%arg0: i32) -> (i32, i32, i32, i32) {
    %c0_i32 = arith.constant 0 : i32
    %c0_i32_0 = arith.constant 0 : i32
    %c0_i32_1 = arith.constant 0 : i32
    %c0_i32_2 = arith.constant 0 : i32
    return %arg0, %c0_i32, %c0_i32_0, %c0_i32_1 : i32, i32, i32, i32
  }
  func.func @transform_5(%arg0: i32) -> (i32, i32, i32) {
    %c0_i32 = arith.constant 0 : i32
    %c0_i32_0 = arith.constant 0 : i32
    %c0_i32_1 = arith.constant 0 : i32
    return %arg0, %c0_i32, %c0_i32_0 : i32, i32, i32
  }
}

</mosaic_0001>

<llo_original>
// kernel: model_forward.5
$region0: #{model_forward.5}
  #allocation0 [shape = 'u32[]', space=smem, size = 0x4, offset = 0x4, fixed_abs, tag = 'smem constant byte address 0x4 - core index']
  #allocation1 [shape = 'u32[144,128]{1,0:T(1,128)}', space=vmem, size = 0x12000, scoped, tag = 'internal scratch']
  %s0 = inlined_call_operand.vmem [shape: f32[4,2,32], index: 0, kind: input, shape index: {}]
  %s1 = inlined_call_operand.vmem [shape: f32[1,64], index: 1, kind: input, shape index: {}]
  %s2 = inlined_call_operand.vmem [shape: f32[1,64], index: 2, kind: input, shape index: {}]
  %s3 = inlined_call_operand.vmem [shape: f32[64,32], index: 3, kind: input, shape index: {}]
  %s4 = inlined_call_operand.vmem [shape: f32[1,32], index: 4, kind: input, shape index: {}]
  %s5 = inlined_call_operand.vmem [shape: f32[32,4], index: 5, kind: input, shape index: {}]
  %s6 = inlined_call_operand.vmem [shape: f32[1,4], index: 6, kind: input, shape index: {}]
  %s7 = inlined_call_operand.hbm [shape: f32[2,4], index: 7, kind: output, shape index: {}]
  %s8 = sld [smem:[#allocation0]]
  $region38: #{model_forward.5} parent=0
    _
  %s10 = ssub.s32 1, %s8
  %s11 = scalar_select 0, %s10, %s8
  $region1: #{model_forward.5} parent=0
    #allocation2 [shape = 'u8[1024]{0}', space=vmem, size = 0x400, scoped, tag = 'output window, operand 0, single buffered']
    #allocation3 [shape = 's32[1]{0}', space=sflag, size = 0x4, scoped, tag = 'scoped memory for model_forward.5']
    %12 = vsyncpa [#allocation3], 0
    // Predicated region
    $region2: #{model_forward.5} parent=1 // pred_check
      _
    $region3: #{model_forward.5} parent=1 // pred_check_branch
      %14 = sbr.rel (0) target = $region5
    $region4: #{model_forward.5} parent=1 // pred_region
      _
    $region5: #{model_forward.5} parent=1 // pred_fallthru
      _
    // Predicated region
    $region6: #{model_forward.5} parent=1 // pred_check
      _
    $region7: #{model_forward.5} parent=1 // pred_check_branch
      %16 = sbr.rel (0) target = $region9
    $region8: #{model_forward.5} parent=1 // pred_region
      _
    $region9: #{model_forward.5} parent=1 // pred_fallthru
      _
    // Predicated region
    $region10: #{model_forward.5} parent=1 // pred_check
      _
    $region11: #{model_forward.5} parent=1 // pred_check_branch
      %18 = sbr.rel (0) target = $region13
    $region12: #{model_forward.5} parent=1 // pred_region
      _
    $region13: #{model_forward.5} parent=1 // pred_fallthru
      _
    // Predicated region
    $region14: #{model_forward.5} parent=1 // pred_check
      _
    $region15: #{model_forward.5} parent=1 // pred_check_branch
      %20 = sbr.rel (0) target = $region17
    $region16: #{model_forward.5} parent=1 // pred_region
      _
    $region17: #{model_forward.5} parent=1 // pred_fallthru
      _
    // Predicated region
    $region18: #{model_forward.5} parent=1 // pred_check
      _
    $region19: #{model_forward.5} parent=1 // pred_check_branch
      %22 = sbr.rel (0) target = $region21
    $region20: #{model_forward.5} parent=1 // pred_region
      _
    $region21: #{model_forward.5} parent=1 // pred_fallthru
      _
    // Predicated region
    $region22: #{model_forward.5} parent=1 // pred_check
      _
    $region23: #{model_forward.5} parent=1 // pred_check_branch
      %24 = sbr.rel (0) target = $region25
    $region24: #{model_forward.5} parent=1 // pred_region
      _
    $region25: #{model_forward.5} parent=1 // pred_fallthru
      _
    // Predicated region
    $region26: #{model_forward.5} parent=1 // pred_check
      _
    $region27: #{model_forward.5} parent=1 // pred_check_branch
      %26 = sbr.rel (0) target = $region29
    $region28: #{model_forward.5} parent=1 // pred_region
      _
    $region29: #{model_forward.5} parent=1 // pred_fallthru
      _
    %v27 = vld [vmem:[%s0] sm:$0x3]
    %v28 = vld [vmem:[%s0 + $0x2] sm:$0x3]
    %v29 = vld [vmem:[%s0 + $0x4] sm:$0x3]
    %v30 = vld [vmem:[%s0 + $0x6] sm:$0x3]
    %vm31 = vcmask 254976
    %v32 = vsel %vm31, %v27, -inf
    %v33 = vsel %vm31, %v28, -inf
    %v34 = vsel %vm31, %v29, -inf
    %v35 = vsel %vm31, %v30, -inf
    %v36 = vmax.f32 %v32, %v33
    %v37 = vmax.f32 %v34, %v35
    %v38 = vmax.f32 %v36, %v37
    %v39 = vsel %vm31, %v27, 0.0
    %v40 = vsel %vm31, %v28, 0.0
    %v41 = vadd.f32 %v39, %v40
    %v42 = vsel %vm31, %v29, 0.0
    %v43 = vadd.f32 %v41, %v42
    %v44 = vsel %vm31, %v30, 0.0
    %v45 = vadd.f32 %v43, %v44
    %v46 = vrcp.pop 4.0
    %v47 = vmul.f32 %v45, %v46
    %49 = vrot.lane.b32.xlu0 %v47, 32
    %v50 = vpop.permute.xlu0 %49
    %vm52 = vcmask 261120
    %v53 = vsel %vm52, %v38, %v50
    %vm54 = vcmask 517120
    %v55 = vsel %vm54, %v53, 0.0
    %56 = vadd.xlane.f32.xlu0 %v55
    %v57 = vpop.xlane.xlu0 %56
    %v58 = vrcp.pop 64.0
    %v59 = vmul.f32 %v57, %v58
    %v60 = vsub.f32 %v53, %v59
    %v61 = vmul.f32 %v60, %v60
    %v62 = vsel %vm54, %v61, 0.0
    %63 = vadd.xlane.f32.xlu0 %v62
    %v64 = vpop.xlane.xlu0 %63
    %v65 = vmul.f32 %v64, %v58
    %v66 = vadd.f32 %v65, 1e-05
    %v67 = vrsqrt.pop %v66
    %v68 = vmul.f32 %v60, %v67
    %v69 = vld [vmem:[%s1] sm:$0x1]
    %v71 = vlaneseq
    %v72 = vshrl.u32 %v71, 7
    %v73 = vsub.s32 0, %v72
    %v74 = vrot.slane %v69, %v73
    %v76 = vmul.f32 %v68, %v74
    %v77 = vld [vmem:[%s2] sm:$0x1]
    %v79 = vlaneseq
    %v80 = vshrl.u32 %v79, 7
    %v81 = vsub.s32 0, %v80
    %v82 = vrot.slane %v77, %v81
    %v84 = vadd.f32 %v76, %v82
    %v85 = vld [vmem:[%s3] sm:$0xff]
    %v86 = vld [vmem:[%s3 + $0x8] sm:$0xff]
    %v87 = vld [vmem:[%s3 + $0x10] sm:$0xff]
    %v88 = vld [vmem:[%s3 + $0x18] sm:$0xff]
    %v89 = vld [vmem:[%s3 + $0x20] sm:$0xff]
    %v90 = vld [vmem:[%s3 + $0x28] sm:$0xff]
    %v91 = vld [vmem:[%s3 + $0x30] sm:$0xff]
    %v92 = vld [vmem:[%s3 + $0x38] sm:$0xff]
    %v93 = vld [vmem:[%s4] sm:$0x1]
    %v95 = vlaneseq
    %v96 = vshrl.u32 %v95, 7
    %v97 = vsub.s32 0, %v96
    %v98 = vrot.slane %v93, %v97
    %vm100 = vcmask 523264
    %v102 = vsel %vm100, %v84, 0
    %104 = vmatprep.subr.mxu0 0.0
    %105 = vmatpush1.msra.mxu0 0.0
    %106 = vmatprep.subr.mxu0 0.0
    %107 = vmatpush1.msra.mxu0 0.0
    %108 = vmatprep.subr.mxu0 0.0
    %109 = vmatpush1.msra.mxu0 0.0
    %110 = vmatprep.subr.mxu0 0.0
    %111 = vmatpush1.msra.mxu0 0.0
    %112 = vmatprep.subr.mxu0 0.0
    %113 = vmatpush1.msra.mxu0 0.0
    %114 = vmatprep.subr.mxu0 0.0
    %115 = vmatpush1.msra.mxu0 0.0
    %116 = vmatprep.subr.mxu0 0.0
    %117 = vmatpush1.msra.mxu0 0.0
    %118 = vmatprep.subr.mxu0 0.0
    %119 = vmatpush1.msra.mxu0 0.0
    %120 = vmatprep.subr.mxu0 0.0
    %121 = vmatpush1.msra.mxu0 %v92
    %122 = vmatprep.subr.mxu0 0.0
    %123 = vmatpush1.msra.mxu0 %v91
    %124 = vmatprep.subr.mxu0 0.0
    %125 = vmatpush1.msra.mxu0 %v90
    %126 = vmatprep.subr.mxu0 0.0
    %127 = vmatpush1.msra.mxu0 %v89
    %128 = vmatprep.subr.mxu0 0.0
    %129 = vmatpush1.msra.mxu0 %v88
    %130 = vmatprep.subr.mxu0 0.0
    %131 = vmatpush1.msra.mxu0 %v87
    %132 = vmatprep.subr.mxu0 0.0
    %133 = vmatpush1.msra.mxu0 %v86
    %134 = vmatprep.subr.mxu0 0.0
    %135 = vmatpush1.msra.mxu0 %v85
    %136 = vmatprep.subr.mxu0 0.0
    %137 = vmatpush2.msra.mxu0 0.0
    %138 = vmatprep.subr.mxu0 0.0
    %139 = vmatpush2.msra.mxu0 0.0
    %140 = vmatprep.subr.mxu0 0.0
    %141 = vmatpush2.msra.mxu0 0.0
    %142 = vmatprep.subr.mxu0 0.0
    %143 = vmatpush2.msra.mxu0 0.0
    %144 = vmatprep.subr.mxu0 0.0
    %145 = vmatpush2.msra.mxu0 0.0
    %146 = vmatprep.subr.mxu0 0.0
    %147 = vmatpush2.msra.mxu0 0.0
    %148 = vmatprep.subr.mxu0 0.0
    %149 = vmatpush2.msra.mxu0 0.0
    %150 = vmatprep.subr.mxu0 0.0
    %151 = vmatpush2.msra.mxu0 0.0
    %152 = vmatprep.subr.mxu0 0.0
    %153 = vmatpush2.msra.mxu0 0.0
    %154 = vmatprep.subr.mxu0 0.0
    %155 = vmatpush2.msra.mxu0 0.0
    %156 = vmatprep.subr.mxu0 0.0
    %157 = vmatpush2.msra.mxu0 0.0
    %158 = vmatprep.subr.mxu0 0.0
    %159 = vmatpush2.msra.mxu0 0.0
    %160 = vmatprep.subr.mxu0 0.0
    %161 = vmatpush2.msra.mxu0 0.0
    %162 = vmatprep.subr.mxu0 0.0
    %163 = vmatpush2.msra.mxu0 0.0
    %164 = vmatprep.subr.mxu0 0.0
    %165 = vmatpush2.msra.mxu0 0.0
    %166 = vmatprep.subr.mxu0 0.0
    %167 = vmatpush2.msra.mxu0 0.0
    %168 = vmatprep.mubr.f32.mxu0 0.0
    %169 = vmatmul.mubr.f32.gmra.mxu0 %v102
    %v170 = vpop.f32.mrf.mxu0
    %v171 = vadd.f32 %v98, %v170
    %v172 = vpop.f32.mrf.mxu0
    %173 = vdwg.mxu0
    %v174 = vtanh.pop %v171
    %v175 = vld [vmem:[%s5] sm:$0xff]
    %v176 = vld [vmem:[%s5 + $0x8] sm:$0xff]
    %v177 = vld [vmem:[%s5 + $0x10] sm:$0xff]
    %v178 = vld [vmem:[%s5 + $0x18] sm:$0xff]
    %v179 = vld [vmem:[%s6] sm:$0x1]
    %v181 = vlaneseq
    %v182 = vshrl.u32 %v181, 7
    %v183 = vsub.s32 0, %v182
    %v184 = vrot.slane %v179, %v183
    %v187 = vsel %vm52, %v174, 0
    %189 = vmatprep.subr.mxu0 0.0
    %190 = vmatpush1.msra.mxu0 0.0
    %191 = vmatprep.subr.mxu0 0.0
    %192 = vmatpush1.msra.mxu0 0.0
    %193 = vmatprep.subr.mxu0 0.0
    %194 = vmatpush1.msra.mxu0 0.0
    %195 = vmatprep.subr.mxu0 0.0
    %196 = vmatpush1.msra.mxu0 0.0
    %197 = vmatprep.subr.mxu0 0.0
    %198 = vmatpush1.msra.mxu0 0.0
    %199 = vmatprep.subr.mxu0 0.0
    %200 = vmatpush1.msra.mxu0 0.0
    %201 = vmatprep.subr.mxu0 0.0
    %202 = vmatpush1.msra.mxu0 0.0
    %203 = vmatprep.subr.mxu0 0.0
    %204 = vmatpush1.msra.mxu0 0.0
    %205 = vmatprep.subr.mxu0 0.0
    %206 = vmatpush1.msra.mxu0 0.0
    %207 = vmatprep.subr.mxu0 0.0
    %208 = vmatpush1.msra.mxu0 0.0
    %209 = vmatprep.subr.mxu0 0.0
    %210 = vmatpush1.msra.mxu0 0.0
    %211 = vmatprep.subr.mxu0 0.0
    %212 = vmatpush1.msra.mxu0 0.0
    %213 = vmatprep.subr.mxu0 0.0
    %214 = vmatpush1.msra.mxu0 %v178
    %215 = vmatprep.subr.mxu0 0.0
    %216 = vmatpush1.msra.mxu0 %v177
    %217 = vmatprep.subr.mxu0 0.0
    %218 = vmatpush1.msra.mxu0 %v176
    %219 = vmatprep.subr.mxu0 0.0
    %220 = vmatpush1.msra.mxu0 %v175
    %221 = vmatprep.subr.mxu0 0.0
    %222 = vmatpush2.msra.mxu0 0.0
    %223 = vmatprep.subr.mxu0 0.0
    %224 = vmatpush2.msra.mxu0 0.0
    %225 = vmatprep.subr.mxu0 0.0
    %226 = vmatpush2.msra.mxu0 0.0
    %227 = vmatprep.subr.mxu0 0.0
    %228 = vmatpush2.msra.mxu0 0.0
    %229 = vmatprep.subr.mxu0 0.0
    %230 = vmatpush2.msra.mxu0 0.0
    %231 = vmatprep.subr.mxu0 0.0
    %232 = vmatpush2.msra.mxu0 0.0
    %233 = vmatprep.subr.mxu0 0.0
    %234 = vmatpush2.msra.mxu0 0.0
    %235 = vmatprep.subr.mxu0 0.0
    %236 = vmatpush2.msra.mxu0 0.0
    %237 = vmatprep.subr.mxu0 0.0
    %238 = vmatpush2.msra.mxu0 0.0
    %239 = vmatprep.subr.mxu0 0.0
    %240 = vmatpush2.msra.mxu0 0.0
    %241 = vmatprep.subr.mxu0 0.0
    %242 = vmatpush2.msra.mxu0 0.0
    %243 = vmatprep.subr.mxu0 0.0
    %244 = vmatpush2.msra.mxu0 0.0
    %245 = vmatprep.subr.mxu0 0.0
    %246 = vmatpush2.msra.mxu0 0.0
    %247 = vmatprep.subr.mxu0 0.0
    %248 = vmatpush2.msra.mxu0 0.0
    %249 = vmatprep.subr.mxu0 0.0
    %250 = vmatpush2.msra.mxu0 0.0
    %251 = vmatprep.subr.mxu0 0.0
    %252 = vmatpush2.msra.mxu0 0.0
    %253 = vmatprep.mubr.f32.mxu0 0.0
    %254 = vmatmul.mubr.f32.gmra.mxu0 %v187
    %v255 = vpop.f32.mrf.mxu0
    %v256 = vadd.f32 %v184, %v255
    %v257 = vpop.f32.mrf.mxu0
    %258 = vdwg.mxu0
    %vm259 = vcmask 25600
    %260 = vst.msk [vmem:[#allocation2] sm:$0x3] %vm259, %v256
    // Predicated region
    $region30: #{model_forward.5} parent=1 // pred_check
      _
    $region31: #{model_forward.5} parent=1 // pred_check_branch
      %262 = sbr.rel (0) target = $region33
    $region32: #{model_forward.5} parent=1 // pred_region
      %s264 = ssub.s32 32, 32
      %265 = vsyncadd [#allocation3], %s264
      %s267 = sshll.u32 [#allocation2], 4
      %s268 = int_to_ptr.vmem [resolvable:$true] %s267
      %270 = dma.vmem_to_hbm [thread:$0]  %s268, 32, %s7, [#allocation3]
    $region33: #{model_forward.5} parent=1 // pred_fallthru
      _
    // Predicated region
    $region34: #{model_forward.5} parent=1 // pred_check
      _
    $region35: #{model_forward.5} parent=1 // pred_check_branch
      %272 = sbr.rel (0) target = $region37
    $region36: #{model_forward.5} parent=1 // pred_region
      %273 = dma.done [#allocation3], 32
    $region37: #{model_forward.5} parent=1 // pred_fallthru
      _
    %274 = vsyncpa [#allocation3], 1

// kernel: model_forward.4
$region0: #{model_forward.4}
  #allocation0 [shape = 'u32[]', space=smem, size = 0x4, offset = 0x4, fixed_abs, tag = 'smem constant byte address 0x4 - core index']
  #allocation1 [shape = 'u32[144,128]{1,0:T(1,128)}', space=vmem, size = 0x12000, scoped, tag = 'internal scratch']
  #allocation2 [shape = 'f32[8,2,128]{2,1,0:T(2,128)}', space=vmem, size = 0x2000, scoped, tag = 'scratch operand']
  %s0 = inlined_call_operand.vmem [shape: f32[16,64], index: 0, kind: input, shape index: {}]
  %s1 = inlined_call_operand.vmem [shape: f32[2,64,128], index: 1, kind: input, shape index: {}]
  %s2 = inlined_call_operand.vmem [shape: f32[2,32,128], index: 2, kind: input, shape index: {}]
  %s3 = inlined_call_operand.vmem [shape: f32[2,1,128], index: 3, kind: input, shape index: {}]
  %s4 = inlined_call_operand.hbm [shape: f32[2,8,2,32], index: 4, kind: output, shape index: {0}]
  %s5 = inlined_call_operand.vmem [shape: f32[2,2,32], index: 5, kind: output, shape index: {1}]
  %6 = xla_tuple %s4, %s5
  %s7 = sld [smem:[#allocation0]]
  $region57: #{model_forward.4} parent=0
    _
  %s9 = ssub.s32 1, %s7
  %s10 = scalar_select 0, %s9, %s7
  $region1: #{model_forward.4} parent=0
    #allocation3 [shape = 'u8[16384]{0}', space=vmem, size = 0x4000, scoped, tag = 'output window, operand 0']
    #allocation4 [shape = 's32[2]{0}', space=sflag, size = 0x8, scoped, tag = 'scoped memory for model_forward.4']
    %11 = vsyncpa [#allocation4], 0
    %s12 = scalar_lea.sflag [#allocation4], 1
    %13 = vsyncpa %s12, 0
    loop: start=0, step=1, limit=4
    $region2: #{model_forward.4} parent=1 // loop_pre_header
      _
    $region3: #{model_forward.4} parent=1 // loop_header
      %s15 = sphi 0, %s19
      %p16 = scmp.ge.s32.totalorder %s15, 4
      %s23 = sphi 0, %s23
      %s25 = sphi 0, %s23
      %s26 = sphi 0, %s25
      %s40 = sphi 0, %s26
      %s46 = sphi 0, %s48
      %s49 = sphi 0, %s46
      %s50 = sphi 0, %s49
      %s66 = sphi 0, %s50
      %s72 = sphi 0, %s74
      %s75 = sphi 0, %s72
      %s76 = sphi 0, %s75
      %s92 = sphi 0, %s76
      %s98 = sphi 0, %s100
      %s101 = sphi 0, %s98
      %s102 = sphi 0, %s101
      %s118 = sphi 0, %s102
      %s124 = sphi 0, %s126
      %s127 = sphi 0, %s124
      %s128 = sphi 0, %s127
      %s144 = sphi 0, %s128
      %s150 = sphi 0, %s152
      %s153 = sphi 0, %s150
      %s154 = sphi 0, %s153
      %s170 = sphi 0, %s154
    $region4: #{model_forward.4} parent=1 // loop_header_branch
      %18 = sbr.rel (%p16) target = $region8
    $region5: #{model_forward.4} parent=1 // loop_body
      %s20 = ssub.s32 %s15, 1
      %s21 = ssub.s32 %s15, 2
      %s22 = sadd.s32 %s15, 1
      %s24 = sadd.s32 %s23, 1
      %p27 = scmp.eq.s32.totalorder %s15, 1
      %p28 = scmp.ne.s32.totalorder %s23, %s25
      %p29 = scmp.eq.s32.totalorder %s15, 0
      %p30 = por %p28, %p29
      %p31 = scmp.ne.s32.totalorder %s23, %s25
      %p32 = scmp.eq.s32.totalorder %s20, 1
      %p33 = por %p31, %p32
      %p34 = scmp.ne.s32.totalorder %s25, %s26
      %p35 = scmp.eq.s32.totalorder %s20, 0
      %p36 = por %p34, %p35
      %p37 = scmp.ne.s32.totalorder %s25, %s26
      %p38 = scmp.eq.s32.totalorder %s21, 1
      %p39 = por %p37, %p38
      %p41 = scmp.ne.s32.totalorder %s26, %s40
      %p42 = scmp.eq.s32.totalorder %s21, 0
      %p43 = por %p41, %p42
      %s44 = ssub.s32 %s15, %s22
      %p45 = scmp.eq.s32.totalorder %s44, 0
      %s47 = sadd.s32 %s46, 1
      %s48 = scalar_select %p45, %s46, %s47
      %p51 = pneg %p45
      %p52 = scmp.eq.s32.totalorder %s15, 1
      %p53 = por %p51, %p52
      %p54 = scmp.ne.s32.totalorder %s46, %s49
      %p55 = scmp.eq.s32.totalorder %s15, 0
      %p56 = por %p54, %p55
      %p57 = scmp.ne.s32.totalorder %s46, %s49
      %p58 = scmp.eq.s32.totalorder %s20, 1
      %p59 = por %p57, %p58
      %p60 = scmp.ne.s32.totalorder %s49, %s50
      %p61 = scmp.eq.s32.totalorder %s20, 0
      %p62 = por %p60, %p61
      %p63 = scmp.ne.s32.totalorder %s49, %s50
      %p64 = scmp.eq.s32.totalorder %s21, 1
      %p65 = por %p63, %p64
      %p67 = scmp.ne.s32.totalorder %s50, %s66
      %p68 = scmp.eq.s32.totalorder %s21, 0
      %p69 = por %p67, %p68
      %s70 = ssub.s32 %s15, %s22
      %p71 = scmp.eq.s32.totalorder %s70, 0
      %s73 = sadd.s32 %s72, 1
      %s74 = scalar_select %p71, %s72, %s73
      %p77 = pneg %p71
      %p78 = scmp.eq.s32.totalorder %s15, 1
      %p79 = por %p77, %p78
      %p80 = scmp.ne.s32.totalorder %s72, %s75
      %p81 = scmp.eq.s32.totalorder %s15, 0
      %p82 = por %p80, %p81
      %p83 = scmp.ne.s32.totalorder %s72, %s75
      %p84 = scmp.eq.s32.totalorder %s20, 1
      %p85 = por %p83, %p84
      %p86 = scmp.ne.s32.totalorder %s75, %s76
      %p87 = scmp.eq.s32.totalorder %s20, 0
      %p88 = por %p86, %p87
      %p89 = scmp.ne.s32.totalorder %s75, %s76
      %p90 = scmp.eq.s32.totalorder %s21, 1
      %p91 = por %p89, %p90
      %p93 = scmp.ne.s32.totalorder %s76, %s92
      %p94 = scmp.eq.s32.totalorder %s21, 0
      %p95 = por %p93, %p94
      %s96 = ssub.s32 %s15, %s22
      %p97 = scmp.eq.s32.totalorder %s96, 0
      %s99 = sadd.s32 %s98, 1
      %s100 = scalar_select %p97, %s98, %s99
      %p103 = pneg %p97
      %p104 = scmp.eq.s32.totalorder %s15, 1
      %p105 = por %p103, %p104
      %p106 = scmp.ne.s32.totalorder %s98, %s101
      %p107 = scmp.eq.s32.totalorder %s15, 0
      %p108 = por %p106, %p107
      %p109 = scmp.ne.s32.totalorder %s98, %s101
      %p110 = scmp.eq.s32.totalorder %s20, 1
      %p111 = por %p109, %p110
      %p112 = scmp.ne.s32.totalorder %s101, %s102
      %p113 = scmp.eq.s32.totalorder %s20, 0
      %p114 = por %p112, %p113
      %p115 = scmp.ne.s32.totalorder %s101, %s102
      %p116 = scmp.eq.s32.totalorder %s21, 1
      %p117 = por %p115, %p116
      %p119 = scmp.ne.s32.totalorder %s102, %s118
      %p120 = scmp.eq.s32.totalorder %s21, 0
      %p121 = por %p119, %p120
      %s122 = ssub.s32 %s15, %s22
      %p123 = scmp.eq.s32.totalorder %s122, 0
      %s125 = sadd.s32 %s124, 1
      %s126 = scalar_select %p123, %s124, %s125
      %p129 = pneg %p123
      %p130 = scmp.eq.s32.totalorder %s15, 1
      %p131 = por %p129, %p130
      %p132 = scmp.ne.s32.totalorder %s124, %s127
      %p133 = scmp.eq.s32.totalorder %s15, 0
      %p134 = por %p132, %p133
      %p135 = scmp.ne.s32.totalorder %s124, %s127
      %p136 = scmp.eq.s32.totalorder %s20, 1
      %p137 = por %p135, %p136
      %p138 = scmp.ne.s32.totalorder %s127, %s128
      %p139 = scmp.eq.s32.totalorder %s20, 0
      %p140 = por %p138, %p139
      %p141 = scmp.ne.s32.totalorder %s127, %s128
      %p142 = scmp.eq.s32.totalorder %s21, 1
      %p143 = por %p141, %p142
      %p145 = scmp.ne.s32.totalorder %s128, %s144
      %p146 = scmp.eq.s32.totalorder %s21, 0
      %p147 = por %p145, %p146
      %s148 = ssub.s32 %s15, %s22
      %p149 = scmp.eq.s32.totalorder %s148, 0
      %s151 = sadd.s32 %s150, 1
      %s152 = scalar_select %p149, %s150, %s151
      %p155 = pneg %p149
      %p156 = scmp.eq.s32.totalorder %s15, 1
      %p157 = por %p155, %p156
      %p158 = scmp.ne.s32.totalorder %s150, %s153
      %p159 = scmp.eq.s32.totalorder %s15, 0
      %p160 = por %p158, %p159
      %p161 = scmp.ne.s32.totalorder %s150, %s153
      %p162 = scmp.eq.s32.totalorder %s20, 1
      %p163 = por %p161, %p162
      %p164 = scmp.ne.s32.totalorder %s153, %s154
      %p165 = scmp.eq.s32.totalorder %s20, 0
      %p166 = por %p164, %p165
      %p167 = scmp.ne.s32.totalorder %s153, %s154
      %p168 = scmp.eq.s32.totalorder %s21, 1
      %p169 = por %p167, %p168
      %p171 = scmp.ne.s32.totalorder %s154, %s170
      %p172 = scmp.eq.s32.totalorder %s21, 0
      %p173 = por %p171, %p172
      %p174 = scmp.le.s32.totalorder 1, %s15
      %p175 = scmp.lt.s32.totalorder %s15, 3
      %p176 = pnand %p174, %p175
      %p177 = pneg %p176
      // Predicated region
      $region9: #{model_forward.4} parent=5 // pred_check
        _
      $region10: #{model_forward.4} parent=5 // pred_check_branch
        %179 = sbr.rel (%p176) target = $region12
      $region11: #{model_forward.4} parent=5 // pred_region
        %s180 = ssub.s32 %s15, 1
        // Predicated region
        $region13: #{model_forward.4} parent=11 // pred_check
          %p181 = pneg %p36
        $region14: #{model_forward.4} parent=11 // pred_check_branch
          %183 = sbr.rel (%p181) target = $region16
        $region15: #{model_forward.4} parent=11 // pred_region
          _
        $region16: #{model_forward.4} parent=11 // pred_fallthru
          _
      $region12: #{model_forward.4} parent=5 // pred_fallthru
        _
      %p184 = scmp.lt.s32.totalorder %s15, 2
      // Predicated region
      $region17: #{model_forward.4} parent=5 // pred_check
        %p185 = pneg %p184
      $region18: #{model_forward.4} parent=5 // pred_check_branch
        %187 = sbr.rel (%p185) target = $region20
      $region19: #{model_forward.4} parent=5 // pred_region
        // Predicated region
        $region21: #{model_forward.4} parent=19 // pred_check
          %p188 = pneg %p56
        $region22: #{model_forward.4} parent=19 // pred_check_branch
          %190 = sbr.rel (%p188) target = $region24
        $region23: #{model_forward.4} parent=19 // pred_region
          %p191 = scmp.lt.s32.totalorder %s15, 1
          %s192 = scalar_select %p191, %s15, 1
          %s193 = smul.addr %s192, 8
          %s194 = smul.addr %s193, 8
          %s195 = scalar_lea.vmem %s1, %s194
        $region24: #{model_forward.4} parent=19 // pred_fallthru
          _
        // Predicated region
        $region25: #{model_forward.4} parent=19 // pred_check
          %p196 = pneg %p82
        $region26: #{model_forward.4} parent=19 // pred_check_branch
          %198 = sbr.rel (%p196) target = $region28
        $region27: #{model_forward.4} parent=19 // pred_region
          %p199 = scmp.lt.s32.totalorder %s15, 1
          %s200 = scalar_select %p199, %s15, 1
          %s201 = smul.addr %s200, 4
          %s202 = smul.addr %s201, 8
          %s203 = scalar_lea.vmem %s2, %s202
        $region28: #{model_forward.4} parent=19 // pred_fallthru
          _
        // Predicated region
        $region29: #{model_forward.4} parent=19 // pred_check
          %p204 = pneg %p108
        $region30: #{model_forward.4} parent=19 // pred_check_branch
          %206 = sbr.rel (%p204) target = $region32
        $region31: #{model_forward.4} parent=19 // pred_region
          %p207 = scmp.lt.s32.totalorder %s15, 1
          %s208 = scalar_select %p207, %s15, 1
          %s209 = scalar_lea.vmem %s3, %s208
        $region32: #{model_forward.4} parent=19 // pred_fallthru
          _
      $region20: #{model_forward.4} parent=5 // pred_fallthru
        _
      %p210 = scmp.le.s32.totalorder 1, %s15
      %p211 = scmp.lt.s32.totalorder %s15, 3
      %p212 = pnand %p210, %p211
      %p213 = pneg %p212
      // Predicated region
      $region33: #{model_forward.4} parent=5 // pred_check
        _
      $region34: #{model_forward.4} parent=5 // pred_check_branch
        %215 = sbr.rel (%p212) target = $region36
      $region35: #{model_forward.4} parent=5 // pred_region
        %s216 = ssub.s32 %s15, 1
        %p217 = pneg %p36
        %p218 = pneg %p33
        %p219 = scmp.lt.s32.totalorder %s20, 1
        %s220 = scalar_select %p219, %s20, 1
        %s221 = smul.addr %s220, 8
        %s222 = smul.addr %s221, 8
        %s223 = scalar_lea.vmem %s1, %s222
        %p224 = pneg %p62
        %p225 = pneg %p59
        %p226 = scmp.lt.s32.totalorder %s20, 1
        %s227 = scalar_select %p226, %s20, 1
        %s228 = smul.addr %s227, 4
        %s229 = smul.addr %s228, 8
        %s230 = scalar_lea.vmem %s2, %s229
        %p231 = pneg %p88
        %p232 = pneg %p85
        %p233 = scmp.lt.s32.totalorder %s20, 1
        %s234 = scalar_select %p233, %s20, 1
        %s235 = scalar_lea.vmem %s3, %s234
        %p236 = pneg %p114
        %p237 = pneg %p111
        %p238 = pneg %p140
        %p239 = pneg %p137
        %s240 = sand.u32 %s127, 1
        %s241 = scalar_lea.sflag [#allocation4], %s240
        %s242 = sand.u32 %s127, 1
        %s243 = smul.addr %s242, 16
        %s244 = scalar_lea.vmem [#allocation3], %s243
        %p245 = pneg %p166
        %p246 = pneg %p163
        %p247 = scmp.lt.s32.totalorder %s20, 1
        %s248 = scalar_select %p247, %s20, 1
        %s249 = smul.addr %s248, 2
        %s250 = scalar_lea.vmem %s5, %s249
        %p251 = scmp.lt.s32.totalorder %s20, 1
        %s252 = scalar_select %p251, %s20, 1
        %s253 = smul.addr %s252, 8
        %s254 = smul.addr %s253, 8
        %s255 = scalar_lea.vmem %s1, %s254
        %p256 = scmp.lt.s32.totalorder %s20, 1
        %s257 = scalar_select %p256, %s20, 1
        %s258 = smul.addr %s257, 4
        %s259 = smul.addr %s258, 8
        %s260 = scalar_lea.vmem %s2, %s259
        %p261 = scmp.lt.s32.totalorder %s20, 1
        %s262 = scalar_select %p261, %s20, 1
        %s263 = scalar_lea.vmem %s3, %s262
        %p264 = scmp.lt.s32.totalorder %s20, 1
        %s265 = scalar_select %p264, %s20, 1
        %s266 = smul.addr %s265, 2
        %s267 = scalar_lea.vmem %s5, %s266
        %v268 = vld [vmem:[%s0] sm:$0xff]
        %v269 = vld [vmem:[%s0 + $0x8] sm:$0xff]
        %v270 = vld [vmem:[%s255] sm:$0xff]
        %v271 = vld [vmem:[%s255 + $0x8] sm:$0xff]
        %v272 = vld [vmem:[%s255 + $0x10] sm:$0xff]
        %v273 = vld [vmem:[%s255 + $0x18] sm:$0xff]
        %v274 = vld [vmem:[%s255 + $0x20] sm:$0xff]
        %v275 = vld [vmem:[%s255 + $0x28] sm:$0xff]
        %v276 = vld [vmem:[%s255 + $0x30] sm:$0xff]
        %v277 = vld [vmem:[%s255 + $0x38] sm:$0xff]
        %v278 = vld [vmem:[%s263] sm:$0x1]
        %v280 = vlaneseq
        %v281 = vshrl.u32 %v280, 7
        %v282 = vsub.s32 0, %v281
        %v283 = vrot.slane %v278, %v282
        %vm285 = vcmask 523264
        %v287 = vsel %vm285, %v268, 0
        %v290 = vsel %vm285, %v269, 0
        %292 = vmatprep.subr.mxu0 0.0
        %293 = vmatpush1.msra.mxu0 0.0
        %294 = vmatprep.subr.mxu0 0.0
        %295 = vmatpush1.msra.mxu0 0.0
        %296 = vmatprep.subr.mxu0 0.0
        %297 = vmatpush1.msra.mxu0 0.0
        %298 = vmatprep.subr.mxu0 0.0
        %299 = vmatpush1.msra.mxu0 0.0
        %300 = vmatprep.subr.mxu0 0.0
        %301 = vmatpush1.msra.mxu0 0.0
        %302 = vmatprep.subr.mxu0 0.0
        %303 = vmatpush1.msra.mxu0 0.0
        %304 = vmatprep.subr.mxu0 0.0
        %305 = vmatpush1.msra.mxu0 0.0
        %306 = vmatprep.subr.mxu0 0.0
        %307 = vmatpush1.msra.mxu0 0.0
        %308 = vmatprep.subr.mxu0 0.0
        %309 = vmatpush1.msra.mxu0 %v277
        %310 = vmatprep.subr.mxu0 0.0
        %311 = vmatpush1.msra.mxu0 %v276
        %312 = vmatprep.subr.mxu0 0.0
        %313 = vmatpush1.msra.mxu0 %v275
        %314 = vmatprep.subr.mxu0 0.0
        %315 = vmatpush1.msra.mxu0 %v274
        %316 = vmatprep.subr.mxu0 0.0
        %317 = vmatpush1.msra.mxu0 %v273
        %318 = vmatprep.subr.mxu0 0.0
        %319 = vmatpush1.msra.mxu0 %v272
        %320 = vmatprep.subr.mxu0 0.0
        %321 = vmatpush1.msra.mxu0 %v271
        %322 = vmatprep.subr.mxu0 0.0
        %323 = vmatpush1.msra.mxu0 %v270
        %324 = vmatprep.subr.mxu0 0.0
        %325 = vmatpush2.msra.mxu0 0.0
        %326 = vmatprep.subr.mxu0 0.0
        %327 = vmatpush2.msra.mxu0 0.0
        %328 = vmatprep.subr.mxu0 0.0
        %329 = vmatpush2.msra.mxu0 0.0
        %330 = vmatprep.subr.mxu0 0.0
        %331 = vmatpush2.msra.mxu0 0.0
        %332 = vmatprep.subr.mxu0 0.0
        %333 = vmatpush2.msra.mxu0 0.0
        %334 = vmatprep.subr.mxu0 0.0
        %335 = vmatpush2.msra.mxu0 0.0
        %336 = vmatprep.subr.mxu0 0.0
        %337 = vmatpush2.msra.mxu0 0.0
        %338 = vmatprep.subr.mxu0 0.0
        %339 = vmatpush2.msra.mxu0 0.0
        %340 = vmatprep.subr.mxu0 0.0
        %341 = vmatpush2.msra.mxu0 0.0
        %342 = vmatprep.subr.mxu0 0.0
        %343 = vmatpush2.msra.mxu0 0.0
        %344 = vmatprep.subr.mxu0 0.0
        %345 = vmatpush2.msra.mxu0 0.0
        %346 = vmatprep.subr.mxu0 0.0
        %347 = vmatpush2.msra.mxu0 0.0
        %348 = vmatprep.subr.mxu0 0.0
        %349 = vmatpush2.msra.mxu0 0.0
        %350 = vmatprep.subr.mxu0 0.0
        %351 = vmatpush2.msra.mxu0 0.0
        %352 = vmatprep.subr.mxu0 0.0
        %353 = vmatpush2.msra.mxu0 0.0
        %354 = vmatprep.subr.mxu0 0.0
        %355 = vmatpush2.msra.mxu0 0.0
        %356 = vmatprep.mubr.f32.mxu0 0.0
        %357 = vmatmul.mubr.f32.gmra.mxu0 %v287
        %v358 = vpop.f32.mrf.mxu0
        %v359 = vadd.f32 %v283, %v358
        %v360 = vpop.f32.mrf.mxu0
        %361 = vmatprep.mubr.f32.mxu0 0.0
        %362 = vmatmul.mubr.f32.gmra.mxu0 %v290
        %v363 = vpop.f32.mrf.mxu0
        %v364 = vadd.f32 %v283, %v363
        %v365 = vpop.f32.mrf.mxu0
        %366 = vdwg.mxu0
        %367 = vst [vmem:[#allocation2] sm:$0x3] %v359
        %s368 = scalar_lea.vmem [#allocation2], 2
        %369 = vst [vmem:[%s368 - $0x2] sm:$0xc] %v359
        %s370 = scalar_lea.vmem [#allocation2], 4
        %371 = vst [vmem:[%s370 - $0x4] sm:$0x30] %v359
        %s372 = scalar_lea.vmem [#allocation2], 6
        %373 = vst [vmem:[%s372 - $0x6] sm:$0xc0] %v359
        %s374 = scalar_lea.vmem [#allocation2], 8
        %375 = vst [vmem:[%s374] sm:$0x3] %v364
        %s376 = scalar_lea.vmem [#allocation2], 10
        %377 = vst [vmem:[%s376 - $0x2] sm:$0xc] %v364
        %s378 = scalar_lea.vmem [#allocation2], 12
        %379 = vst [vmem:[%s378 - $0x4] sm:$0x30] %v364
        %s380 = scalar_lea.vmem [#allocation2], 14
        %381 = vst [vmem:[%s380 - $0x6] sm:$0xc0] %v364
        %v382 = vld [vmem:[%s260] sm:$0xff]
        %v383 = vld [vmem:[%s260 + $0x8] sm:$0xff]
        %v384 = vld [vmem:[%s260 + $0x10] sm:$0xff]
        %v385 = vld [vmem:[%s260 + $0x18] sm:$0xff]
        %p386 = scmp.eq.s32.totalorder %s20, 1
        %s387 = scalar_select %p386, 7, 0
        %s388 = smul.u32 %s387, 2
        %s389 = scalar_lea.vmem [#allocation2], %s388
        %v390 = vld [vmem:[%s389] sm:$0x3]
        %vm391 = vcmask 261120
        %v393 = vsel %vm391, 0.0, 0
        %395 = vmatprep.subr.mxu0 0.0
        %396 = vmatpush1.msra.mxu0 0.0
        %397 = vmatprep.subr.mxu0 0.0
        %398 = vmatpush1.msra.mxu0 0.0
        %399 = vmatprep.subr.mxu0 0.0
        %400 = vmatpush1.msra.mxu0 0.0
        %401 = vmatprep.subr.mxu0 0.0
        %402 = vmatpush1.msra.mxu0 0.0
        %403 = vmatprep.subr.mxu0 0.0
        %404 = vmatpush1.msra.mxu0 0.0
        %405 = vmatprep.subr.mxu0 0.0
        %406 = vmatpush1.msra.mxu0 0.0
        %407 = vmatprep.subr.mxu0 0.0
        %408 = vmatpush1.msra.mxu0 0.0
        %409 = vmatprep.subr.mxu0 0.0
        %410 = vmatpush1.msra.mxu0 0.0
        %411 = vmatprep.subr.mxu0 0.0
        %412 = vmatpush1.msra.mxu0 0.0
        %413 = vmatprep.subr.mxu0 0.0
        %414 = vmatpush1.msra.mxu0 0.0
        %415 = vmatprep.subr.mxu0 0.0
        %416 = vmatpush1.msra.mxu0 0.0
        %417 = vmatprep.subr.mxu0 0.0
        %418 = vmatpush1.msra.mxu0 0.0
        %419 = vmatprep.subr.mxu0 0.0
        %420 = vmatpush1.msra.mxu0 %v385
        %421 = vmatprep.subr.mxu0 0.0
        %422 = vmatpush1.msra.mxu0 %v384
        %423 = vmatprep.subr.mxu0 0.0
        %424 = vmatpush1.msra.mxu0 %v383
        %425 = vmatprep.subr.mxu0 0.0
        %426 = vmatpush1.msra.mxu0 %v382
        %427 = vmatprep.subr.mxu0 0.0
        %428 = vmatpush2.msra.mxu0 0.0
        %429 = vmatprep.subr.mxu0 0.0
        %430 = vmatpush2.msra.mxu0 0.0
        %431 = vmatprep.subr.mxu0 0.0
        %432 = vmatpush2.msra.mxu0 0.0
        %433 = vmatprep.subr.mxu0 0.0
        %434 = vmatpush2.msra.mxu0 0.0
        %435 = vmatprep.subr.mxu0 0.0
        %436 = vmatpush2.msra.mxu0 0.0
        %437 = vmatprep.subr.mxu0 0.0
        %438 = vmatpush2.msra.mxu0 0.0
        %439 = vmatprep.subr.mxu0 0.0
        %440 = vmatpush2.msra.mxu0 0.0
        %441 = vmatprep.subr.mxu0 0.0
        %442 = vmatpush2.msra.mxu0 0.0
        %443 = vmatprep.subr.mxu0 0.0
        %444 = vmatpush2.msra.mxu0 0.0
        %445 = vmatprep.subr.mxu0 0.0
        %446 = vmatpush2.msra.mxu0 0.0
        %447 = vmatprep.subr.mxu0 0.0
        %448 = vmatpush2.msra.mxu0 0.0
        %449 = vmatprep.subr.mxu0 0.0
        %450 = vmatpush2.msra.mxu0 0.0
        %451 = vmatprep.subr.mxu0 0.0
        %452 = vmatpush2.msra.mxu0 0.0
        %453 = vmatprep.subr.mxu0 0.0
        %454 = vmatpush2.msra.mxu0 0.0
        %455 = vmatprep.subr.mxu0 0.0
        %456 = vmatpush2.msra.mxu0 0.0
        %457 = vmatprep.subr.mxu0 0.0
        %458 = vmatpush2.msra.mxu0 0.0
        %459 = vmatprep.mubr.f32.mxu0 0.0
        %460 = vmatmul.mubr.f32.gmra.mxu0 %v393
        %v461 = vpop.f32.mrf.mxu0
        %v462 = vadd.f32 0.0, %v461
        %v463 = vpop.f32.mrf.mxu0
        %464 = vdwg.mxu0
        %v465 = vadd.f32 %v390, %v462
        %v466 = vxor.u32 %v465, 2147483648
        %v467 = vmul.f32 %v466, 1.442695
        %v468 = vpow.pop %v467
        %v469 = vadd.f32 %v468, 1.0
        %v470 = vrcp.pop %v469
        %v471 = vmul.f32 1.0, %v470
        %v472 = vtanh.pop %v465
        %v473 = vmul.f32 %v471, 0.0
        %475 = vrot.lane.b32.xlu0 %v472, 64
        %v476 = vpop.permute.xlu0 %475
        %v478 = vmul.f32 %v471, %v476
        %480 = vrot.lane.b32.xlu0 %v478, 32
        %v481 = vpop.permute.xlu0 %480
        %v483 = vadd.f32 %v473, %v481
        %v484 = vtanh.pop %v483
        %486 = vrot.lane.b32.xlu0 %v484, 64
        %v487 = vpop.permute.xlu0 %486
        %v489 = vmul.f32 %v471, %v487
        %491 = vrot.lane.b32.xlu0 %v489, 32
        %v492 = vpop.permute.xlu0 %491
        %s494 = scalar_lea.vmem %s244, %s388 [#allocation3]
        %vm495 = vcmask 254976
        %496 = vst.msk [vmem:[%s494] sm:$0x3] %vm495, %v492
        %s497 = scalar_select %p386, 6, 1
        %s498 = smul.u32 %s497, 2
        %s499 = scalar_lea.vmem [#allocation2], %s498
        %v500 = vld [vmem:[%s499] sm:$0x3]
        %v501 = vsel %vm391, %v492, 0
        %503 = vmatprep.subr.mxu0 0.0
        %504 = vmatpush1.msra.mxu0 0.0
        %505 = vmatprep.subr.mxu0 0.0
        %506 = vmatpush1.msra.mxu0 0.0
        %507 = vmatprep.subr.mxu0 0.0
        %508 = vmatpush1.msra.mxu0 0.0
        %509 = vmatprep.subr.mxu0 0.0
        %510 = vmatpush1.msra.mxu0 0.0
        %511 = vmatprep.subr.mxu0 0.0
        %512 = vmatpush1.msra.mxu0 0.0
        %513 = vmatprep.subr.mxu0 0.0
        %514 = vmatpush1.msra.mxu0 0.0
        %515 = vmatprep.subr.mxu0 0.0
        %516 = vmatpush1.msra.mxu0 0.0
        %517 = vmatprep.subr.mxu0 0.0
        %518 = vmatpush1.msra.mxu0 0.0
        %519 = vmatprep.subr.mxu0 0.0
        %520 = vmatpush1.msra.mxu0 0.0
        %521 = vmatprep.subr.mxu0 0.0
        %522 = vmatpush1.msra.mxu0 0.0
        %523 = vmatprep.subr.mxu0 0.0
        %524 = vmatpush1.msra.mxu0 0.0
        %525 = vmatprep.subr.mxu0 0.0
        %526 = vmatpush1.msra.mxu0 0.0
        %527 = vmatprep.subr.mxu0 0.0
        %528 = vmatpush1.msra.mxu0 %v385
        %529 = vmatprep.subr.mxu0 0.0
        %530 = vmatpush1.msra.mxu0 %v384
        %531 = vmatprep.subr.mxu0 0.0
        %532 = vmatpush1.msra.mxu0 %v383
        %533 = vmatprep.subr.mxu0 0.0
        %534 = vmatpush1.msra.mxu0 %v382
        %535 = vmatprep.subr.mxu0 0.0
        %536 = vmatpush2.msra.mxu0 0.0
        %537 = vmatprep.subr.mxu0 0.0
        %538 = vmatpush2.msra.mxu0 0.0
        %539 = vmatprep.subr.mxu0 0.0
        %540 = vmatpush2.msra.mxu0 0.0
        %541 = vmatprep.subr.mxu0 0.0
        %542 = vmatpush2.msra.mxu0 0.0
        %543 = vmatprep.subr.mxu0 0.0
        %544 = vmatpush2.msra.mxu0 0.0
        %545 = vmatprep.subr.mxu0 0.0
        %546 = vmatpush2.msra.mxu0 0.0
        %547 = vmatprep.subr.mxu0 0.0
        %548 = vmatpush2.msra.mxu0 0.0
        %549 = vmatprep.subr.mxu0 0.0
        %550 = vmatpush2.msra.mxu0 0.0
        %551 = vmatprep.subr.mxu0 0.0
        %552 = vmatpush2.msra.mxu0 0.0
        %553 = vmatprep.subr.mxu0 0.0
        %554 = vmatpush2.msra.mxu0 0.0
        %555 = vmatprep.subr.mxu0 0.0
        %556 = vmatpush2.msra.mxu0 0.0
        %557 = vmatprep.subr.mxu0 0.0
        %558 = vmatpush2.msra.mxu0 0.0
        %559 = vmatprep.subr.mxu0 0.0
        %560 = vmatpush2.msra.mxu0 0.0
        %561 = vmatprep.subr.mxu0 0.0
        %562 = vmatpush2.msra.mxu0 0.0
        %563 = vmatprep.subr.mxu0 0.0
        %564 = vmatpush2.msra.mxu0 0.0
        %565 = vmatprep.subr.mxu0 0.0
        %566 = vmatpush2.msra.mxu0 0.0
        %567 = vmatprep.mubr.f32.mxu0 0.0
        %568 = vmatmul.mubr.f32.gmra.mxu0 %v501
        %v569 = vpop.f32.mrf.mxu0
        %v570 = vadd.f32 0.0, %v569
        %v571 = vpop.f32.mrf.mxu0
        %572 = vdwg.mxu0
        %v573 = vadd.f32 %v500, %v570
        %v574 = vxor.u32 %v573, 2147483648
        %v575 = vmul.f32 %v574, 1.442695
        %v576 = vpow.pop %v575
        %v577 = vadd.f32 %v576, 1.0
        %v578 = vrcp.pop %v577
        %v579 = vmul.f32 1.0, %v578
        %v580 = vtanh.pop %v573
        %v581 = vmul.f32 %v579, %v483
        %583 = vrot.lane.b32.xlu0 %v580, 64
        %v584 = vpop.permute.xlu0 %583
        %v586 = vmul.f32 %v579, %v584
        %588 = vrot.lane.b32.xlu0 %v586, 32
        %v589 = vpop.permute.xlu0 %588
        %v591 = vadd.f32 %v581, %v589
        %v592 = vtanh.pop %v591
        %594 = vrot.lane.b32.xlu0 %v592, 64
        %v595 = vpop.permute.xlu0 %594
        %v597 = vmul.f32 %v579, %v595
        %599 = vrot.lane.b32.xlu0 %v597, 32
        %v600 = vpop.permute.xlu0 %599
        %s602 = scalar_lea.vmem %s244, %s498 [#allocation3]
        %603 = vst.msk [vmem:[%s602] sm:$0x3] %vm495, %v600
        %s604 = scalar_select %p386, 5, 2
        %s605 = smul.u32 %s604, 2
        %s606 = scalar_lea.vmem [#allocation2], %s605
        %v607 = vld [vmem:[%s606] sm:$0x3]
        %v608 = vsel %vm391, %v600, 0
        %610 = vmatprep.subr.mxu0 0.0
        %611 = vmatpush1.msra.mxu0 0.0
        %612 = vmatprep.subr.mxu0 0.0
        %613 = vmatpush1.msra.mxu0 0.0
        %614 = vmatprep.subr.mxu0 0.0
        %615 = vmatpush1.msra.mxu0 0.0
        %616 = vmatprep.subr.mxu0 0.0
        %617 = vmatpush1.msra.mxu0 0.0
        %618 = vmatprep.subr.mxu0 0.0
        %619 = vmatpush1.msra.mxu0 0.0
        %620 = vmatprep.subr.mxu0 0.0
        %621 = vmatpush1.msra.mxu0 0.0
        %622 = vmatprep.subr.mxu0 0.0
        %623 = vmatpush1.msra.mxu0 0.0
        %624 = vmatprep.subr.mxu0 0.0
        %625 = vmatpush1.msra.mxu0 0.0
        %626 = vmatprep.subr.mxu0 0.0
        %627 = vmatpush1.msra.mxu0 0.0
        %628 = vmatprep.subr.mxu0 0.0
        %629 = vmatpush1.msra.mxu0 0.0
        %630 = vmatprep.subr.mxu0 0.0
        %631 = vmatpush1.msra.mxu0 0.0
        %632 = vmatprep.subr.mxu0 0.0
        %633 = vmatpush1.msra.mxu0 0.0
        %634 = vmatprep.subr.mxu0 0.0
        %635 = vmatpush1.msra.mxu0 %v385
        %636 = vmatprep.subr.mxu0 0.0
        %637 = vmatpush1.msra.mxu0 %v384
        %638 = vmatprep.subr.mxu0 0.0
        %639 = vmatpush1.msra.mxu0 %v383
        %640 = vmatprep.subr.mxu0 0.0
        %641 = vmatpush1.msra.mxu0 %v382
        %642 = vmatprep.subr.mxu0 0.0
        %643 = vmatpush2.msra.mxu0 0.0
        %644 = vmatprep.subr.mxu0 0.0
        %645 = vmatpush2.msra.mxu0 0.0
        %646 = vmatprep.subr.mxu0 0.0
        %647 = vmatpush2.msra.mxu0 0.0
        %648 = vmatprep.subr.mxu0 0.0
        %649 = vmatpush2.msra.mxu0 0.0
        %650 = vmatprep.subr.mxu0 0.0
        %651 = vmatpush2.msra.mxu0 0.0
        %652 = vmatprep.subr.mxu0 0.0
        %653 = vmatpush2.msra.mxu0 0.0
        %654 = vmatprep.subr.mxu0 0.0
        %655 = vmatpush2.msra.mxu0 0.0
        %656 = vmatprep.subr.mxu0 0.0
        %657 = vmatpush2.msra.mxu0 0.0
        %658 = vmatprep.subr.mxu0 0.0
        %659 = vmatpush2.msra.mxu0 0.0
        %660 = vmatprep.subr.mxu0 0.0
        %661 = vmatpush2.msra.mxu0 0.0
        %662 = vmatprep.subr.mxu0 0.0
        %663 = vmatpush2.msra.mxu0 0.0
        %664 = vmatprep.subr.mxu0 0.0
        %665 = vmatpush2.msra.mxu0 0.0
        %666 = vmatprep.subr.mxu0 0.0
        %667 = vmatpush2.msra.mxu0 0.0
        %668 = vmatprep.subr.mxu0 0.0
        %669 = vmatpush2.msra.mxu0 0.0
        %670 = vmatprep.subr.mxu0 0.0
        %671 = vmatpush2.msra.mxu0 0.0
        %672 = vmatprep.subr.mxu0 0.0
        %673 = vmatpush2.msra.mxu0 0.0
        %674 = vmatprep.mubr.f32.mxu0 0.0
        %675 = vmatmul.mubr.f32.gmra.mxu0 %v608
        %v676 = vpop.f32.mrf.mxu0
        %v677 = vadd.f32 0.0, %v676
        %v678 = vpop.f32.mrf.mxu0
        %679 = vdwg.mxu0
        %v680 = vadd.f32 %v607, %v677
        %v681 = vxor.u32 %v680, 2147483648
        %v682 = vmul.f32 %v681, 1.442695
        %v683 = vpow.pop %v682
        %v684 = vadd.f32 %v683, 1.0
        %v685 = vrcp.pop %v684
        %v686 = vmul.f32 1.0, %v685
        %v687 = vtanh.pop %v680
        %v688 = vmul.f32 %v686, %v591
        %690 = vrot.lane.b32.xlu0 %v687, 64
        %v691 = vpop.permute.xlu0 %690
        %v693 = vmul.f32 %v686, %v691
        %695 = vrot.lane.b32.xlu0 %v693, 32
        %v696 = vpop.permute.xlu0 %695
        %v698 = vadd.f32 %v688, %v696
        %v699 = vtanh.pop %v698
        %701 = vrot.lane.b32.xlu0 %v699, 64
        %v702 = vpop.permute.xlu0 %701
        %v704 = vmul.f32 %v686, %v702
        %706 = vrot.lane.b32.xlu0 %v704, 32
        %v707 = vpop.permute.xlu0 %706
        %s709 = scalar_lea.vmem %s244, %s605 [#allocation3]
        %710 = vst.msk [vmem:[%s709] sm:$0x3] %vm495, %v707
        %s711 = scalar_select %p386, 4, 3
        %s712 = smul.u32 %s711, 2
        %s713 = scalar_lea.vmem [#allocation2], %s712
        %v714 = vld [vmem:[%s713] sm:$0x3]
        %v715 = vsel %vm391, %v707, 0
        %717 = vmatprep.subr.mxu0 0.0
        %718 = vmatpush1.msra.mxu0 0.0
        %719 = vmatprep.subr.mxu0 0.0
        %720 = vmatpush1.msra.mxu0 0.0
        %721 = vmatprep.subr.mxu0 0.0
        %722 = vmatpush1.msra.mxu0 0.0
        %723 = vmatprep.subr.mxu0 0.0
        %724 = vmatpush1.msra.mxu0 0.0
        %725 = vmatprep.subr.mxu0 0.0
        %726 = vmatpush1.msra.mxu0 0.0
        %727 = vmatprep.subr.mxu0 0.0
        %728 = vmatpush1.msra.mxu0 0.0
        %729 = vmatprep.subr.mxu0 0.0
        %730 = vmatpush1.msra.mxu0 0.0
        %731 = vmatprep.subr.mxu0 0.0
        %732 = vmatpush1.msra.mxu0 0.0
        %733 = vmatprep.subr.mxu0 0.0
        %734 = vmatpush1.msra.mxu0 0.0
        %735 = vmatprep.subr.mxu0 0.0
        %736 = vmatpush1.msra.mxu0 0.0
        %737 = vmatprep.subr.mxu0 0.0
        %738 = vmatpush1.msra.mxu0 0.0
        %739 = vmatprep.subr.mxu0 0.0
        %740 = vmatpush1.msra.mxu0 0.0
        %741 = vmatprep.subr.mxu0 0.0
        %742 = vmatpush1.msra.mxu0 %v385
        %743 = vmatprep.subr.mxu0 0.0
        %744 = vmatpush1.msra.mxu0 %v384
        %745 = vmatprep.subr.mxu0 0.0
        %746 = vmatpush1.msra.mxu0 %v383
        %747 = vmatprep.subr.mxu0 0.0
        %748 = vmatpush1.msra.mxu0 %v382
        %749 = vmatprep.subr.mxu0 0.0
        %750 = vmatpush2.msra.mxu0 0.0
        %751 = vmatprep.subr.mxu0 0.0
        %752 = vmatpush2.msra.mxu0 0.0
        %753 = vmatprep.subr.mxu0 0.0
        %754 = vmatpush2.msra.mxu0 0.0
        %755 = vmatprep.subr.mxu0 0.0
        %756 = vmatpush2.msra.mxu0 0.0
        %757 = vmatprep.subr.mxu0 0.0
        %758 = vmatpush2.msra.mxu0 0.0
        %759 = vmatprep.subr.mxu0 0.0
        %760 = vmatpush2.msra.mxu0 0.0
        %761 = vmatprep.subr.mxu0 0.0
        %762 = vmatpush2.msra.mxu0 0.0
        %763 = vmatprep.subr.mxu0 0.0
        %764 = vmatpush2.msra.mxu0 0.0
        %765 = vmatprep.subr.mxu0 0.0
        %766 = vmatpush2.msra.mxu0 0.0
        %767 = vmatprep.subr.mxu0 0.0
        %768 = vmatpush2.msra.mxu0 0.0
        %769 = vmatprep.subr.mxu0 0.0
        %770 = vmatpush2.msra.mxu0 0.0
        %771 = vmatprep.subr.mxu0 0.0
        %772 = vmatpush2.msra.mxu0 0.0
        %773 = vmatprep.subr.mxu0 0.0
        %774 = vmatpush2.msra.mxu0 0.0
        %775 = vmatprep.subr.mxu0 0.0
        %776 = vmatpush2.msra.mxu0 0.0
        %777 = vmatprep.subr.mxu0 0.0
        %778 = vmatpush2.msra.mxu0 0.0
        %779 = vmatprep.subr.mxu0 0.0
        %780 = vmatpush2.msra.mxu0 0.0
        %781 = vmatprep.mubr.f32.mxu0 0.0
        %782 = vmatmul.mubr.f32.gmra.mxu0 %v715
        %v783 = vpop.f32.mrf.mxu0
        %v784 = vadd.f32 0.0, %v783
        %v785 = vpop.f32.mrf.mxu0
        %786 = vdwg.mxu0
        %v787 = vadd.f32 %v714, %v784
        %v788 = vxor.u32 %v787, 2147483648
        %v789 = vmul.f32 %v788, 1.442695
        %v790 = vpow.pop %v789
        %v791 = vadd.f32 %v790, 1.0
        %v792 = vrcp.pop %v791
        %v793 = vmul.f32 1.0, %v792
        %v794 = vtanh.pop %v787
        %v795 = vmul.f32 %v793, %v698
        %797 = vrot.lane.b32.xlu0 %v794, 64
        %v798 = vpop.permute.xlu0 %797
        %v800 = vmul.f32 %v793, %v798
        %802 = vrot.lane.b32.xlu0 %v800, 32
        %v803 = vpop.permute.xlu0 %802
        %v805 = vadd.f32 %v795, %v803
        %v806 = vtanh.pop %v805
        %808 = vrot.lane.b32.xlu0 %v806, 64
        %v809 = vpop.permute.xlu0 %808
        %v811 = vmul.f32 %v793, %v809
        %813 = vrot.lane.b32.xlu0 %v811, 32
        %v814 = vpop.permute.xlu0 %813
        %s816 = scalar_lea.vmem %s244, %s712 [#allocation3]
        %817 = vst.msk [vmem:[%s816] sm:$0x3] %vm495, %v814
        %s818 = scalar_select %p386, 3, 4
        %s819 = smul.u32 %s818, 2
        %s820 = scalar_lea.vmem [#allocation2], %s819
        %v821 = vld [vmem:[%s820] sm:$0x3]
        %v822 = vsel %vm391, %v814, 0
        %824 = vmatprep.subr.mxu0 0.0
        %825 = vmatpush1.msra.mxu0 0.0
        %826 = vmatprep.subr.mxu0 0.0
        %827 = vmatpush1.msra.mxu0 0.0
        %828 = vmatprep.subr.mxu0 0.0
        %829 = vmatpush1.msra.mxu0 0.0
        %830 = vmatprep.subr.mxu0 0.0
        %831 = vmatpush1.msra.mxu0 0.0
        %832 = vmatprep.subr.mxu0 0.0
        %833 = vmatpush1.msra.mxu0 0.0
        %834 = vmatprep.subr.mxu0 0.0
        %835 = vmatpush1.msra.mxu0 0.0
        %836 = vmatprep.subr.mxu0 0.0
        %837 = vmatpush1.msra.mxu0 0.0
        %838 = vmatprep.subr.mxu0 0.0
        %839 = vmatpush1.msra.mxu0 0.0
        %840 = vmatprep.subr.mxu0 0.0
        %841 = vmatpush1.msra.mxu0 0.0
        %842 = vmatprep.subr.mxu0 0.0
        %843 = vmatpush1.msra.mxu0 0.0
        %844 = vmatprep.subr.mxu0 0.0
        %845 = vmatpush1.msra.mxu0 0.0
        %846 = vmatprep.subr.mxu0 0.0
        %847 = vmatpush1.msra.mxu0 0.0
        %848 = vmatprep.subr.mxu0 0.0
        %849 = vmatpush1.msra.mxu0 %v385
        %850 = vmatprep.subr.mxu0 0.0
        %851 = vmatpush1.msra.mxu0 %v384
        %852 = vmatprep.subr.mxu0 0.0
        %853 = vmatpush1.msra.mxu0 %v383
        %854 = vmatprep.subr.mxu0 0.0
        %855 = vmatpush1.msra.mxu0 %v382
        %856 = vmatprep.subr.mxu0 0.0
        %857 = vmatpush2.msra.mxu0 0.0
        %858 = vmatprep.subr.mxu0 0.0
        %859 = vmatpush2.msra.mxu0 0.0
        %860 = vmatprep.subr.mxu0 0.0
        %861 = vmatpush2.msra.mxu0 0.0
        %862 = vmatprep.subr.mxu0 0.0
        %863 = vmatpush2.msra.mxu0 0.0
        %864 = vmatprep.subr.mxu0 0.0
        %865 = vmatpush2.msra.mxu0 0.0
        %866 = vmatprep.subr.mxu0 0.0
        %867 = vmatpush2.msra.mxu0 0.0
        %868 = vmatprep.subr.mxu0 0.0
        %869 = vmatpush2.msra.mxu0 0.0
        %870 = vmatprep.subr.mxu0 0.0
        %871 = vmatpush2.msra.mxu0 0.0
        %872 = vmatprep.subr.mxu0 0.0
        %873 = vmatpush2.msra.mxu0 0.0
        %874 = vmatprep.subr.mxu0 0.0
        %875 = vmatpush2.msra.mxu0 0.0
        %876 = vmatprep.subr.mxu0 0.0
        %877 = vmatpush2.msra.mxu0 0.0
        %878 = vmatprep.subr.mxu0 0.0
        %879 = vmatpush2.msra.mxu0 0.0
        %880 = vmatprep.subr.mxu0 0.0
        %881 = vmatpush2.msra.mxu0 0.0
        %882 = vmatprep.subr.mxu0 0.0
        %883 = vmatpush2.msra.mxu0 0.0
        %884 = vmatprep.subr.mxu0 0.0
        %885 = vmatpush2.msra.mxu0 0.0
        %886 = vmatprep.subr.mxu0 0.0
        %887 = vmatpush2.msra.mxu0 0.0
        %888 = vmatprep.mubr.f32.mxu0 0.0
        %889 = vmatmul.mubr.f32.gmra.mxu0 %v822
        %v890 = vpop.f32.mrf.mxu0
        %v891 = vadd.f32 0.0, %v890
        %v892 = vpop.f32.mrf.mxu0
        %893 = vdwg.mxu0
        %v894 = vadd.f32 %v821, %v891
        %v895 = vxor.u32 %v894, 2147483648
        %v896 = vmul.f32 %v895, 1.442695
        %v897 = vpow.pop %v896
        %v898 = vadd.f32 %v897, 1.0
        %v899 = vrcp.pop %v898
        %v900 = vmul.f32 1.0, %v899
        %v901 = vtanh.pop %v894
        %v902 = vmul.f32 %v900, %v805
        %904 = vrot.lane.b32.xlu0 %v901, 64
        %v905 = vpop.permute.xlu0 %904
        %v907 = vmul.f32 %v900, %v905
        %909 = vrot.lane.b32.xlu0 %v907, 32
        %v910 = vpop.permute.xlu0 %909
        %v912 = vadd.f32 %v902, %v910
        %v913 = vtanh.pop %v912
        %915 = vrot.lane.b32.xlu0 %v913, 64
        %v916 = vpop.permute.xlu0 %915
        %v918 = vmul.f32 %v900, %v916
        %920 = vrot.lane.b32.xlu0 %v918, 32
        %v921 = vpop.permute.xlu0 %920
        %s923 = scalar_lea.vmem %s244, %s819 [#allocation3]
        %924 = vst.msk [vmem:[%s923] sm:$0x3] %vm495, %v921
        %s925 = scalar_select %p386, 2, 5
        %s926 = smul.u32 %s925, 2
        %s927 = scalar_lea.vmem [#allocation2], %s926
        %v928 = vld [vmem:[%s927] sm:$0x3]
        %v929 = vsel %vm391, %v921, 0
        %931 = vmatprep.subr.mxu0 0.0
        %932 = vmatpush1.msra.mxu0 0.0
        %933 = vmatprep.subr.mxu0 0.0
        %934 = vmatpush1.msra.mxu0 0.0
        %935 = vmatprep.subr.mxu0 0.0
        %936 = vmatpush1.msra.mxu0 0.0
        %937 = vmatprep.subr.mxu0 0.0
        %938 = vmatpush1.msra.mxu0 0.0
        %939 = vmatprep.subr.mxu0 0.0
        %940 = vmatpush1.msra.mxu0 0.0
        %941 = vmatprep.subr.mxu0 0.0
        %942 = vmatpush1.msra.mxu0 0.0
        %943 = vmatprep.subr.mxu0 0.0
        %944 = vmatpush1.msra.mxu0 0.0
        %945 = vmatprep.subr.mxu0 0.0
        %946 = vmatpush1.msra.mxu0 0.0
        %947 = vmatprep.subr.mxu0 0.0
        %948 = vmatpush1.msra.mxu0 0.0
        %949 = vmatprep.subr.mxu0 0.0
        %950 = vmatpush1.msra.mxu0 0.0
        %951 = vmatprep.subr.mxu0 0.0
        %952 = vmatpush1.msra.mxu0 0.0
        %953 = vmatprep.subr.mxu0 0.0
        %954 = vmatpush1.msra.mxu0 0.0
        %955 = vmatprep.subr.mxu0 0.0
        %956 = vmatpush1.msra.mxu0 %v385
        %957 = vmatprep.subr.mxu0 0.0
        %958 = vmatpush1.msra.mxu0 %v384
        %959 = vmatprep.subr.mxu0 0.0
        %960 = vmatpush1.msra.mxu0 %v383
        %961 = vmatprep.subr.mxu0 0.0
        %962 = vmatpush1.msra.mxu0 %v382
        %963 = vmatprep.subr.mxu0 0.0
        %964 = vmatpush2.msra.mxu0 0.0
        %965 = vmatprep.subr.mxu0 0.0
        %966 = vmatpush2.msra.mxu0 0.0
        %967 = vmatprep.subr.mxu0 0.0
        %968 = vmatpush2.msra.mxu0 0.0
        %969 = vmatprep.subr.mxu0 0.0
        %970 = vmatpush2.msra.mxu0 0.0
        %971 = vmatprep.subr.mxu0 0.0
        %972 = vmatpush2.msra.mxu0 0.0
        %973 = vmatprep.subr.mxu0 0.0
        %974 = vmatpush2.msra.mxu0 0.0
        %975 = vmatprep.subr.mxu0 0.0
        %976 = vmatpush2.msra.mxu0 0.0
        %977 = vmatprep.subr.mxu0 0.0
        %978 = vmatpush2.msra.mxu0 0.0
        %979 = vmatprep.subr.mxu0 0.0
        %980 = vmatpush2.msra.mxu0 0.0
        %981 = vmatprep.subr.mxu0 0.0
        %982 = vmatpush2.msra.mxu0 0.0
        %983 = vmatprep.subr.mxu0 0.0
        %984 = vmatpush2.msra.mxu0 0.0
        %985 = vmatprep.subr.mxu0 0.0
        %986 = vmatpush2.msra.mxu0 0.0
        %987 = vmatprep.subr.mxu0 0.0
        %988 = vmatpush2.msra.mxu0 0.0
        %989 = vmatprep.subr.mxu0 0.0
        %990 = vmatpush2.msra.mxu0 0.0
        %991 = vmatprep.subr.mxu0 0.0
        %992 = vmatpush2.msra.mxu0 0.0
        %993 = vmatprep.subr.mxu0 0.0
        %994 = vmatpush2.msra.mxu0 0.0
        %995 = vmatprep.mubr.f32.mxu0 0.0
        %996 = vmatmul.mubr.f32.gmra.mxu0 %v929
        %v997 = vpop.f32.mrf.mxu0
        %v998 = vadd.f32 0.0, %v997
        %v999 = vpop.f32.mrf.mxu0
        %1000 = vdwg.mxu0
        %v1001 = vadd.f32 %v928, %v998
        %v1002 = vxor.u32 %v1001, 2147483648
        %v1003 = vmul.f32 %v1002, 1.442695
        %v1004 = vpow.pop %v1003
        %v1005 = vadd.f32 %v1004, 1.0
        %v1006 = vrcp.pop %v1005
        %v1007 = vmul.f32 1.0, %v1006
        %v1008 = vtanh.pop %v1001
        %v1009 = vmul.f32 %v1007, %v912
        %1011 = vrot.lane.b32.xlu0 %v1008, 64
        %v1012 = vpop.permute.xlu0 %1011
        %v1014 = vmul.f32 %v1007, %v1012
        %1016 = vrot.lane.b32.xlu0 %v1014, 32
        %v1017 = vpop.permute.xlu0 %1016
        %v1019 = vadd.f32 %v1009, %v1017
        %v1020 = vtanh.pop %v1019
        %1022 = vrot.lane.b32.xlu0 %v1020, 64
        %v1023 = vpop.permute.xlu0 %1022
        %v1025 = vmul.f32 %v1007, %v1023
        %1027 = vrot.lane.b32.xlu0 %v1025, 32
        %v1028 = vpop.permute.xlu0 %1027
        %s1030 = scalar_lea.vmem %s244, %s926 [#allocation3]
        %1031 = vst.msk [vmem:[%s1030] sm:$0x3] %vm495, %v1028
        %s1032 = scalar_select %p386, 1, 6
        %s1033 = smul.u32 %s1032, 2
        %s1034 = scalar_lea.vmem [#allocation2], %s1033
        %v1035 = vld [vmem:[%s1034] sm:$0x3]
        %v1036 = vsel %vm391, %v1028, 0
        %1038 = vmatprep.subr.mxu0 0.0
        %1039 = vmatpush1.msra.mxu0 0.0
        %1040 = vmatprep.subr.mxu0 0.0
        %1041 = vmatpush1.msra.mxu0 0.0
        %1042 = vmatprep.subr.mxu0 0.0
        %1043 = vmatpush1.msra.mxu0 0.0
        %1044 = vmatprep.subr.mxu0 0.0
        %1045 = vmatpush1.msra.mxu0 0.0
        %1046 = vmatprep.subr.mxu0 0.0
        %1047 = vmatpush1.msra.mxu0 0.0
        %1048 = vmatprep.subr.mxu0 0.0
        %1049 = vmatpush1.msra.mxu0 0.0
        %1050 = vmatprep.subr.mxu0 0.0
        %1051 = vmatpush1.msra.mxu0 0.0
        %1052 = vmatprep.subr.mxu0 0.0
        %1053 = vmatpush1.msra.mxu0 0.0
        %1054 = vmatprep.subr.mxu0 0.0
        %1055 = vmatpush1.msra.mxu0 0.0
        %1056 = vmatprep.subr.mxu0 0.0
        %1057 = vmatpush1.msra.mxu0 0.0
        %1058 = vmatprep.subr.mxu0 0.0
        %1059 = vmatpush1.msra.mxu0 0.0
        %1060 = vmatprep.subr.mxu0 0.0
        %1061 = vmatpush1.msra.mxu0 0.0
        %1062 = vmatprep.subr.mxu0 0.0
        %1063 = vmatpush1.msra.mxu0 %v385
        %1064 = vmatprep.subr.mxu0 0.0
        %1065 = vmatpush1.msra.mxu0 %v384
        %1066 = vmatprep.subr.mxu0 0.0
        %1067 = vmatpush1.msra.mxu0 %v383
        %1068 = vmatprep.subr.mxu0 0.0
        %1069 = vmatpush1.msra.mxu0 %v382
        %1070 = vmatprep.subr.mxu0 0.0
        %1071 = vmatpush2.msra.mxu0 0.0
        %1072 = vmatprep.subr.mxu0 0.0
        %1073 = vmatpush2.msra.mxu0 0.0
        %1074 = vmatprep.subr.mxu0 0.0
        %1075 = vmatpush2.msra.mxu0 0.0
        %1076 = vmatprep.subr.mxu0 0.0
        %1077 = vmatpush2.msra.mxu0 0.0
        %1078 = vmatprep.subr.mxu0 0.0
        %1079 = vmatpush2.msra.mxu0 0.0
        %1080 = vmatprep.subr.mxu0 0.0
        %1081 = vmatpush2.msra.mxu0 0.0
        %1082 = vmatprep.subr.mxu0 0.0
        %1083 = vmatpush2.msra.mxu0 0.0
        %1084 = vmatprep.subr.mxu0 0.0
        %1085 = vmatpush2.msra.mxu0 0.0
        %1086 = vmatprep.subr.mxu0 0.0
        %1087 = vmatpush2.msra.mxu0 0.0
        %1088 = vmatprep.subr.mxu0 0.0
        %1089 = vmatpush2.msra.mxu0 0.0
        %1090 = vmatprep.subr.mxu0 0.0
        %1091 = vmatpush2.msra.mxu0 0.0
        %1092 = vmatprep.subr.mxu0 0.0
        %1093 = vmatpush2.msra.mxu0 0.0
        %1094 = vmatprep.subr.mxu0 0.0
        %1095 = vmatpush2.msra.mxu0 0.0
        %1096 = vmatprep.subr.mxu0 0.0
        %1097 = vmatpush2.msra.mxu0 0.0
        %1098 = vmatprep.subr.mxu0 0.0
        %1099 = vmatpush2.msra.mxu0 0.0
        %1100 = vmatprep.subr.mxu0 0.0
        %1101 = vmatpush2.msra.mxu0 0.0
        %1102 = vmatprep.mubr.f32.mxu0 0.0
        %1103 = vmatmul.mubr.f32.gmra.mxu0 %v1036
        %v1104 = vpop.f32.mrf.mxu0
        %v1105 = vadd.f32 0.0, %v1104
        %v1106 = vpop.f32.mrf.mxu0
        %1107 = vdwg.mxu0
        %v1108 = vadd.f32 %v1035, %v1105
        %v1109 = vxor.u32 %v1108, 2147483648
        %v1110 = vmul.f32 %v1109, 1.442695
        %v1111 = vpow.pop %v1110
        %v1112 = vadd.f32 %v1111, 1.0
        %v1113 = vrcp.pop %v1112
        %v1114 = vmul.f32 1.0, %v1113
        %v1115 = vtanh.pop %v1108
        %v1116 = vmul.f32 %v1114, %v1019
        %1118 = vrot.lane.b32.xlu0 %v1115, 64
        %v1119 = vpop.permute.xlu0 %1118
        %v1121 = vmul.f32 %v1114, %v1119
        %1123 = vrot.lane.b32.xlu0 %v1121, 32
        %v1124 = vpop.permute.xlu0 %1123
        %v1126 = vadd.f32 %v1116, %v1124
        %v1127 = vtanh.pop %v1126
        %1129 = vrot.lane.b32.xlu0 %v1127, 64
        %v1130 = vpop.permute.xlu0 %1129
        %v1132 = vmul.f32 %v1114, %v1130
        %1134 = vrot.lane.b32.xlu0 %v1132, 32
        %v1135 = vpop.permute.xlu0 %1134
        %s1137 = scalar_lea.vmem %s244, %s1033 [#allocation3]
        %1138 = vst.msk [vmem:[%s1137] sm:$0x3] %vm495, %v1135
        %s1139 = scalar_select %p386, 0, 7
        %s1140 = smul.u32 %s1139, 2
        %s1141 = scalar_lea.vmem [#allocation2], %s1140
        %v1142 = vld [vmem:[%s1141] sm:$0x3]
        %v1143 = vsel %vm391, %v1135, 0
        %1145 = vmatprep.subr.mxu0 0.0
        %1146 = vmatpush1.msra.mxu0 0.0
        %1147 = vmatprep.subr.mxu0 0.0
        %1148 = vmatpush1.msra.mxu0 0.0
        %1149 = vmatprep.subr.mxu0 0.0
        %1150 = vmatpush1.msra.mxu0 0.0
        %1151 = vmatprep.subr.mxu0 0.0
        %1152 = vmatpush1.msra.mxu0 0.0
        %1153 = vmatprep.subr.mxu0 0.0
        %1154 = vmatpush1.msra.mxu0 0.0
        %1155 = vmatprep.subr.mxu0 0.0
        %1156 = vmatpush1.msra.mxu0 0.0
        %1157 = vmatprep.subr.mxu0 0.0
        %1158 = vmatpush1.msra.mxu0 0.0
        %1159 = vmatprep.subr.mxu0 0.0
        %1160 = vmatpush1.msra.mxu0 0.0
        %1161 = vmatprep.subr.mxu0 0.0
        %1162 = vmatpush1.msra.mxu0 0.0
        %1163 = vmatprep.subr.mxu0 0.0
        %1164 = vmatpush1.msra.mxu0 0.0
        %1165 = vmatprep.subr.mxu0 0.0
        %1166 = vmatpush1.msra.mxu0 0.0
        %1167 = vmatprep.subr.mxu0 0.0
        %1168 = vmatpush1.msra.mxu0 0.0
        %1169 = vmatprep.subr.mxu0 0.0
        %1170 = vmatpush1.msra.mxu0 %v385
        %1171 = vmatprep.subr.mxu0 0.0
        %1172 = vmatpush1.msra.mxu0 %v384
        %1173 = vmatprep.subr.mxu0 0.0
        %1174 = vmatpush1.msra.mxu0 %v383
        %1175 = vmatprep.subr.mxu0 0.0
        %1176 = vmatpush1.msra.mxu0 %v382
        %1177 = vmatprep.subr.mxu0 0.0
        %1178 = vmatpush2.msra.mxu0 0.0
        %1179 = vmatprep.subr.mxu0 0.0
        %1180 = vmatpush2.msra.mxu0 0.0
        %1181 = vmatprep.subr.mxu0 0.0
        %1182 = vmatpush2.msra.mxu0 0.0
        %1183 = vmatprep.subr.mxu0 0.0
        %1184 = vmatpush2.msra.mxu0 0.0
        %1185 = vmatprep.subr.mxu0 0.0
        %1186 = vmatpush2.msra.mxu0 0.0
        %1187 = vmatprep.subr.mxu0 0.0
        %1188 = vmatpush2.msra.mxu0 0.0
        %1189 = vmatprep.subr.mxu0 0.0
        %1190 = vmatpush2.msra.mxu0 0.0
        %1191 = vmatprep.subr.mxu0 0.0
        %1192 = vmatpush2.msra.mxu0 0.0
        %1193 = vmatprep.subr.mxu0 0.0
        %1194 = vmatpush2.msra.mxu0 0.0
        %1195 = vmatprep.subr.mxu0 0.0
        %1196 = vmatpush2.msra.mxu0 0.0
        %1197 = vmatprep.subr.mxu0 0.0
        %1198 = vmatpush2.msra.mxu0 0.0
        %1199 = vmatprep.subr.mxu0 0.0
        %1200 = vmatpush2.msra.mxu0 0.0
        %1201 = vmatprep.subr.mxu0 0.0
        %1202 = vmatpush2.msra.mxu0 0.0
        %1203 = vmatprep.subr.mxu0 0.0
        %1204 = vmatpush2.msra.mxu0 0.0
        %1205 = vmatprep.subr.mxu0 0.0
        %1206 = vmatpush2.msra.mxu0 0.0
        %1207 = vmatprep.subr.mxu0 0.0
        %1208 = vmatpush2.msra.mxu0 0.0
        %1209 = vmatprep.mubr.f32.mxu0 0.0
        %1210 = vmatmul.mubr.f32.gmra.mxu0 %v1143
        %v1211 = vpop.f32.mrf.mxu0
        %v1212 = vadd.f32 0.0, %v1211
        %v1213 = vpop.f32.mrf.mxu0
        %1214 = vdwg.mxu0
        %v1215 = vadd.f32 %v1142, %v1212
        %v1216 = vxor.u32 %v1215, 2147483648
        %v1217 = vmul.f32 %v1216, 1.442695
        %v1218 = vpow.pop %v1217
        %v1219 = vadd.f32 %v1218, 1.0
        %v1220 = vrcp.pop %v1219
        %v1221 = vmul.f32 1.0, %v1220
        %v1222 = vtanh.pop %v1215
        %v1223 = vmul.f32 %v1221, %v1126
        %1225 = vrot.lane.b32.xlu0 %v1222, 64
        %v1226 = vpop.permute.xlu0 %1225
        %v1228 = vmul.f32 %v1221, %v1226
        %1230 = vrot.lane.b32.xlu0 %v1228, 32
        %v1231 = vpop.permute.xlu0 %1230
        %v1233 = vadd.f32 %v1223, %v1231
        %v1234 = vtanh.pop %v1233
        %1236 = vrot.lane.b32.xlu0 %v1234, 64
        %v1237 = vpop.permute.xlu0 %1236
        %v1239 = vmul.f32 %v1221, %v1237
        %1241 = vrot.lane.b32.xlu0 %v1239, 32
        %v1242 = vpop.permute.xlu0 %1241
        %s1244 = scalar_lea.vmem %s244, %s1140 [#allocation3]
        %1245 = vst.msk [vmem:[%s1244] sm:$0x3] %vm495, %v1242
        %1246 = vst.msk [vmem:[%s267] sm:$0x3] %vm495, %v1242
        %s1247 = sand.u32 %s127, 1
        %s1248 = scalar_lea.sflag [#allocation4], %s1247
        %s1249 = sand.u32 %s127, 1
        %s1250 = smul.addr %s1249, 16
        %s1251 = scalar_lea.vmem [#allocation3], %s1250
        %p1252 = scmp.lt.s32.totalorder %s20, 1
        %s1253 = scalar_select %p1252, %s20, 1
        %s1254 = smul.addr %s1253, 2
        %s1255 = scalar_lea.vmem %s5, %s1254
        // Predicated region
        $region37: #{model_forward.4} parent=35 // pred_check
          %p1256 = pneg %p137
        $region38: #{model_forward.4} parent=35 // pred_check_branch
          %1258 = sbr.rel (%p1256) target = $region40
        $region39: #{model_forward.4} parent=35 // pred_region
          %s1260 = ssub.s32 256, 256
          %1261 = vsyncadd %s1248, %s1260
          %s1262 = smul.addr %s20, 8
          %s1263 = smul.addr %s1262, 32
          %s1264 = scalar_lea.hbm %s4, %s1263
          %s1265 = sshll.u32 %s1251, 4
          %s1266 = int_to_ptr.vmem [resolvable:$true] %s1265
          %1271 = dma.vmem_to_hbm [thread:$0]  %s1266, 256, %s1264, %s1248, 32, 32, 2
        $region40: #{model_forward.4} parent=35 // pred_fallthru
          _
        // Predicated region
        $region41: #{model_forward.4} parent=35 // pred_check
          %p1272 = pneg %p163
        $region42: #{model_forward.4} parent=35 // pred_check_branch
          %1274 = sbr.rel (%p1272) target = $region44
        $region43: #{model_forward.4} parent=35 // pred_region
          _
        $region44: #{model_forward.4} parent=35 // pred_fallthru
          _
      $region36: #{model_forward.4} parent=5 // pred_fallthru
        _
      %p1275 = scmp.le.s32.totalorder 2, %s15
      // Predicated region
      $region45: #{model_forward.4} parent=5 // pred_check
        %p1276 = pneg %p1275
      $region46: #{model_forward.4} parent=5 // pred_check_branch
        %1278 = sbr.rel (%p1276) target = $region48
      $region47: #{model_forward.4} parent=5 // pred_region
        %s1279 = ssub.s32 %s15, 2
        // Predicated region
        $region49: #{model_forward.4} parent=47 // pred_check
          %p1280 = pneg %p143
        $region50: #{model_forward.4} parent=47 // pred_check_branch
          %1282 = sbr.rel (%p1280) target = $region52
        $region51: #{model_forward.4} parent=47 // pred_region
          %s1283 = sand.u32 %s128, 1
          %s1284 = scalar_lea.sflag [#allocation4], %s1283
          %s1285 = sand.u32 %s128, 1
          %s1286 = smul.addr %s1285, 16
          %s1287 = scalar_lea.vmem [#allocation3], %s1286
          %1288 = dma.done %s1284, 256
        $region52: #{model_forward.4} parent=47 // pred_fallthru
          _
        // Predicated region
        $region53: #{model_forward.4} parent=47 // pred_check
          %p1289 = pneg %p169
        $region54: #{model_forward.4} parent=47 // pred_check_branch
          %1291 = sbr.rel (%p1289) target = $region56
        $region55: #{model_forward.4} parent=47 // pred_region
          %p1292 = scmp.lt.s32.totalorder %s21, 1
          %s1293 = scalar_select %p1292, %s21, 1
          %s1294 = smul.addr %s1293, 2
          %s1295 = scalar_lea.vmem %s5, %s1294
        $region56: #{model_forward.4} parent=47 // pred_fallthru
          _
      $region48: #{model_forward.4} parent=5 // pred_fallthru
        _
    $region6: #{model_forward.4} parent=1 // loop_footer
      %s19 = sadd.s32 1, %s15
    $region7: #{model_forward.4} parent=1 // loop_footer_branch
      %14 = sbr.rel target = $region3
    $region8: #{model_forward.4} parent=1 // loop_exit
      _
    %1296 = vsyncpa [#allocation4], 1
    %s1297 = scalar_lea.sflag [#allocation4], 1
    %1298 = vsyncpa %s1297, 1

// kernel: model_forward.3
$region0: #{model_forward.3}
  #allocation0 [shape = 'u32[]', space=smem, size = 0x4, offset = 0x4, fixed_abs, tag = 'smem constant byte address 0x4 - core index']
  #allocation1 [shape = 'u32[144,128]{1,0:T(1,128)}', space=vmem, size = 0x12000, scoped, tag = 'internal scratch']
  #allocation2 [shape = 'f32[8,2,128]{2,1,0:T(2,128)}', space=vmem, size = 0x2000, scoped, tag = 'scratch operand']
  %s0 = inlined_call_operand.vmem [shape: f32[16,16], index: 0, kind: input, shape index: {}]
  %s1 = inlined_call_operand.vmem [shape: f32[2,16,128], index: 1, kind: input, shape index: {}]
  %s2 = inlined_call_operand.vmem [shape: f32[2,32,128], index: 2, kind: input, shape index: {}]
  %s3 = inlined_call_operand.vmem [shape: f32[2,1,128], index: 3, kind: input, shape index: {}]
  %s4 = inlined_call_operand.vmem [shape: f32[2,8,2,32], index: 4, kind: output, shape index: {0}]
  %s5 = inlined_call_operand.vmem [shape: f32[2,2,32], index: 5, kind: output, shape index: {1}]
  %6 = xla_tuple %s4, %s5
  %s7 = sld [smem:[#allocation0]]
  $region57: #{model_forward.3} parent=0
    _
  %s9 = ssub.s32 1, %s7
  %s10 = scalar_select 0, %s9, %s7
  loop: start=0, step=1, limit=4
  $region2: #{model_forward.3} parent=0 // loop_pre_header
    _
  $region3: #{model_forward.3} parent=0 // loop_header
    %s12 = sphi 0, %s16
    %p13 = scmp.ge.s32.totalorder %s12, 4
    %s20 = sphi 0, %s20
    %s22 = sphi 0, %s20
    %s23 = sphi 0, %s22
    %s37 = sphi 0, %s23
    %s43 = sphi 0, %s45
    %s46 = sphi 0, %s43
    %s47 = sphi 0, %s46
    %s63 = sphi 0, %s47
    %s69 = sphi 0, %s71
    %s72 = sphi 0, %s69
    %s73 = sphi 0, %s72
    %s89 = sphi 0, %s73
    %s95 = sphi 0, %s97
    %s98 = sphi 0, %s95
    %s99 = sphi 0, %s98
    %s115 = sphi 0, %s99
    %s121 = sphi 0, %s123
    %s124 = sphi 0, %s121
    %s125 = sphi 0, %s124
    %s141 = sphi 0, %s125
    %s147 = sphi 0, %s149
    %s150 = sphi 0, %s147
    %s151 = sphi 0, %s150
    %s167 = sphi 0, %s151
  $region4: #{model_forward.3} parent=0 // loop_header_branch
    %15 = sbr.rel (%p13) target = $region8
  $region5: #{model_forward.3} parent=0 // loop_body
    %s17 = ssub.s32 %s12, 1
    %s18 = ssub.s32 %s12, 2
    %s19 = sadd.s32 %s12, 1
    %s21 = sadd.s32 %s20, 1
    %p24 = scmp.eq.s32.totalorder %s12, 1
    %p25 = scmp.ne.s32.totalorder %s20, %s22
    %p26 = scmp.eq.s32.totalorder %s12, 0
    %p27 = por %p25, %p26
    %p28 = scmp.ne.s32.totalorder %s20, %s22
    %p29 = scmp.eq.s32.totalorder %s17, 1
    %p30 = por %p28, %p29
    %p31 = scmp.ne.s32.totalorder %s22, %s23
    %p32 = scmp.eq.s32.totalorder %s17, 0
    %p33 = por %p31, %p32
    %p34 = scmp.ne.s32.totalorder %s22, %s23
    %p35 = scmp.eq.s32.totalorder %s18, 1
    %p36 = por %p34, %p35
    %p38 = scmp.ne.s32.totalorder %s23, %s37
    %p39 = scmp.eq.s32.totalorder %s18, 0
    %p40 = por %p38, %p39
    %s41 = ssub.s32 %s12, %s19
    %p42 = scmp.eq.s32.totalorder %s41, 0
    %s44 = sadd.s32 %s43, 1
    %s45 = scalar_select %p42, %s43, %s44
    %p48 = pneg %p42
    %p49 = scmp.eq.s32.totalorder %s12, 1
    %p50 = por %p48, %p49
    %p51 = scmp.ne.s32.totalorder %s43, %s46
    %p52 = scmp.eq.s32.totalorder %s12, 0
    %p53 = por %p51, %p52
    %p54 = scmp.ne.s32.totalorder %s43, %s46
    %p55 = scmp.eq.s32.totalorder %s17, 1
    %p56 = por %p54, %p55
    %p57 = scmp.ne.s32.totalorder %s46, %s47
    %p58 = scmp.eq.s32.totalorder %s17, 0
    %p59 = por %p57, %p58
    %p60 = scmp.ne.s32.totalorder %s46, %s47
    %p61 = scmp.eq.s32.totalorder %s18, 1
    %p62 = por %p60, %p61
    %p64 = scmp.ne.s32.totalorder %s47, %s63
    %p65 = scmp.eq.s32.totalorder %s18, 0
    %p66 = por %p64, %p65
    %s67 = ssub.s32 %s12, %s19
    %p68 = scmp.eq.s32.totalorder %s67, 0
    %s70 = sadd.s32 %s69, 1
    %s71 = scalar_select %p68, %s69, %s70
    %p74 = pneg %p68
    %p75 = scmp.eq.s32.totalorder %s12, 1
    %p76 = por %p74, %p75
    %p77 = scmp.ne.s32.totalorder %s69, %s72
    %p78 = scmp.eq.s32.totalorder %s12, 0
    %p79 = por %p77, %p78
    %p80 = scmp.ne.s32.totalorder %s69, %s72
    %p81 = scmp.eq.s32.totalorder %s17, 1
    %p82 = por %p80, %p81
    %p83 = scmp.ne.s32.totalorder %s72, %s73
    %p84 = scmp.eq.s32.totalorder %s17, 0
    %p85 = por %p83, %p84
    %p86 = scmp.ne.s32.totalorder %s72, %s73
    %p87 = scmp.eq.s32.totalorder %s18, 1
    %p88 = por %p86, %p87
    %p90 = scmp.ne.s32.totalorder %s73, %s89
    %p91 = scmp.eq.s32.totalorder %s18, 0
    %p92 = por %p90, %p91
    %s93 = ssub.s32 %s12, %s19
    %p94 = scmp.eq.s32.totalorder %s93, 0
    %s96 = sadd.s32 %s95, 1
    %s97 = scalar_select %p94, %s95, %s96
    %p100 = pneg %p94
    %p101 = scmp.eq.s32.totalorder %s12, 1
    %p102 = por %p100, %p101
    %p103 = scmp.ne.s32.totalorder %s95, %s98
    %p104 = scmp.eq.s32.totalorder %s12, 0
    %p105 = por %p103, %p104
    %p106 = scmp.ne.s32.totalorder %s95, %s98
    %p107 = scmp.eq.s32.totalorder %s17, 1
    %p108 = por %p106, %p107
    %p109 = scmp.ne.s32.totalorder %s98, %s99
    %p110 = scmp.eq.s32.totalorder %s17, 0
    %p111 = por %p109, %p110
    %p112 = scmp.ne.s32.totalorder %s98, %s99
    %p113 = scmp.eq.s32.totalorder %s18, 1
    %p114 = por %p112, %p113
    %p116 = scmp.ne.s32.totalorder %s99, %s115
    %p117 = scmp.eq.s32.totalorder %s18, 0
    %p118 = por %p116, %p117
    %s119 = ssub.s32 %s12, %s19
    %p120 = scmp.eq.s32.totalorder %s119, 0
    %s122 = sadd.s32 %s121, 1
    %s123 = scalar_select %p120, %s121, %s122
    %p126 = pneg %p120
    %p127 = scmp.eq.s32.totalorder %s12, 1
    %p128 = por %p126, %p127
    %p129 = scmp.ne.s32.totalorder %s121, %s124
    %p130 = scmp.eq.s32.totalorder %s12, 0
    %p131 = por %p129, %p130
    %p132 = scmp.ne.s32.totalorder %s121, %s124
    %p133 = scmp.eq.s32.totalorder %s17, 1
    %p134 = por %p132, %p133
    %p135 = scmp.ne.s32.totalorder %s124, %s125
    %p136 = scmp.eq.s32.totalorder %s17, 0
    %p137 = por %p135, %p136
    %p138 = scmp.ne.s32.totalorder %s124, %s125
    %p139 = scmp.eq.s32.totalorder %s18, 1
    %p140 = por %p138, %p139
    %p142 = scmp.ne.s32.totalorder %s125, %s141
    %p143 = scmp.eq.s32.totalorder %s18, 0
    %p144 = por %p142, %p143
    %s145 = ssub.s32 %s12, %s19
    %p146 = scmp.eq.s32.totalorder %s145, 0
    %s148 = sadd.s32 %s147, 1
    %s149 = scalar_select %p146, %s147, %s148
    %p152 = pneg %p146
    %p153 = scmp.eq.s32.totalorder %s12, 1
    %p154 = por %p152, %p153
    %p155 = scmp.ne.s32.totalorder %s147, %s150
    %p156 = scmp.eq.s32.totalorder %s12, 0
    %p157 = por %p155, %p156
    %p158 = scmp.ne.s32.totalorder %s147, %s150
    %p159 = scmp.eq.s32.totalorder %s17, 1
    %p160 = por %p158, %p159
    %p161 = scmp.ne.s32.totalorder %s150, %s151
    %p162 = scmp.eq.s32.totalorder %s17, 0
    %p163 = por %p161, %p162
    %p164 = scmp.ne.s32.totalorder %s150, %s151
    %p165 = scmp.eq.s32.totalorder %s18, 1
    %p166 = por %p164, %p165
    %p168 = scmp.ne.s32.totalorder %s151, %s167
    %p169 = scmp.eq.s32.totalorder %s18, 0
    %p170 = por %p168, %p169
    %p171 = scmp.le.s32.totalorder 1, %s12
    %p172 = scmp.lt.s32.totalorder %s12, 3
    %p173 = pnand %p171, %p172
    %p174 = pneg %p173
    // Predicated region
    $region9: #{model_forward.3} parent=5 // pred_check
      _
    $region10: #{model_forward.3} parent=5 // pred_check_branch
      %176 = sbr.rel (%p173) target = $region12
    $region11: #{model_forward.3} parent=5 // pred_region
      %s177 = ssub.s32 %s12, 1
      // Predicated region
      $region13: #{model_forward.3} parent=11 // pred_check
        %p178 = pneg %p33
      $region14: #{model_forward.3} parent=11 // pred_check_branch
        %180 = sbr.rel (%p178) target = $region16
      $region15: #{model_forward.3} parent=11 // pred_region
        _
      $region16: #{model_forward.3} parent=11 // pred_fallthru
        _
    $region12: #{model_forward.3} parent=5 // pred_fallthru
      _
    %p181 = scmp.lt.s32.totalorder %s12, 2
    // Predicated region
    $region17: #{model_forward.3} parent=5 // pred_check
      %p182 = pneg %p181
    $region18: #{model_forward.3} parent=5 // pred_check_branch
      %184 = sbr.rel (%p182) target = $region20
    $region19: #{model_forward.3} parent=5 // pred_region
      // Predicated region
      $region21: #{model_forward.3} parent=19 // pred_check
        %p185 = pneg %p53
      $region22: #{model_forward.3} parent=19 // pred_check_branch
        %187 = sbr.rel (%p185) target = $region24
      $region23: #{model_forward.3} parent=19 // pred_region
        %p188 = scmp.lt.s32.totalorder %s12, 1
        %s189 = scalar_select %p188, %s12, 1
        %s190 = smul.addr %s189, 2
        %s191 = smul.addr %s190, 8
        %s192 = scalar_lea.vmem %s1, %s191
      $region24: #{model_forward.3} parent=19 // pred_fallthru
        _
      // Predicated region
      $region25: #{model_forward.3} parent=19 // pred_check
        %p193 = pneg %p79
      $region26: #{model_forward.3} parent=19 // pred_check_branch
        %195 = sbr.rel (%p193) target = $region28
      $region27: #{model_forward.3} parent=19 // pred_region
        %p196 = scmp.lt.s32.totalorder %s12, 1
        %s197 = scalar_select %p196, %s12, 1
        %s198 = smul.addr %s197, 4
        %s199 = smul.addr %s198, 8
        %s200 = scalar_lea.vmem %s2, %s199
      $region28: #{model_forward.3} parent=19 // pred_fallthru
        _
      // Predicated region
      $region29: #{model_forward.3} parent=19 // pred_check
        %p201 = pneg %p105
      $region30: #{model_forward.3} parent=19 // pred_check_branch
        %203 = sbr.rel (%p201) target = $region32
      $region31: #{model_forward.3} parent=19 // pred_region
        %p204 = scmp.lt.s32.totalorder %s12, 1
        %s205 = scalar_select %p204, %s12, 1
        %s206 = scalar_lea.vmem %s3, %s205
      $region32: #{model_forward.3} parent=19 // pred_fallthru
        _
    $region20: #{model_forward.3} parent=5 // pred_fallthru
      _
    %p207 = scmp.le.s32.totalorder 1, %s12
    %p208 = scmp.lt.s32.totalorder %s12, 3
    %p209 = pnand %p207, %p208
    %p210 = pneg %p209
    // Predicated region
    $region33: #{model_forward.3} parent=5 // pred_check
      _
    $region34: #{model_forward.3} parent=5 // pred_check_branch
      %212 = sbr.rel (%p209) target = $region36
    $region35: #{model_forward.3} parent=5 // pred_region
      %s213 = ssub.s32 %s12, 1
      %p214 = pneg %p33
      %p215 = pneg %p30
      %p216 = scmp.lt.s32.totalorder %s17, 1
      %s217 = scalar_select %p216, %s17, 1
      %s218 = smul.addr %s217, 2
      %s219 = smul.addr %s218, 8
      %s220 = scalar_lea.vmem %s1, %s219
      %p221 = pneg %p59
      %p222 = pneg %p56
      %p223 = scmp.lt.s32.totalorder %s17, 1
      %s224 = scalar_select %p223, %s17, 1
      %s225 = smul.addr %s224, 4
      %s226 = smul.addr %s225, 8
      %s227 = scalar_lea.vmem %s2, %s226
      %p228 = pneg %p85
      %p229 = pneg %p82
      %p230 = scmp.lt.s32.totalorder %s17, 1
      %s231 = scalar_select %p230, %s17, 1
      %s232 = scalar_lea.vmem %s3, %s231
      %p233 = pneg %p111
      %p234 = pneg %p108
      %p235 = pneg %p137
      %p236 = pneg %p134
      %p237 = scmp.lt.s32.totalorder %s17, 1
      %s238 = scalar_select %p237, %s17, 1
      %s239 = smul.addr %s238, 8
      %s240 = smul.addr %s239, 2
      %s241 = scalar_lea.vmem %s4, %s240
      %p242 = pneg %p163
      %p243 = pneg %p160
      %p244 = scmp.lt.s32.totalorder %s17, 1
      %s245 = scalar_select %p244, %s17, 1
      %s246 = smul.addr %s245, 2
      %s247 = scalar_lea.vmem %s5, %s246
      %p248 = scmp.lt.s32.totalorder %s17, 1
      %s249 = scalar_select %p248, %s17, 1
      %s250 = smul.addr %s249, 2
      %s251 = smul.addr %s250, 8
      %s252 = scalar_lea.vmem %s1, %s251
      %p253 = scmp.lt.s32.totalorder %s17, 1
      %s254 = scalar_select %p253, %s17, 1
      %s255 = smul.addr %s254, 4
      %s256 = smul.addr %s255, 8
      %s257 = scalar_lea.vmem %s2, %s256
      %p258 = scmp.lt.s32.totalorder %s17, 1
      %s259 = scalar_select %p258, %s17, 1
      %s260 = scalar_lea.vmem %s3, %s259
      %p261 = scmp.lt.s32.totalorder %s17, 1
      %s262 = scalar_select %p261, %s17, 1
      %s263 = smul.addr %s262, 8
      %s264 = smul.addr %s263, 2
      %s265 = scalar_lea.vmem %s4, %s264
      %p266 = scmp.lt.s32.totalorder %s17, 1
      %s267 = scalar_select %p266, %s17, 1
      %s268 = smul.addr %s267, 2
      %s269 = scalar_lea.vmem %s5, %s268
      %v270 = vld [vmem:[%s0] sm:$0xff]
      %v271 = vld [vmem:[%s0 + $0x8] sm:$0xff]
      %v272 = vld [vmem:[%s252] sm:$0xff]
      %v273 = vld [vmem:[%s252 + $0x8] sm:$0xff]
      %v274 = vld [vmem:[%s260] sm:$0x1]
      %v276 = vlaneseq
      %v277 = vshrl.u32 %v276, 7
      %v278 = vsub.s32 0, %v277
      %v279 = vrot.slane %v274, %v278
      %vm281 = vcmask 130048
      %v283 = vsel %vm281, %v270, 0
      %v286 = vsel %vm281, %v271, 0
      %288 = vmatprep.subr.mxu0 0.0
      %289 = vmatpush1.msra.mxu0 0.0
      %290 = vmatprep.subr.mxu0 0.0
      %291 = vmatpush1.msra.mxu0 0.0
      %292 = vmatprep.subr.mxu0 0.0
      %293 = vmatpush1.msra.mxu0 0.0
      %294 = vmatprep.subr.mxu0 0.0
      %295 = vmatpush1.msra.mxu0 0.0
      %296 = vmatprep.subr.mxu0 0.0
      %297 = vmatpush1.msra.mxu0 0.0
      %298 = vmatprep.subr.mxu0 0.0
      %299 = vmatpush1.msra.mxu0 0.0
      %300 = vmatprep.subr.mxu0 0.0
      %301 = vmatpush1.msra.mxu0 0.0
      %302 = vmatprep.subr.mxu0 0.0
      %303 = vmatpush1.msra.mxu0 0.0
      %304 = vmatprep.subr.mxu0 0.0
      %305 = vmatpush1.msra.mxu0 0.0
      %306 = vmatprep.subr.mxu0 0.0
      %307 = vmatpush1.msra.mxu0 0.0
      %308 = vmatprep.subr.mxu0 0.0
      %309 = vmatpush1.msra.mxu0 0.0
      %310 = vmatprep.subr.mxu0 0.0
      %311 = vmatpush1.msra.mxu0 0.0
      %312 = vmatprep.subr.mxu0 0.0
      %313 = vmatpush1.msra.mxu0 0.0
      %314 = vmatprep.subr.mxu0 0.0
      %315 = vmatpush1.msra.mxu0 0.0
      %316 = vmatprep.subr.mxu0 0.0
      %317 = vmatpush1.msra.mxu0 %v273
      %318 = vmatprep.subr.mxu0 0.0
      %319 = vmatpush1.msra.mxu0 %v272
      %320 = vmatprep.subr.mxu0 0.0
      %321 = vmatpush2.msra.mxu0 0.0
      %322 = vmatprep.subr.mxu0 0.0
      %323 = vmatpush2.msra.mxu0 0.0
      %324 = vmatprep.subr.mxu0 0.0
      %325 = vmatpush2.msra.mxu0 0.0
      %326 = vmatprep.subr.mxu0 0.0
      %327 = vmatpush2.msra.mxu0 0.0
      %328 = vmatprep.subr.mxu0 0.0
      %329 = vmatpush2.msra.mxu0 0.0
      %330 = vmatprep.subr.mxu0 0.0
      %331 = vmatpush2.msra.mxu0 0.0
      %332 = vmatprep.subr.mxu0 0.0
      %333 = vmatpush2.msra.mxu0 0.0
      %334 = vmatprep.subr.mxu0 0.0
      %335 = vmatpush2.msra.mxu0 0.0
      %336 = vmatprep.subr.mxu0 0.0
      %337 = vmatpush2.msra.mxu0 0.0
      %338 = vmatprep.subr.mxu0 0.0
      %339 = vmatpush2.msra.mxu0 0.0
      %340 = vmatprep.subr.mxu0 0.0
      %341 = vmatpush2.msra.mxu0 0.0
      %342 = vmatprep.subr.mxu0 0.0
      %343 = vmatpush2.msra.mxu0 0.0
      %344 = vmatprep.subr.mxu0 0.0
      %345 = vmatpush2.msra.mxu0 0.0
      %346 = vmatprep.subr.mxu0 0.0
      %347 = vmatpush2.msra.mxu0 0.0
      %348 = vmatprep.subr.mxu0 0.0
      %349 = vmatpush2.msra.mxu0 0.0
      %350 = vmatprep.subr.mxu0 0.0
      %351 = vmatpush2.msra.mxu0 0.0
      %352 = vmatprep.mubr.f32.mxu0 0.0
      %353 = vmatmul.mubr.f32.gmra.mxu0 %v283
      %v354 = vpop.f32.mrf.mxu0
      %v355 = vadd.f32 %v279, %v354
      %v356 = vpop.f32.mrf.mxu0
      %357 = vmatprep.mubr.f32.mxu0 0.0
      %358 = vmatmul.mubr.f32.gmra.mxu0 %v286
      %v359 = vpop.f32.mrf.mxu0
      %v360 = vadd.f32 %v279, %v359
      %v361 = vpop.f32.mrf.mxu0
      %362 = vdwg.mxu0
      %363 = vst [vmem:[#allocation2] sm:$0x3] %v355
      %s364 = scalar_lea.vmem [#allocation2], 2
      %365 = vst [vmem:[%s364 - $0x2] sm:$0xc] %v355
      %s366 = scalar_lea.vmem [#allocation2], 4
      %367 = vst [vmem:[%s366 - $0x4] sm:$0x30] %v355
      %s368 = scalar_lea.vmem [#allocation2], 6
      %369 = vst [vmem:[%s368 - $0x6] sm:$0xc0] %v355
      %s370 = scalar_lea.vmem [#allocation2], 8
      %371 = vst [vmem:[%s370] sm:$0x3] %v360
      %s372 = scalar_lea.vmem [#allocation2], 10
      %373 = vst [vmem:[%s372 - $0x2] sm:$0xc] %v360
      %s374 = scalar_lea.vmem [#allocation2], 12
      %375 = vst [vmem:[%s374 - $0x4] sm:$0x30] %v360
      %s376 = scalar_lea.vmem [#allocation2], 14
      %377 = vst [vmem:[%s376 - $0x6] sm:$0xc0] %v360
      %v378 = vld [vmem:[%s257] sm:$0xff]
      %v379 = vld [vmem:[%s257 + $0x8] sm:$0xff]
      %v380 = vld [vmem:[%s257 + $0x10] sm:$0xff]
      %v381 = vld [vmem:[%s257 + $0x18] sm:$0xff]
      %p382 = scmp.eq.s32.totalorder %s17, 1
      %s383 = scalar_select %p382, 7, 0
      %s384 = smul.u32 %s383, 2
      %s385 = scalar_lea.vmem [#allocation2], %s384
      %v386 = vld [vmem:[%s385] sm:$0x3]
      %vm387 = vcmask 261120
      %v389 = vsel %vm387, 0.0, 0
      %391 = vmatprep.subr.mxu0 0.0
      %392 = vmatpush1.msra.mxu0 0.0
      %393 = vmatprep.subr.mxu0 0.0
      %394 = vmatpush1.msra.mxu0 0.0
      %395 = vmatprep.subr.mxu0 0.0
      %396 = vmatpush1.msra.mxu0 0.0
      %397 = vmatprep.subr.mxu0 0.0
      %398 = vmatpush1.msra.mxu0 0.0
      %399 = vmatprep.subr.mxu0 0.0
      %400 = vmatpush1.msra.mxu0 0.0
      %401 = vmatprep.subr.mxu0 0.0
      %402 = vmatpush1.msra.mxu0 0.0
      %403 = vmatprep.subr.mxu0 0.0
      %404 = vmatpush1.msra.mxu0 0.0
      %405 = vmatprep.subr.mxu0 0.0
      %406 = vmatpush1.msra.mxu0 0.0
      %407 = vmatprep.subr.mxu0 0.0
      %408 = vmatpush1.msra.mxu0 0.0
      %409 = vmatprep.subr.mxu0 0.0
      %410 = vmatpush1.msra.mxu0 0.0
      %411 = vmatprep.subr.mxu0 0.0
      %412 = vmatpush1.msra.mxu0 0.0
      %413 = vmatprep.subr.mxu0 0.0
      %414 = vmatpush1.msra.mxu0 0.0
      %415 = vmatprep.subr.mxu0 0.0
      %416 = vmatpush1.msra.mxu0 %v381
      %417 = vmatprep.subr.mxu0 0.0
      %418 = vmatpush1.msra.mxu0 %v380
      %419 = vmatprep.subr.mxu0 0.0
      %420 = vmatpush1.msra.mxu0 %v379
      %421 = vmatprep.subr.mxu0 0.0
      %422 = vmatpush1.msra.mxu0 %v378
      %423 = vmatprep.subr.mxu0 0.0
      %424 = vmatpush2.msra.mxu0 0.0
      %425 = vmatprep.subr.mxu0 0.0
      %426 = vmatpush2.msra.mxu0 0.0
      %427 = vmatprep.subr.mxu0 0.0
      %428 = vmatpush2.msra.mxu0 0.0
      %429 = vmatprep.subr.mxu0 0.0
      %430 = vmatpush2.msra.mxu0 0.0
      %431 = vmatprep.subr.mxu0 0.0
      %432 = vmatpush2.msra.mxu0 0.0
      %433 = vmatprep.subr.mxu0 0.0
      %434 = vmatpush2.msra.mxu0 0.0
      %435 = vmatprep.subr.mxu0 0.0
      %436 = vmatpush2.msra.mxu0 0.0
      %437 = vmatprep.subr.mxu0 0.0
      %438 = vmatpush2.msra.mxu0 0.0
      %439 = vmatprep.subr.mxu0 0.0
      %440 = vmatpush2.msra.mxu0 0.0
      %441 = vmatprep.subr.mxu0 0.0
      %442 = vmatpush2.msra.mxu0 0.0
      %443 = vmatprep.subr.mxu0 0.0
      %444 = vmatpush2.msra.mxu0 0.0
      %445 = vmatprep.subr.mxu0 0.0
      %446 = vmatpush2.msra.mxu0 0.0
      %447 = vmatprep.subr.mxu0 0.0
      %448 = vmatpush2.msra.mxu0 0.0
      %449 = vmatprep.subr.mxu0 0.0
      %450 = vmatpush2.msra.mxu0 0.0
      %451 = vmatprep.subr.mxu0 0.0
      %452 = vmatpush2.msra.mxu0 0.0
      %453 = vmatprep.subr.mxu0 0.0
      %454 = vmatpush2.msra.mxu0 0.0
      %455 = vmatprep.mubr.f32.mxu0 0.0
      %456 = vmatmul.mubr.f32.gmra.mxu0 %v389
      %v457 = vpop.f32.mrf.mxu0
      %v458 = vadd.f32 0.0, %v457
      %v459 = vpop.f32.mrf.mxu0
      %460 = vdwg.mxu0
      %v461 = vadd.f32 %v386, %v458
      %v462 = vxor.u32 %v461, 2147483648
      %v463 = vmul.f32 %v462, 1.442695
      %v464 = vpow.pop %v463
      %v465 = vadd.f32 %v464, 1.0
      %v466 = vrcp.pop %v465
      %v467 = vmul.f32 1.0, %v466
      %v468 = vtanh.pop %v461
      %v469 = vmul.f32 %v467, 0.0
      %471 = vrot.lane.b32.xlu0 %v468, 64
      %v472 = vpop.permute.xlu0 %471
      %v474 = vmul.f32 %v467, %v472
      %476 = vrot.lane.b32.xlu0 %v474, 32
      %v477 = vpop.permute.xlu0 %476
      %v479 = vadd.f32 %v469, %v477
      %v480 = vtanh.pop %v479
      %482 = vrot.lane.b32.xlu0 %v480, 64
      %v483 = vpop.permute.xlu0 %482
      %v485 = vmul.f32 %v467, %v483
      %487 = vrot.lane.b32.xlu0 %v485, 32
      %v488 = vpop.permute.xlu0 %487
      %s490 = scalar_lea.vmem %s265, %s384
      %vm491 = vcmask 254976
      %492 = vst.msk [vmem:[%s490] sm:$0x3] %vm491, %v488
      %s493 = scalar_select %p382, 6, 1
      %s494 = smul.u32 %s493, 2
      %s495 = scalar_lea.vmem [#allocation2], %s494
      %v496 = vld [vmem:[%s495] sm:$0x3]
      %v497 = vsel %vm387, %v488, 0
      %499 = vmatprep.subr.mxu0 0.0
      %500 = vmatpush1.msra.mxu0 0.0
      %501 = vmatprep.subr.mxu0 0.0
      %502 = vmatpush1.msra.mxu0 0.0
      %503 = vmatprep.subr.mxu0 0.0
      %504 = vmatpush1.msra.mxu0 0.0
      %505 = vmatprep.subr.mxu0 0.0
      %506 = vmatpush1.msra.mxu0 0.0
      %507 = vmatprep.subr.mxu0 0.0
      %508 = vmatpush1.msra.mxu0 0.0
      %509 = vmatprep.subr.mxu0 0.0
      %510 = vmatpush1.msra.mxu0 0.0
      %511 = vmatprep.subr.mxu0 0.0
      %512 = vmatpush1.msra.mxu0 0.0
      %513 = vmatprep.subr.mxu0 0.0
      %514 = vmatpush1.msra.mxu0 0.0
      %515 = vmatprep.subr.mxu0 0.0
      %516 = vmatpush1.msra.mxu0 0.0
      %517 = vmatprep.subr.mxu0 0.0
      %518 = vmatpush1.msra.mxu0 0.0
      %519 = vmatprep.subr.mxu0 0.0
      %520 = vmatpush1.msra.mxu0 0.0
      %521 = vmatprep.subr.mxu0 0.0
      %522 = vmatpush1.msra.mxu0 0.0
      %523 = vmatprep.subr.mxu0 0.0
      %524 = vmatpush1.msra.mxu0 %v381
      %525 = vmatprep.subr.mxu0 0.0
      %526 = vmatpush1.msra.mxu0 %v380
      %527 = vmatprep.subr.mxu0 0.0
      %528 = vmatpush1.msra.mxu0 %v379
      %529 = vmatprep.subr.mxu0 0.0
      %530 = vmatpush1.msra.mxu0 %v378
      %531 = vmatprep.subr.mxu0 0.0
      %532 = vmatpush2.msra.mxu0 0.0
      %533 = vmatprep.subr.mxu0 0.0
      %534 = vmatpush2.msra.mxu0 0.0
      %535 = vmatprep.subr.mxu0 0.0
      %536 = vmatpush2.msra.mxu0 0.0
      %537 = vmatprep.subr.mxu0 0.0
      %538 = vmatpush2.msra.mxu0 0.0
      %539 = vmatprep.subr.mxu0 0.0
      %540 = vmatpush2.msra.mxu0 0.0
      %541 = vmatprep.subr.mxu0 0.0
      %542 = vmatpush2.msra.mxu0 0.0
      %543 = vmatprep.subr.mxu0 0.0
      %544 = vmatpush2.msra.mxu0 0.0
      %545 = vmatprep.subr.mxu0 0.0
      %546 = vmatpush2.msra.mxu0 0.0
      %547 = vmatprep.subr.mxu0 0.0
      %548 = vmatpush2.msra.mxu0 0.0
      %549 = vmatprep.subr.mxu0 0.0
      %550 = vmatpush2.msra.mxu0 0.0
      %551 = vmatprep.subr.mxu0 0.0
      %552 = vmatpush2.msra.mxu0 0.0
      %553 = vmatprep.subr.mxu0 0.0
      %554 = vmatpush2.msra.mxu0 0.0
      %555 = vmatprep.subr.mxu0 0.0
      %556 = vmatpush2.msra.mxu0 0.0
      %557 = vmatprep.subr.mxu0 0.0
      %558 = vmatpush2.msra.mxu0 0.0
      %559 = vmatprep.subr.mxu0 0.0
      %560 = vmatpush2.msra.mxu0 0.0
      %561 = vmatprep.subr.mxu0 0.0
      %562 = vmatpush2.msra.mxu0 0.0
      %563 = vmatprep.mubr.f32.mxu0 0.0
      %564 = vmatmul.mubr.f32.gmra.mxu0 %v497
      %v565 = vpop.f32.mrf.mxu0
      %v566 = vadd.f32 0.0, %v565
      %v567 = vpop.f32.mrf.mxu0
      %568 = vdwg.mxu0
      %v569 = vadd.f32 %v496, %v566
      %v570 = vxor.u32 %v569, 2147483648
      %v571 = vmul.f32 %v570, 1.442695
      %v572 = vpow.pop %v571
      %v573 = vadd.f32 %v572, 1.0
      %v574 = vrcp.pop %v573
      %v575 = vmul.f32 1.0, %v574
      %v576 = vtanh.pop %v569
      %v577 = vmul.f32 %v575, %v479
      %579 = vrot.lane.b32.xlu0 %v576, 64
      %v580 = vpop.permute.xlu0 %579
      %v582 = vmul.f32 %v575, %v580
      %584 = vrot.lane.b32.xlu0 %v582, 32
      %v585 = vpop.permute.xlu0 %584
      %v587 = vadd.f32 %v577, %v585
      %v588 = vtanh.pop %v587
      %590 = vrot.lane.b32.xlu0 %v588, 64
      %v591 = vpop.permute.xlu0 %590
      %v593 = vmul.f32 %v575, %v591
      %595 = vrot.lane.b32.xlu0 %v593, 32
      %v596 = vpop.permute.xlu0 %595
      %s598 = scalar_lea.vmem %s265, %s494
      %599 = vst.msk [vmem:[%s598] sm:$0x3] %vm491, %v596
      %s600 = scalar_select %p382, 5, 2
      %s601 = smul.u32 %s600, 2
      %s602 = scalar_lea.vmem [#allocation2], %s601
      %v603 = vld [vmem:[%s602] sm:$0x3]
      %v604 = vsel %vm387, %v596, 0
      %606 = vmatprep.subr.mxu0 0.0
      %607 = vmatpush1.msra.mxu0 0.0
      %608 = vmatprep.subr.mxu0 0.0
      %609 = vmatpush1.msra.mxu0 0.0
      %610 = vmatprep.subr.mxu0 0.0
      %611 = vmatpush1.msra.mxu0 0.0
      %612 = vmatprep.subr.mxu0 0.0
      %613 = vmatpush1.msra.mxu0 0.0
      %614 = vmatprep.subr.mxu0 0.0
      %615 = vmatpush1.msra.mxu0 0.0
      %616 = vmatprep.subr.mxu0 0.0
      %617 = vmatpush1.msra.mxu0 0.0
      %618 = vmatprep.subr.mxu0 0.0
      %619 = vmatpush1.msra.mxu0 0.0
      %620 = vmatprep.subr.mxu0 0.0
      %621 = vmatpush1.msra.mxu0 0.0
      %622 = vmatprep.subr.mxu0 0.0
      %623 = vmatpush1.msra.mxu0 0.0
      %624 = vmatprep.subr.mxu0 0.0
      %625 = vmatpush1.msra.mxu0 0.0
      %626 = vmatprep.subr.mxu0 0.0
      %627 = vmatpush1.msra.mxu0 0.0
      %628 = vmatprep.subr.mxu0 0.0
      %629 = vmatpush1.msra.mxu0 0.0
      %630 = vmatprep.subr.mxu0 0.0
      %631 = vmatpush1.msra.mxu0 %v381
      %632 = vmatprep.subr.mxu0 0.0
      %633 = vmatpush1.msra.mxu0 %v380
      %634 = vmatprep.subr.mxu0 0.0
      %635 = vmatpush1.msra.mxu0 %v379
      %636 = vmatprep.subr.mxu0 0.0
      %637 = vmatpush1.msra.mxu0 %v378
      %638 = vmatprep.subr.mxu0 0.0
      %639 = vmatpush2.msra.mxu0 0.0
      %640 = vmatprep.subr.mxu0 0.0
      %641 = vmatpush2.msra.mxu0 0.0
      %642 = vmatprep.subr.mxu0 0.0
      %643 = vmatpush2.msra.mxu0 0.0
      %644 = vmatprep.subr.mxu0 0.0
      %645 = vmatpush2.msra.mxu0 0.0
      %646 = vmatprep.subr.mxu0 0.0
      %647 = vmatpush2.msra.mxu0 0.0
      %648 = vmatprep.subr.mxu0 0.0
      %649 = vmatpush2.msra.mxu0 0.0
      %650 = vmatprep.subr.mxu0 0.0
      %651 = vmatpush2.msra.mxu0 0.0
      %652 = vmatprep.subr.mxu0 0.0
      %653 = vmatpush2.msra.mxu0 0.0
      %654 = vmatprep.subr.mxu0 0.0
      %655 = vmatpush2.msra.mxu0 0.0
      %656 = vmatprep.subr.mxu0 0.0
      %657 = vmatpush2.msra.mxu0 0.0
      %658 = vmatprep.subr.mxu0 0.0
      %659 = vmatpush2.msra.mxu0 0.0
      %660 = vmatprep.subr.mxu0 0.0
      %661 = vmatpush2.msra.mxu0 0.0
      %662 = vmatprep.subr.mxu0 0.0
      %663 = vmatpush2.msra.mxu0 0.0
      %664 = vmatprep.subr.mxu0 0.0
      %665 = vmatpush2.msra.mxu0 0.0
      %666 = vmatprep.subr.mxu0 0.0
      %667 = vmatpush2.msra.mxu0 0.0
      %668 = vmatprep.subr.mxu0 0.0
      %669 = vmatpush2.msra.mxu0 0.0
      %670 = vmatprep.mubr.f32.mxu0 0.0
      %671 = vmatmul.mubr.f32.gmra.mxu0 %v604
      %v672 = vpop.f32.mrf.mxu0
      %v673 = vadd.f32 0.0, %v672
      %v674 = vpop.f32.mrf.mxu0
      %675 = vdwg.mxu0
      %v676 = vadd.f32 %v603, %v673
      %v677 = vxor.u32 %v676, 2147483648
      %v678 = vmul.f32 %v677, 1.442695
      %v679 = vpow.pop %v678
      %v680 = vadd.f32 %v679, 1.0
      %v681 = vrcp.pop %v680
      %v682 = vmul.f32 1.0, %v681
      %v683 = vtanh.pop %v676
      %v684 = vmul.f32 %v682, %v587
      %686 = vrot.lane.b32.xlu0 %v683, 64
      %v687 = vpop.permute.xlu0 %686
      %v689 = vmul.f32 %v682, %v687
      %691 = vrot.lane.b32.xlu0 %v689, 32
      %v692 = vpop.permute.xlu0 %691
      %v694 = vadd.f32 %v684, %v692
      %v695 = vtanh.pop %v694
      %697 = vrot.lane.b32.xlu0 %v695, 64
      %v698 = vpop.permute.xlu0 %697
      %v700 = vmul.f32 %v682, %v698
      %702 = vrot.lane.b32.xlu0 %v700, 32
      %v703 = vpop.permute.xlu0 %702
      %s705 = scalar_lea.vmem %s265, %s601
      %706 = vst.msk [vmem:[%s705] sm:$0x3] %vm491, %v703
      %s707 = scalar_select %p382, 4, 3
      %s708 = smul.u32 %s707, 2
      %s709 = scalar_lea.vmem [#allocation2], %s708
      %v710 = vld [vmem:[%s709] sm:$0x3]
      %v711 = vsel %vm387, %v703, 0
      %713 = vmatprep.subr.mxu0 0.0
      %714 = vmatpush1.msra.mxu0 0.0
      %715 = vmatprep.subr.mxu0 0.0
      %716 = vmatpush1.msra.mxu0 0.0
      %717 = vmatprep.subr.mxu0 0.0
      %718 = vmatpush1.msra.mxu0 0.0
      %719 = vmatprep.subr.mxu0 0.0
      %720 = vmatpush1.msra.mxu0 0.0
      %721 = vmatprep.subr.mxu0 0.0
      %722 = vmatpush1.msra.mxu0 0.0
      %723 = vmatprep.subr.mxu0 0.0
      %724 = vmatpush1.msra.mxu0 0.0
      %725 = vmatprep.subr.mxu0 0.0
      %726 = vmatpush1.msra.mxu0 0.0
      %727 = vmatprep.subr.mxu0 0.0
      %728 = vmatpush1.msra.mxu0 0.0
      %729 = vmatprep.subr.mxu0 0.0
      %730 = vmatpush1.msra.mxu0 0.0
      %731 = vmatprep.subr.mxu0 0.0
      %732 = vmatpush1.msra.mxu0 0.0
      %733 = vmatprep.subr.mxu0 0.0
      %734 = vmatpush1.msra.mxu0 0.0
      %735 = vmatprep.subr.mxu0 0.0
      %736 = vmatpush1.msra.mxu0 0.0
      %737 = vmatprep.subr.mxu0 0.0
      %738 = vmatpush1.msra.mxu0 %v381
      %739 = vmatprep.subr.mxu0 0.0
      %740 = vmatpush1.msra.mxu0 %v380
      %741 = vmatprep.subr.mxu0 0.0
      %742 = vmatpush1.msra.mxu0 %v379
      %743 = vmatprep.subr.mxu0 0.0
      %744 = vmatpush1.msra.mxu0 %v378
      %745 = vmatprep.subr.mxu0 0.0
      %746 = vmatpush2.msra.mxu0 0.0
      %747 = vmatprep.subr.mxu0 0.0
      %748 = vmatpush2.msra.mxu0 0.0
      %749 = vmatprep.subr.mxu0 0.0
      %750 = vmatpush2.msra.mxu0 0.0
      %751 = vmatprep.subr.mxu0 0.0
      %752 = vmatpush2.msra.mxu0 0.0
      %753 = vmatprep.subr.mxu0 0.0
      %754 = vmatpush2.msra.mxu0 0.0
      %755 = vmatprep.subr.mxu0 0.0
      %756 = vmatpush2.msra.mxu0 0.0
      %757 = vmatprep.subr.mxu0 0.0
      %758 = vmatpush2.msra.mxu0 0.0
      %759 = vmatprep.subr.mxu0 0.0
      %760 = vmatpush2.msra.mxu0 0.0
      %761 = vmatprep.subr.mxu0 0.0
      %762 = vmatpush2.msra.mxu0 0.0
      %763 = vmatprep.subr.mxu0 0.0
      %764 = vmatpush2.msra.mxu0 0.0
      %765 = vmatprep.subr.mxu0 0.0
      %766 = vmatpush2.msra.mxu0 0.0
      %767 = vmatprep.subr.mxu0 0.0
      %768 = vmatpush2.msra.mxu0 0.0
      %769 = vmatprep.subr.mxu0 0.0
      %770 = vmatpush2.msra.mxu0 0.0
      %771 = vmatprep.subr.mxu0 0.0
      %772 = vmatpush2.msra.mxu0 0.0
      %773 = vmatprep.subr.mxu0 0.0
      %774 = vmatpush2.msra.mxu0 0.0
      %775 = vmatprep.subr.mxu0 0.0
      %776 = vmatpush2.msra.mxu0 0.0
      %777 = vmatprep.mubr.f32.mxu0 0.0
      %778 = vmatmul.mubr.f32.gmra.mxu0 %v711
      %v779 = vpop.f32.mrf.mxu0
      %v780 = vadd.f32 0.0, %v779
      %v781 = vpop.f32.mrf.mxu0
      %782 = vdwg.mxu0
      %v783 = vadd.f32 %v710, %v780
      %v784 = vxor.u32 %v783, 2147483648
      %v785 = vmul.f32 %v784, 1.442695
      %v786 = vpow.pop %v785
      %v787 = vadd.f32 %v786, 1.0
      %v788 = vrcp.pop %v787
      %v789 = vmul.f32 1.0, %v788
      %v790 = vtanh.pop %v783
      %v791 = vmul.f32 %v789, %v694
      %793 = vrot.lane.b32.xlu0 %v790, 64
      %v794 = vpop.permute.xlu0 %793
      %v796 = vmul.f32 %v789, %v794
      %798 = vrot.lane.b32.xlu0 %v796, 32
      %v799 = vpop.permute.xlu0 %798
      %v801 = vadd.f32 %v791, %v799
      %v802 = vtanh.pop %v801
      %804 = vrot.lane.b32.xlu0 %v802, 64
      %v805 = vpop.permute.xlu0 %804
      %v807 = vmul.f32 %v789, %v805
      %809 = vrot.lane.b32.xlu0 %v807, 32
      %v810 = vpop.permute.xlu0 %809
      %s812 = scalar_lea.vmem %s265, %s708
      %813 = vst.msk [vmem:[%s812] sm:$0x3] %vm491, %v810
      %s814 = scalar_select %p382, 3, 4
      %s815 = smul.u32 %s814, 2
      %s816 = scalar_lea.vmem [#allocation2], %s815
      %v817 = vld [vmem:[%s816] sm:$0x3]
      %v818 = vsel %vm387, %v810, 0
      %820 = vmatprep.subr.mxu0 0.0
      %821 = vmatpush1.msra.mxu0 0.0
      %822 = vmatprep.subr.mxu0 0.0
      %823 = vmatpush1.msra.mxu0 0.0
      %824 = vmatprep.subr.mxu0 0.0
      %825 = vmatpush1.msra.mxu0 0.0
      %826 = vmatprep.subr.mxu0 0.0
      %827 = vmatpush1.msra.mxu0 0.0
      %828 = vmatprep.subr.mxu0 0.0
      %829 = vmatpush1.msra.mxu0 0.0
      %830 = vmatprep.subr.mxu0 0.0
      %831 = vmatpush1.msra.mxu0 0.0
      %832 = vmatprep.subr.mxu0 0.0
      %833 = vmatpush1.msra.mxu0 0.0
      %834 = vmatprep.subr.mxu0 0.0
      %835 = vmatpush1.msra.mxu0 0.0
      %836 = vmatprep.subr.mxu0 0.0
      %837 = vmatpush1.msra.mxu0 0.0
      %838 = vmatprep.subr.mxu0 0.0
      %839 = vmatpush1.msra.mxu0 0.0
      %840 = vmatprep.subr.mxu0 0.0
      %841 = vmatpush1.msra.mxu0 0.0
      %842 = vmatprep.subr.mxu0 0.0
      %843 = vmatpush1.msra.mxu0 0.0
      %844 = vmatprep.subr.mxu0 0.0
      %845 = vmatpush1.msra.mxu0 %v381
      %846 = vmatprep.subr.mxu0 0.0
      %847 = vmatpush1.msra.mxu0 %v380
      %848 = vmatprep.subr.mxu0 0.0
      %849 = vmatpush1.msra.mxu0 %v379
      %850 = vmatprep.subr.mxu0 0.0
      %851 = vmatpush1.msra.mxu0 %v378
      %852 = vmatprep.subr.mxu0 0.0
      %853 = vmatpush2.msra.mxu0 0.0
      %854 = vmatprep.subr.mxu0 0.0
      %855 = vmatpush2.msra.mxu0 0.0
      %856 = vmatprep.subr.mxu0 0.0
      %857 = vmatpush2.msra.mxu0 0.0
      %858 = vmatprep.subr.mxu0 0.0
      %859 = vmatpush2.msra.mxu0 0.0
      %860 = vmatprep.subr.mxu0 0.0
      %861 = vmatpush2.msra.mxu0 0.0
      %862 = vmatprep.subr.mxu0 0.0
      %863 = vmatpush2.msra.mxu0 0.0
      %864 = vmatprep.subr.mxu0 0.0
      %865 = vmatpush2.msra.mxu0 0.0
      %866 = vmatprep.subr.mxu0 0.0
      %867 = vmatpush2.msra.mxu0 0.0
      %868 = vmatprep.subr.mxu0 0.0
      %869 = vmatpush2.msra.mxu0 0.0
      %870 = vmatprep.subr.mxu0 0.0
      %871 = vmatpush2.msra.mxu0 0.0
      %872 = vmatprep.subr.mxu0 0.0
      %873 = vmatpush2.msra.mxu0 0.0
      %874 = vmatprep.subr.mxu0 0.0
      %875 = vmatpush2.msra.mxu0 0.0
      %876 = vmatprep.subr.mxu0 0.0
      %877 = vmatpush2.msra.mxu0 0.0
      %878 = vmatprep.subr.mxu0 0.0
      %879 = vmatpush2.msra.mxu0 0.0
      %880 = vmatprep.subr.mxu0 0.0
      %881 = vmatpush2.msra.mxu0 0.0
      %882 = vmatprep.subr.mxu0 0.0
      %883 = vmatpush2.msra.mxu0 0.0
      %884 = vmatprep.mubr.f32.mxu0 0.0
      %885 = vmatmul.mubr.f32.gmra.mxu0 %v818
      %v886 = vpop.f32.mrf.mxu0
      %v887 = vadd.f32 0.0, %v886
      %v888 = vpop.f32.mrf.mxu0
      %889 = vdwg.mxu0
      %v890 = vadd.f32 %v817, %v887
      %v891 = vxor.u32 %v890, 2147483648
      %v892 = vmul.f32 %v891, 1.442695
      %v893 = vpow.pop %v892
      %v894 = vadd.f32 %v893, 1.0
      %v895 = vrcp.pop %v894
      %v896 = vmul.f32 1.0, %v895
      %v897 = vtanh.pop %v890
      %v898 = vmul.f32 %v896, %v801
      %900 = vrot.lane.b32.xlu0 %v897, 64
      %v901 = vpop.permute.xlu0 %900
      %v903 = vmul.f32 %v896, %v901
      %905 = vrot.lane.b32.xlu0 %v903, 32
      %v906 = vpop.permute.xlu0 %905
      %v908 = vadd.f32 %v898, %v906
      %v909 = vtanh.pop %v908
      %911 = vrot.lane.b32.xlu0 %v909, 64
      %v912 = vpop.permute.xlu0 %911
      %v914 = vmul.f32 %v896, %v912
      %916 = vrot.lane.b32.xlu0 %v914, 32
      %v917 = vpop.permute.xlu0 %916
      %s919 = scalar_lea.vmem %s265, %s815
      %920 = vst.msk [vmem:[%s919] sm:$0x3] %vm491, %v917
      %s921 = scalar_select %p382, 2, 5
      %s922 = smul.u32 %s921, 2
      %s923 = scalar_lea.vmem [#allocation2], %s922
      %v924 = vld [vmem:[%s923] sm:$0x3]
      %v925 = vsel %vm387, %v917, 0
      %927 = vmatprep.subr.mxu0 0.0
      %928 = vmatpush1.msra.mxu0 0.0
      %929 = vmatprep.subr.mxu0 0.0
      %930 = vmatpush1.msra.mxu0 0.0
      %931 = vmatprep.subr.mxu0 0.0
      %932 = vmatpush1.msra.mxu0 0.0
      %933 = vmatprep.subr.mxu0 0.0
      %934 = vmatpush1.msra.mxu0 0.0
      %935 = vmatprep.subr.mxu0 0.0
      %936 = vmatpush1.msra.mxu0 0.0
      %937 = vmatprep.subr.mxu0 0.0
      %938 = vmatpush1.msra.mxu0 0.0
      %939 = vmatprep.subr.mxu0 0.0
      %940 = vmatpush1.msra.mxu0 0.0
      %941 = vmatprep.subr.mxu0 0.0
      %942 = vmatpush1.msra.mxu0 0.0
      %943 = vmatprep.subr.mxu0 0.0
      %944 = vmatpush1.msra.mxu0 0.0
      %945 = vmatprep.subr.mxu0 0.0
      %946 = vmatpush1.msra.mxu0 0.0
      %947 = vmatprep.subr.mxu0 0.0
      %948 = vmatpush1.msra.mxu0 0.0
      %949 = vmatprep.subr.mxu0 0.0
      %950 = vmatpush1.msra.mxu0 0.0
      %951 = vmatprep.subr.mxu0 0.0
      %952 = vmatpush1.msra.mxu0 %v381
      %953 = vmatprep.subr.mxu0 0.0
      %954 = vmatpush1.msra.mxu0 %v380
      %955 = vmatprep.subr.mxu0 0.0
      %956 = vmatpush1.msra.mxu0 %v379
      %957 = vmatprep.subr.mxu0 0.0
      %958 = vmatpush1.msra.mxu0 %v378
      %959 = vmatprep.subr.mxu0 0.0
      %960 = vmatpush2.msra.mxu0 0.0
      %961 = vmatprep.subr.mxu0 0.0
      %962 = vmatpush2.msra.mxu0 0.0
      %963 = vmatprep.subr.mxu0 0.0
      %964 = vmatpush2.msra.mxu0 0.0
      %965 = vmatprep.subr.mxu0 0.0
      %966 = vmatpush2.msra.mxu0 0.0
      %967 = vmatprep.subr.mxu0 0.0
      %968 = vmatpush2.msra.mxu0 0.0
      %969 = vmatprep.subr.mxu0 0.0
      %970 = vmatpush2.msra.mxu0 0.0
      %971 = vmatprep.subr.mxu0 0.0
      %972 = vmatpush2.msra.mxu0 0.0
      %973 = vmatprep.subr.mxu0 0.0
      %974 = vmatpush2.msra.mxu0 0.0
      %975 = vmatprep.subr.mxu0 0.0
      %976 = vmatpush2.msra.mxu0 0.0
      %977 = vmatprep.subr.mxu0 0.0
      %978 = vmatpush2.msra.mxu0 0.0
      %979 = vmatprep.subr.mxu0 0.0
      %980 = vmatpush2.msra.mxu0 0.0
      %981 = vmatprep.subr.mxu0 0.0
      %982 = vmatpush2.msra.mxu0 0.0
      %983 = vmatprep.subr.mxu0 0.0
      %984 = vmatpush2.msra.mxu0 0.0
      %985 = vmatprep.subr.mxu0 0.0
      %986 = vmatpush2.msra.mxu0 0.0
      %987 = vmatprep.subr.mxu0 0.0
      %988 = vmatpush2.msra.mxu0 0.0
      %989 = vmatprep.subr.mxu0 0.0
      %990 = vmatpush2.msra.mxu0 0.0
      %991 = vmatprep.mubr.f32.mxu0 0.0
      %992 = vmatmul.mubr.f32.gmra.mxu0 %v925
      %v993 = vpop.f32.mrf.mxu0
      %v994 = vadd.f32 0.0, %v993
      %v995 = vpop.f32.mrf.mxu0
      %996 = vdwg.mxu0
      %v997 = vadd.f32 %v924, %v994
      %v998 = vxor.u32 %v997, 2147483648
      %v999 = vmul.f32 %v998, 1.442695
      %v1000 = vpow.pop %v999
      %v1001 = vadd.f32 %v1000, 1.0
      %v1002 = vrcp.pop %v1001
      %v1003 = vmul.f32 1.0, %v1002
      %v1004 = vtanh.pop %v997
      %v1005 = vmul.f32 %v1003, %v908
      %1007 = vrot.lane.b32.xlu0 %v1004, 64
      %v1008 = vpop.permute.xlu0 %1007
      %v1010 = vmul.f32 %v1003, %v1008
      %1012 = vrot.lane.b32.xlu0 %v1010, 32
      %v1013 = vpop.permute.xlu0 %1012
      %v1015 = vadd.f32 %v1005, %v1013
      %v1016 = vtanh.pop %v1015
      %1018 = vrot.lane.b32.xlu0 %v1016, 64
      %v1019 = vpop.permute.xlu0 %1018
      %v1021 = vmul.f32 %v1003, %v1019
      %1023 = vrot.lane.b32.xlu0 %v1021, 32
      %v1024 = vpop.permute.xlu0 %1023
      %s1026 = scalar_lea.vmem %s265, %s922
      %1027 = vst.msk [vmem:[%s1026] sm:$0x3] %vm491, %v1024
      %s1028 = scalar_select %p382, 1, 6
      %s1029 = smul.u32 %s1028, 2
      %s1030 = scalar_lea.vmem [#allocation2], %s1029
      %v1031 = vld [vmem:[%s1030] sm:$0x3]
      %v1032 = vsel %vm387, %v1024, 0
      %1034 = vmatprep.subr.mxu0 0.0
      %1035 = vmatpush1.msra.mxu0 0.0
      %1036 = vmatprep.subr.mxu0 0.0
      %1037 = vmatpush1.msra.mxu0 0.0
      %1038 = vmatprep.subr.mxu0 0.0
      %1039 = vmatpush1.msra.mxu0 0.0
      %1040 = vmatprep.subr.mxu0 0.0
      %1041 = vmatpush1.msra.mxu0 0.0
      %1042 = vmatprep.subr.mxu0 0.0
      %1043 = vmatpush1.msra.mxu0 0.0
      %1044 = vmatprep.subr.mxu0 0.0
      %1045 = vmatpush1.msra.mxu0 0.0
      %1046 = vmatprep.subr.mxu0 0.0
      %1047 = vmatpush1.msra.mxu0 0.0
      %1048 = vmatprep.subr.mxu0 0.0
      %1049 = vmatpush1.msra.mxu0 0.0
      %1050 = vmatprep.subr.mxu0 0.0
      %1051 = vmatpush1.msra.mxu0 0.0
      %1052 = vmatprep.subr.mxu0 0.0
      %1053 = vmatpush1.msra.mxu0 0.0
      %1054 = vmatprep.subr.mxu0 0.0
      %1055 = vmatpush1.msra.mxu0 0.0
      %1056 = vmatprep.subr.mxu0 0.0
      %1057 = vmatpush1.msra.mxu0 0.0
      %1058 = vmatprep.subr.mxu0 0.0
      %1059 = vmatpush1.msra.mxu0 %v381
      %1060 = vmatprep.subr.mxu0 0.0
      %1061 = vmatpush1.msra.mxu0 %v380
      %1062 = vmatprep.subr.mxu0 0.0
      %1063 = vmatpush1.msra.mxu0 %v379
      %1064 = vmatprep.subr.mxu0 0.0
      %1065 = vmatpush1.msra.mxu0 %v378
      %1066 = vmatprep.subr.mxu0 0.0
      %1067 = vmatpush2.msra.mxu0 0.0
      %1068 = vmatprep.subr.mxu0 0.0
      %1069 = vmatpush2.msra.mxu0 0.0
      %1070 = vmatprep.subr.mxu0 0.0
      %1071 = vmatpush2.msra.mxu0 0.0
      %1072 = vmatprep.subr.mxu0 0.0
      %1073 = vmatpush2.msra.mxu0 0.0
      %1074 = vmatprep.subr.mxu0 0.0
      %1075 = vmatpush2.msra.mxu0 0.0
      %1076 = vmatprep.subr.mxu0 0.0
      %1077 = vmatpush2.msra.mxu0 0.0
      %1078 = vmatprep.subr.mxu0 0.0
      %1079 = vmatpush2.msra.mxu0 0.0
      %1080 = vmatprep.subr.mxu0 0.0
      %1081 = vmatpush2.msra.mxu0 0.0
      %1082 = vmatprep.subr.mxu0 0.0
      %1083 = vmatpush2.msra.mxu0 0.0
      %1084 = vmatprep.subr.mxu0 0.0
      %1085 = vmatpush2.msra.mxu0 0.0
      %1086 = vmatprep.subr.mxu0 0.0
      %1087 = vmatpush2.msra.mxu0 0.0
      %1088 = vmatprep.subr.mxu0 0.0
      %1089 = vmatpush2.msra.mxu0 0.0
      %1090 = vmatprep.subr.mxu0 0.0
      %1091 = vmatpush2.msra.mxu0 0.0
      %1092 = vmatprep.subr.mxu0 0.0
      %1093 = vmatpush2.msra.mxu0 0.0
      %1094 = vmatprep.subr.mxu0 0.0
      %1095 = vmatpush2.msra.mxu0 0.0
      %1096 = vmatprep.subr.mxu0 0.0
      %1097 = vmatpush2.msra.mxu0 0.0
      %1098 = vmatprep.mubr.f32.mxu0 0.0
      %1099 = vmatmul.mubr.f32.gmra.mxu0 %v1032
      %v1100 = vpop.f32.mrf.mxu0
      %v1101 = vadd.f32 0.0, %v1100
      %v1102 = vpop.f32.mrf.mxu0
      %1103 = vdwg.mxu0
      %v1104 = vadd.f32 %v1031, %v1101
      %v1105 = vxor.u32 %v1104, 2147483648
      %v1106 = vmul.f32 %v1105, 1.442695
      %v1107 = vpow.pop %v1106
      %v1108 = vadd.f32 %v1107, 1.0
      %v1109 = vrcp.pop %v1108
      %v1110 = vmul.f32 1.0, %v1109
      %v1111 = vtanh.pop %v1104
      %v1112 = vmul.f32 %v1110, %v1015
      %1114 = vrot.lane.b32.xlu0 %v1111, 64
      %v1115 = vpop.permute.xlu0 %1114
      %v1117 = vmul.f32 %v1110, %v1115
      %1119 = vrot.lane.b32.xlu0 %v1117, 32
      %v1120 = vpop.permute.xlu0 %1119
      %v1122 = vadd.f32 %v1112, %v1120
      %v1123 = vtanh.pop %v1122
      %1125 = vrot.lane.b32.xlu0 %v1123, 64
      %v1126 = vpop.permute.xlu0 %1125
      %v1128 = vmul.f32 %v1110, %v1126
      %1130 = vrot.lane.b32.xlu0 %v1128, 32
      %v1131 = vpop.permute.xlu0 %1130
      %s1133 = scalar_lea.vmem %s265, %s1029
      %1134 = vst.msk [vmem:[%s1133] sm:$0x3] %vm491, %v1131
      %s1135 = scalar_select %p382, 0, 7
      %s1136 = smul.u32 %s1135, 2
      %s1137 = scalar_lea.vmem [#allocation2], %s1136
      %v1138 = vld [vmem:[%s1137] sm:$0x3]
      %v1139 = vsel %vm387, %v1131, 0
      %1141 = vmatprep.subr.mxu0 0.0
      %1142 = vmatpush1.msra.mxu0 0.0
      %1143 = vmatprep.subr.mxu0 0.0
      %1144 = vmatpush1.msra.mxu0 0.0
      %1145 = vmatprep.subr.mxu0 0.0
      %1146 = vmatpush1.msra.mxu0 0.0
      %1147 = vmatprep.subr.mxu0 0.0
      %1148 = vmatpush1.msra.mxu0 0.0
      %1149 = vmatprep.subr.mxu0 0.0
      %1150 = vmatpush1.msra.mxu0 0.0
      %1151 = vmatprep.subr.mxu0 0.0
      %1152 = vmatpush1.msra.mxu0 0.0
      %1153 = vmatprep.subr.mxu0 0.0
      %1154 = vmatpush1.msra.mxu0 0.0
      %1155 = vmatprep.subr.mxu0 0.0
      %1156 = vmatpush1.msra.mxu0 0.0
      %1157 = vmatprep.subr.mxu0 0.0
      %1158 = vmatpush1.msra.mxu0 0.0
      %1159 = vmatprep.subr.mxu0 0.0
      %1160 = vmatpush1.msra.mxu0 0.0
      %1161 = vmatprep.subr.mxu0 0.0
      %1162 = vmatpush1.msra.mxu0 0.0
      %1163 = vmatprep.subr.mxu0 0.0
      %1164 = vmatpush1.msra.mxu0 0.0
      %1165 = vmatprep.subr.mxu0 0.0
      %1166 = vmatpush1.msra.mxu0 %v381
      %1167 = vmatprep.subr.mxu0 0.0
      %1168 = vmatpush1.msra.mxu0 %v380
      %1169 = vmatprep.subr.mxu0 0.0
      %1170 = vmatpush1.msra.mxu0 %v379
      %1171 = vmatprep.subr.mxu0 0.0
      %1172 = vmatpush1.msra.mxu0 %v378
      %1173 = vmatprep.subr.mxu0 0.0
      %1174 = vmatpush2.msra.mxu0 0.0
      %1175 = vmatprep.subr.mxu0 0.0
      %1176 = vmatpush2.msra.mxu0 0.0
      %1177 = vmatprep.subr.mxu0 0.0
      %1178 = vmatpush2.msra.mxu0 0.0
      %1179 = vmatprep.subr.mxu0 0.0
      %1180 = vmatpush2.msra.mxu0 0.0
      %1181 = vmatprep.subr.mxu0 0.0
      %1182 = vmatpush2.msra.mxu0 0.0
      %1183 = vmatprep.subr.mxu0 0.0
      %1184 = vmatpush2.msra.mxu0 0.0
      %1185 = vmatprep.subr.mxu0 0.0
      %1186 = vmatpush2.msra.mxu0 0.0
      %1187 = vmatprep.subr.mxu0 0.0
      %1188 = vmatpush2.msra.mxu0 0.0
      %1189 = vmatprep.subr.mxu0 0.0
      %1190 = vmatpush2.msra.mxu0 0.0
      %1191 = vmatprep.subr.mxu0 0.0
      %1192 = vmatpush2.msra.mxu0 0.0
      %1193 = vmatprep.subr.mxu0 0.0
      %1194 = vmatpush2.msra.mxu0 0.0
      %1195 = vmatprep.subr.mxu0 0.0
      %1196 = vmatpush2.msra.mxu0 0.0
      %1197 = vmatprep.subr.mxu0 0.0
      %1198 = vmatpush2.msra.mxu0 0.0
      %1199 = vmatprep.subr.mxu0 0.0
      %1200 = vmatpush2.msra.mxu0 0.0
      %1201 = vmatprep.subr.mxu0 0.0
      %1202 = vmatpush2.msra.mxu0 0.0
      %1203 = vmatprep.subr.mxu0 0.0
      %1204 = vmatpush2.msra.mxu0 0.0
      %1205 = vmatprep.mubr.f32.mxu0 0.0
      %1206 = vmatmul.mubr.f32.gmra.mxu0 %v1139
      %v1207 = vpop.f32.mrf.mxu0
      %v1208 = vadd.f32 0.0, %v1207
      %v1209 = vpop.f32.mrf.mxu0
      %1210 = vdwg.mxu0
      %v1211 = vadd.f32 %v1138, %v1208
      %v1212 = vxor.u32 %v1211, 2147483648
      %v1213 = vmul.f32 %v1212, 1.442695
      %v1214 = vpow.pop %v1213
      %v1215 = vadd.f32 %v1214, 1.0
      %v1216 = vrcp.pop %v1215
      %v1217 = vmul.f32 1.0, %v1216
      %v1218 = vtanh.pop %v1211
      %v1219 = vmul.f32 %v1217, %v1122
      %1221 = vrot.lane.b32.xlu0 %v1218, 64
      %v1222 = vpop.permute.xlu0 %1221
      %v1224 = vmul.f32 %v1217, %v1222
      %1226 = vrot.lane.b32.xlu0 %v1224, 32
      %v1227 = vpop.permute.xlu0 %1226
      %v1229 = vadd.f32 %v1219, %v1227
      %v1230 = vtanh.pop %v1229
      %1232 = vrot.lane.b32.xlu0 %v1230, 64
      %v1233 = vpop.permute.xlu0 %1232
      %v1235 = vmul.f32 %v1217, %v1233
      %1237 = vrot.lane.b32.xlu0 %v1235, 32
      %v1238 = vpop.permute.xlu0 %1237
      %s1240 = scalar_lea.vmem %s265, %s1136
      %1241 = vst.msk [vmem:[%s1240] sm:$0x3] %vm491, %v1238
      %1242 = vst.msk [vmem:[%s269] sm:$0x3] %vm491, %v1238
      %p1243 = scmp.lt.s32.totalorder %s17, 1
      %s1244 = scalar_select %p1243, %s17, 1
      %s1245 = smul.addr %s1244, 8
      %s1246 = smul.addr %s1245, 2
      %s1247 = scalar_lea.vmem %s4, %s1246
      %p1248 = scmp.lt.s32.totalorder %s17, 1
      %s1249 = scalar_select %p1248, %s17, 1
      %s1250 = smul.addr %s1249, 2
      %s1251 = scalar_lea.vmem %s5, %s1250
      // Predicated region
      $region37: #{model_forward.3} parent=35 // pred_check
        %p1252 = pneg %p134
      $region38: #{model_forward.3} parent=35 // pred_check_branch
        %1254 = sbr.rel (%p1252) target = $region40
      $region39: #{model_forward.3} parent=35 // pred_region
        _
      $region40: #{model_forward.3} parent=35 // pred_fallthru
        _
      // Predicated region
      $region41: #{model_forward.3} parent=35 // pred_check
        %p1255 = pneg %p160
      $region42: #{model_forward.3} parent=35 // pred_check_branch
        %1257 = sbr.rel (%p1255) target = $region44
      $region43: #{model_forward.3} parent=35 // pred_region
        _
      $region44: #{model_forward.3} parent=35 // pred_fallthru
        _
    $region36: #{model_forward.3} parent=5 // pred_fallthru
      _
    %p1258 = scmp.le.s32.totalorder 2, %s12
    // Predicated region
    $region45: #{model_forward.3} parent=5 // pred_check
      %p1259 = pneg %p1258
    $region46: #{model_forward.3} parent=5 // pred_check_branch
      %1261 = sbr.rel (%p1259) target = $region48
    $region47: #{model_forward.3} parent=5 // pred_region
      %s1262 = ssub.s32 %s12, 2
      // Predicated region
      $region49: #{model_forward.3} parent=47 // pred_check
        %p1263 = pneg %p140
      $region50: #{model_forward.3} parent=47 // pred_check_branch
        %1265 = sbr.rel (%p1263) target = $region52
      $region51: #{model_forward.3} parent=47 // pred_region
        %p1266 = scmp.lt.s32.totalorder %s18, 1
        %s1267 = scalar_select %p1266, %s18, 1
        %s1268 = smul.addr %s1267, 8
        %s1269 = smul.addr %s1268, 2
        %s1270 = scalar_lea.vmem %s4, %s1269
      $region52: #{model_forward.3} parent=47 // pred_fallthru
        _
      // Predicated region
      $region53: #{model_forward.3} parent=47 // pred_check
        %p1271 = pneg %p166
      $region54: #{model_forward.3} parent=47 // pred_check_branch
        %1273 = sbr.rel (%p1271) target = $region56
      $region55: #{model_forward.3} parent=47 // pred_region
        %p1274 = scmp.lt.s32.totalorder %s18, 1
        %s1275 = scalar_select %p1274, %s18, 1
        %s1276 = smul.addr %s1275, 2
        %s1277 = scalar_lea.vmem %s5, %s1276
      $region56: #{model_forward.3} parent=47 // pred_fallthru
        _
    $region48: #{model_forward.3} parent=5 // pred_fallthru
      _
  $region6: #{model_forward.3} parent=0 // loop_footer
    %s16 = sadd.s32 1, %s12
  $region7: #{model_forward.3} parent=0 // loop_footer_branch
    %11 = sbr.rel target = $region3
  $region8: #{model_forward.3} parent=0 // loop_exit
    _

</llo_original>
